<compile_context>
chip_gen: v7x
topology: tpu7x:2x2x1
jax: 0.10.0
libtpu: 0.0.40
codegen_flags: <defaults>
</compile_context>

<pallas_src>
import jax
import jax.numpy as jnp
import numpy as np
from jax.experimental import pallas as pl
from jax.experimental.pallas import tpu as pltpu

_MASK_VALUE = -1e30  # finite "-inf": keeps softmax NaN-free even for fully-masked rows


def _round_up(x, m):
    return (x + m - 1) // m * m


def _pad(a, shape, fill=0):
    """Pad `a` up to `shape` with `fill`; no-op (no extra HBM copy) if aligned."""
    if tuple(a.shape) == tuple(shape):
        return a
    out = jnp.full(shape, fill, a.dtype)
    return out.at[tuple(slice(0, d) for d in a.shape)].set(a)


def attention_kernel(x_ref, ctx_ref, mask_ref,
                     wi_ref, bi_ref, wc_ref, bc_ref, v_ref,
                     hidden_ref, alpha_ref,
                     inp_scr, m_scr, l_scr, acc_scr, mhist_scr):
    TB, TS, Dp = ctx_ref.shape
    Hp = wi_ref.shape[1]
    ns = mhist_scr.shape[0]        # number of sequence tiles (static)
    s_idx = pl.program_id(1)

    # ---- init: first sequence tile of this batch tile ----------------------
    @pl.when(s_idx == 0)
    def _init():
        # inp = input_linear(input): (TB, Dp) @ (Dp, Hp), f32 accumulation.
        # Hoisted: computed once per batch tile, not once per sequence tile.
        inp = jnp.dot(x_ref[...], wi_ref[...],
                      preferred_element_type=jnp.float32) + bi_ref[...]
        inp_scr[...] = inp
        m_scr[...] = jnp.full(m_scr.shape, _MASK_VALUE, dtype=jnp.float32)
        l_scr[...] = jnp.zeros(l_scr.shape, dtype=jnp.float32)
        acc_scr[...] = jnp.zeros(acc_scr.shape, dtype=jnp.float32)

    # ---- projected context tile (1x1 conv == pointwise matmul, on MXU) -----
    ctx_proj = jnp.dot(ctx_ref[...].reshape(TB * TS, Dp), wc_ref[...],
                       preferred_element_type=jnp.float32) + bc_ref[...]
    ctx_proj = ctx_proj.reshape(TB, TS, Hp)                     # (TB, TS, Hp) f32

    # ---- additive attention scores: VPU mul + XLU lane reduce --------------
    t = jnp.tanh(ctx_proj + inp_scr[...][:, None, :])           # (TB, TS, Hp)
    att = jnp.sum(t * v_ref[...][None, :, :], axis=-1)          # (TB, TS)
    att = jnp.where(mask_ref[...] != 0, _MASK_VALUE, att)

    # ---- online softmax + alpha-weighted accumulation (VPU sublane reduce) -
    m_prev = m_scr[...]                                          # (TB, 1)
    m_new = jnp.maximum(m_prev, jnp.max(att, axis=-1, keepdims=True))
    corr = jnp.exp(m_prev - m_new)                               # (TB, 1)
    p = jnp.exp(att - m_new)                                     # (TB, TS)
    l_scr[...] = corr * l_scr[...] + jnp.sum(p, axis=-1, keepdims=True)
    acc_scr[...] = corr * acc_scr[...] + jnp.sum(p[:, :, None] * ctx_proj, axis=1)
    m_scr[...] = m_new
    mhist_scr[s_idx] = m_new        # remember the offset used for this tile's p

    # stream the un-normalized p straight into the VMEM-resident alpha block
    off = pl.multiple_of(s_idx * TS, TS)
    alpha_ref[:, pl.ds(off, TS)] = p.astype(alpha_ref.dtype)

    # ---- finalize: last sequence tile ---------------------------------------
    @pl.when(s_idx == pl.num_programs(1) - 1)
    def _finalize():
        inv_l = pl.reciprocal(l_scr[...], approx=True)           # (TB, 1)
        m_fin = m_scr[...]                                       # (TB, 1)
        hidden_ref[...] = (acc_scr[...] * inv_l).astype(hidden_ref.dtype)
        for j in range(ns):       # static unroll; each step is one cheap VPU mul
            scale = jnp.exp(mhist_scr[j] - m_fin) * inv_l        # (TB, 1)
            sl = slice(j * TS, (j + 1) * TS)
            alpha_ref[:, sl] = (alpha_ref[:, sl] * scale).astype(alpha_ref.dtype)


def attention_forward(x, context, mask, wi, bi, wc, bc, v, *,
                      block_b=8, block_s=256, compute_dtype=jnp.float32,
                      vmem_limit_bytes=48 * 1024 * 1024):
    """Pointer-Net attention via Pallas; returns (hidden_state, alpha).

    compute_dtype: dtype fed to the MXU matmuls (context/x/weight streaming).
      Use jnp.bfloat16 on v6e/v7x (and for the MXU path on v5e) to halve the
      HBM stream; accumulation and all softmax math stay in float32.
    """
    B, S, D = context.shape
    H = wi.shape[1]
    f32 = jnp.float32
    cdt = compute_dtype

    Dp = _round_up(D, 128)
    Hp = _round_up(H, 128)
    block_b = min(block_b, _round_up(B, 8))
    block_s = min(block_s, _round_up(S, 128))
    Bp = _round_up(B, block_b)
    Sp = _round_up(S, block_s)
    nb = Bp // block_b   # NOTE(v7x): keep nb >= 2 when B allows, so the
    ns = Sp // block_s   # "parallel" batch axis can shard across both TCs.

    # Pad to MXU/lane-friendly sizes; skipped entirely when already aligned.
    xp = _pad(x.astype(cdt), (Bp, Dp))
    cp = _pad(context.astype(cdt), (Bp, Sp, Dp))
    mp = _pad(mask.astype(jnp.int32), (Bp, Sp), fill=1)   # padded slots masked
    wip = _pad(wi.astype(cdt), (Dp, Hp))
    bip = _pad(bi.astype(f32).reshape(1, H), (1, Hp))
    wcp = _pad(wc.astype(cdt), (Dp, Hp))
    bcp = _pad(bc.astype(f32).reshape(1, H), (1, Hp))
    vp = _pad(v.astype(f32).reshape(1, H), (1, Hp))

    grid_spec = pltpu.PrefetchScalarGridSpec(
        num_scalar_prefetch=0,
        grid=(nb, ns),
        in_specs=[
            pl.BlockSpec((block_b, Dp), lambda b, s: (b, 0)),              # x
            pl.BlockSpec((block_b, block_s, Dp), lambda b, s: (b, s, 0)),  # context
            pl.BlockSpec((block_b, block_s), lambda b, s: (b, s)),         # mask (2-D, int)
            pl.BlockSpec((Dp, Hp), lambda b, s: (0, 0)),                   # Wi (resident)
            pl.BlockSpec((1, Hp), lambda b, s: (0, 0)),                    # bi
            pl.BlockSpec((Dp, Hp), lambda b, s: (0, 0)),                   # Wc (resident)
            pl.BlockSpec((1, Hp), lambda b, s: (0, 0)),                    # bc
            pl.BlockSpec((1, Hp), lambda b, s: (0, 0)),                    # V
        ],
        out_specs=(
            pl.BlockSpec((block_b, Hp), lambda b, s: (b, 0)),              # hidden (2-D)
            pl.BlockSpec((block_b, Sp), lambda b, s: (b, 0)),              # alpha (lane-dense)
        ),
        scratch_shapes=[
            pltpu.VMEM((block_b, Hp), f32),       # hoisted input projection
            pltpu.VMEM((block_b, 1), f32),        # running max
            pltpu.VMEM((block_b, 1), f32),        # running denominator
            pltpu.VMEM((block_b, Hp), f32),       # hidden accumulator
            pltpu.VMEM((ns, block_b, 1), f32),    # per-tile running max history
        ],
    )

    hidden_p, alpha_p = pl.pallas_call(
        attention_kernel,
        out_shape=(jax.ShapeDtypeStruct((Bp, Hp), f32),
                   jax.ShapeDtypeStruct((Bp, Sp), f32)),
        grid_spec=grid_spec,
        compiler_params=pltpu.CompilerParams(
            dimension_semantics=("parallel", "arbitrary"),
            vmem_limit_bytes=vmem_limit_bytes),
    )(xp, cp, mp, wip, bip, wcp, bcp, vp)

    return hidden_p[:B, :H], alpha_p[:B, :S]


def attention_reference(x, context, mask, wi, bi, wc, bc, v):
    """Pure-JAX reference mirroring the PyTorch forward (f32)."""
    inp = x @ wi + bi                                        # (B, H)
    ctx_proj = jnp.einsum('bsd,dh->bsh', context, wc) + bc   # (B, S, H)
    att = jnp.sum(jnp.tanh(inp[:, None, :] + ctx_proj) * v[None, None, :], axis=-1)
    att = jnp.where(mask > 0.5, -jnp.inf, att)
    alpha = jax.nn.softmax(att, axis=1)
    hidden = jnp.einsum('bsh,bs->bh', ctx_proj, alpha)
    return hidden, alpha


if __name__ == "__main__":
    def _run_case(key, B, S, D, H, mask_fn, compute_dtype, tol):
        ks = jax.random.split(key, 8)
        x = jax.random.normal(ks[0], (B, D), dtype=jnp.float32)
        context = jax.random.normal(ks[1], (B, S, D), dtype=jnp.float32)
        mask = mask_fn(ks[7], B, S)
        lim = 1.0 / np.sqrt(D)
        wi = jax.random.uniform(ks[2], (D, H), minval=-lim, maxval=lim, dtype=jnp.float32)
        bi = jax.random.uniform(ks[3], (1, H), minval=-lim, maxval=lim, dtype=jnp.float32)
        wc = jax.random.uniform(ks[4], (D, H), minval=-lim, maxval=lim, dtype=jnp.float32)
        bc = jax.random.uniform(ks[5], (1, H), minval=-lim, maxval=lim, dtype=jnp.float32)
        v = jax.random.uniform(ks[6], (H,), minval=-1.0, maxval=1.0, dtype=jnp.float32)

        hidden, alpha = attention_forward(x, context, mask, wi, bi, wc, bc, v,
                                          compute_dtype=compute_dtype)
        jax.block_until_ready((hidden, alpha))

        # Reference sees identically-quantized streamed operands so the check
        # stays tight even on the bf16 path (remaining diff: approx reciprocal).
        cast = lambda a: a.astype(compute_dtype).astype(jnp.float32)
        h_ref, a_ref = attention_reference(cast(x), cast(context), mask,
                                           cast(wi), bi, cast(wc), bc, v)
        np.testing.assert_allclose(np.asarray(hidden), np.asarray(h_ref), rtol=tol, atol=tol)
        np.testing.assert_allclose(np.asarray(alpha), np.asarray(a_ref), rtol=tol, atol=tol)

    key = jax.random.PRNGKey(0)
    k1, k2, k3 = jax.random.split(key, 3)

    # Case 1: the module's toy shapes (B=2, S=8, D=H=32), two masked slots, f32.
    def small_mask(_, B, S):
        return jnp.zeros((B, S), jnp.float32).at[0, 2].set(1.0).at[1, 5].set(1.0)
    _run_case(k1, B=2, S=8, D=32, H=32, mask_fn=small_mask,
              compute_dtype=jnp.float32, tol=2e-3)

    # Case 2: multiple sequence tiles + padding on every dim (exercises the
    # online-softmax streaming path and the finalize rescale across S tiles).
    def random_mask(k, B, S):
        return (jax.random.uniform(k, (B, S)) < 0.2).astype(jnp.float32)
    _run_case(k2, B=4, S=300, D=32, H=48, mask_fn=random_mask,
              compute_dtype=jnp.float32, tol=2e-3)

    # Case 3: bf16 streaming path (MXU inputs bf16, f32 accumulation/softmax).
    _run_case(k3, B=8, S=400, D=64, H=96, mask_fn=random_mask,
              compute_dtype=jnp.bfloat16, tol=5e-3)

    print("KERNEL_OK")
</pallas_src>

<mosaic_0001>
module attributes {stable_mosaic.version = 11 : i64} {
  func.func @attention_kernel(%arg0: i32, %arg1: i32, %arg2: memref<8x128xf32, #tpu.memory_space<vmem>>, %arg3: memref<8x128x128xf32, #tpu.memory_space<vmem>>, %arg4: memref<8x128xi32, #tpu.memory_space<vmem>>, %arg5: memref<128x128xf32, #tpu.memory_space<vmem>>, %arg6: memref<1x128xf32, #tpu.memory_space<vmem>>, %arg7: memref<128x128xf32, #tpu.memory_space<vmem>>, %arg8: memref<1x128xf32, #tpu.memory_space<vmem>>, %arg9: memref<1x128xf32, #tpu.memory_space<vmem>>, %arg10: memref<8x128xf32, #tpu.memory_space<vmem>>, %arg11: memref<8x128xf32, #tpu.memory_space<vmem>>, %arg12: memref<8x128xf32, #tpu.memory_space<vmem>>, %arg13: memref<8x1xf32, #tpu.memory_space<vmem>>, %arg14: memref<8x1xf32, #tpu.memory_space<vmem>>, %arg15: memref<8x128xf32, #tpu.memory_space<vmem>>, %arg16: memref<1x8x1xf32, #tpu.memory_space<vmem>>) attributes {dimension_semantics = [#tpu.dimension_semantics<parallel>, #tpu.dimension_semantics<arbitrary>], iteration_bounds = array<i64: 1, 1>, scalar_prefetch = 0 : i64, scratch_operands = 5 : i64, tpu.core_type = #tpu.core_type<tc>, window_params = [{transform_indices = @transform_0, window_bounds = array<i64: 8, 128>}, {transform_indices = @transform_1, window_bounds = array<i64: 8, 128, 128>}, {transform_indices = @transform_2, window_bounds = array<i64: 8, 128>}, {pipeline_mode = #tpu.pipeline_mode<synchronous>, transform_indices = @transform_3, window_bounds = array<i64: 128, 128>}, {pipeline_mode = #tpu.pipeline_mode<synchronous>, transform_indices = @transform_4, window_bounds = array<i64: 1, 128>}, {pipeline_mode = #tpu.pipeline_mode<synchronous>, transform_indices = @transform_5, window_bounds = array<i64: 128, 128>}, {pipeline_mode = #tpu.pipeline_mode<synchronous>, transform_indices = @transform_6, window_bounds = array<i64: 1, 128>}, {pipeline_mode = #tpu.pipeline_mode<synchronous>, transform_indices = @transform_7, window_bounds = array<i64: 1, 128>}, {transform_indices = @transform_8, window_bounds = array<i64: 8, 128>}, {transform_indices = @transform_9, window_bounds = array<i64: 8, 128>}]} {
    %c0_i32 = arith.constant 0 : i32
    %0 = arith.cmpi eq, %arg1, %c0_i32 : i32
    %1 = arith.extui %0 : i1 to i32
    %c0_i32_0 = arith.constant 0 : i32
    %2 = arith.cmpi ne, %1, %c0_i32_0 : i32
    scf.if %2 {
      %c0_36 = arith.constant 0 : index
      %c0_37 = arith.constant 0 : index
      %62 = vector.load %arg2[%c0_36, %c0_37] : memref<8x128xf32, #tpu.memory_space<vmem>>, vector<8x128xf32>
      %c0_38 = arith.constant 0 : index
      %c0_39 = arith.constant 0 : index
      %63 = vector.load %arg5[%c0_38, %c0_39] : memref<128x128xf32, #tpu.memory_space<vmem>>, vector<128x128xf32>
      %cst_40 = arith.constant dense<0.000000e+00> : vector<8x128xf32>
      %64 = tpu.matmul %62, %63, %cst_40 {dimension_numbers = #tpu.dot_dimension_numbers<[1], [0], [0], [1], [0, 0, 1, 1], [], []>} : vector<8x128xf32>, vector<128x128xf32>, vector<8x128xf32> -> vector<8x128xf32>
      %c0_41 = arith.constant 0 : index
      %c0_42 = arith.constant 0 : index
      %65 = vector.load %arg6[%c0_41, %c0_42] : memref<1x128xf32, #tpu.memory_space<vmem>>, vector<1x128xf32>
      %66 = vector.broadcast %65 : vector<1x128xf32> to vector<8x128xf32>
      %67 = arith.addf %64, %66 : vector<8x128xf32>
      %c0_43 = arith.constant 0 : index
      %c0_44 = arith.constant 0 : index
      %68 = vector.load %arg12[%c0_43, %c0_44] : memref<8x128xf32, #tpu.memory_space<vmem>>, vector<8x128xf32>
      tpu.vector_store %arg12[%c0_43, %c0_44], %67 {strides = array<i32>} : memref<8x128xf32, #tpu.memory_space<vmem>>, vector<8x128xf32>,
      %cst_45 = arith.constant -1.000000e+30 : f32
      %69 = vector.broadcast %cst_45 : f32 to vector<8x1xf32>
      %c0_46 = arith.constant 0 : index
      %c0_47 = arith.constant 0 : index
      %70 = vector.load %arg13[%c0_46, %c0_47] : memref<8x1xf32, #tpu.memory_space<vmem>>, vector<8x1xf32>
      tpu.vector_store %arg13[%c0_46, %c0_47], %69 {strides = array<i32>} : memref<8x1xf32, #tpu.memory_space<vmem>>, vector<8x1xf32>,
      %cst_48 = arith.constant 0.000000e+00 : f32
      %71 = vector.broadcast %cst_48 : f32 to vector<8x1xf32>
      %c0_49 = arith.constant 0 : index
      %c0_50 = arith.constant 0 : index
      %72 = vector.load %arg14[%c0_49, %c0_50] : memref<8x1xf32, #tpu.memory_space<vmem>>, vector<8x1xf32>
      tpu.vector_store %arg14[%c0_49, %c0_50], %71 {strides = array<i32>} : memref<8x1xf32, #tpu.memory_space<vmem>>, vector<8x1xf32>,
      %cst_51 = arith.constant 0.000000e+00 : f32
      %73 = vector.broadcast %cst_51 : f32 to vector<8x128xf32>
      %c0_52 = arith.constant 0 : index
      %c0_53 = arith.constant 0 : index
      %74 = vector.load %arg15[%c0_52, %c0_53] : memref<8x128xf32, #tpu.memory_space<vmem>>, vector<8x128xf32>
      tpu.vector_store %arg15[%c0_52, %c0_53], %73 {strides = array<i32>} : memref<8x128xf32, #tpu.memory_space<vmem>>, vector<8x128xf32>,
    } else {
    }
    %c0 = arith.constant 0 : index
    %c0_1 = arith.constant 0 : index
    %c0_2 = arith.constant 0 : index
    %3 = vector.load %arg3[%c0, %c0_1, %c0_2] : memref<8x128x128xf32, #tpu.memory_space<vmem>>, vector<8x128x128xf32>
    %4 = vector.shape_cast %3 : vector<8x128x128xf32> to vector<1024x128xf32>
    %c0_3 = arith.constant 0 : index
    %c0_4 = arith.constant 0 : index
    %5 = vector.load %arg7[%c0_3, %c0_4] : memref<128x128xf32, #tpu.memory_space<vmem>>, vector<128x128xf32>
    %cst = arith.constant dense<0.000000e+00> : vector<1024x128xf32>
    %6 = tpu.matmul %4, %5, %cst {dimension_numbers = #tpu.dot_dimension_numbers<[1], [0], [0], [1], [0, 0, 1, 1], [], []>} : vector<1024x128xf32>, vector<128x128xf32>, vector<1024x128xf32> -> vector<1024x128xf32>
    %c0_5 = arith.constant 0 : index
    %c0_6 = arith.constant 0 : index
    %7 = vector.load %arg8[%c0_5, %c0_6] : memref<1x128xf32, #tpu.memory_space<vmem>>, vector<1x128xf32>
    %8 = vector.broadcast %7 : vector<1x128xf32> to vector<1024x128xf32>
    %9 = arith.addf %6, %8 : vector<1024x128xf32>
    %10 = vector.shape_cast %9 : vector<1024x128xf32> to vector<8x128x128xf32>
    %c0_7 = arith.constant 0 : index
    %c0_8 = arith.constant 0 : index
    %11 = vector.load %arg12[%c0_7, %c0_8] : memref<8x128xf32, #tpu.memory_space<vmem>>, vector<8x128xf32>
    %12 = vector.shape_cast %11 : vector<8x128xf32> to vector<8x1x128xf32>
    %13 = vector.broadcast %12 : vector<8x1x128xf32> to vector<8x128x128xf32>
    %14 = arith.addf %10, %13 : vector<8x128x128xf32>
    %15 = math.tanh %14 : vector<8x128x128xf32>
    %c0_9 = arith.constant 0 : index
    %c0_10 = arith.constant 0 : index
    %16 = vector.load %arg9[%c0_9, %c0_10] : memref<1x128xf32, #tpu.memory_space<vmem>>, vector<1x128xf32>
    %17 = vector.shape_cast %16 : vector<1x128xf32> to vector<1x1x128xf32>
    %18 = vector.broadcast %17 : vector<1x1x128xf32> to vector<8x128x128xf32>
    %19 = arith.mulf %15, %18 : vector<8x128x128xf32>
    %cst_11 = arith.constant dense<0.000000e+00> : vector<8x128xf32>
    %20 = vector.multi_reduction <add>, %19, %cst_11 [2] : vector<8x128x128xf32> to vector<8x128xf32>
    %c0_12 = arith.constant 0 : index
    %c0_13 = arith.constant 0 : index
    %21 = vector.load %arg4[%c0_12, %c0_13] : memref<8x128xi32, #tpu.memory_space<vmem>>, vector<8x128xi32>
    %c0_i32_14 = arith.constant 0 : i32
    %22 = vector.broadcast %c0_i32_14 : i32 to vector<8x128xi32>
    %23 = arith.cmpi ne, %21, %22 : vector<8x128xi32>
    %cst_15 = arith.constant -1.000000e+30 : f32
    %24 = vector.broadcast %cst_15 : f32 to vector<8x128xf32>
    %25 = arith.select %23, %24, %20 : vector<8x128xi1>, vector<8x128xf32>
    %c0_16 = arith.constant 0 : index
    %c0_17 = arith.constant 0 : index
    %26 = vector.load %arg13[%c0_16, %c0_17] : memref<8x1xf32, #tpu.memory_space<vmem>>, vector<8x1xf32>
    %cst_18 = arith.constant dense<0xFF800000> : vector<8xf32>
    %27 = vector.multi_reduction <maximumf>, %25, %cst_18 [1] : vector<8x128xf32> to vector<8xf32>
    %28 = vector.shape_cast %27 : vector<8xf32> to vector<8x1xf32>
    %29 = arith.maximumf %26, %28 : vector<8x1xf32>
    %30 = arith.subf %26, %29 : vector<8x1xf32>
    %31 = math.exp %30 : vector<8x1xf32>
    %32 = vector.broadcast %29 : vector<8x1xf32> to vector<8x128xf32>
    %33 = arith.subf %25, %32 : vector<8x128xf32>
    %34 = math.exp %33 : vector<8x128xf32>
    %c0_19 = arith.constant 0 : index
    %c0_20 = arith.constant 0 : index
    %35 = vector.load %arg14[%c0_19, %c0_20] : memref<8x1xf32, #tpu.memory_space<vmem>>, vector<8x1xf32>
    %36 = arith.mulf %31, %35 : vector<8x1xf32>
    %cst_21 = arith.constant dense<0.000000e+00> : vector<8xf32>
    %37 = vector.multi_reduction <add>, %34, %cst_21 [1] : vector<8x128xf32> to vector<8xf32>
    %38 = vector.shape_cast %37 : vector<8xf32> to vector<8x1xf32>
    %39 = arith.addf %36, %38 : vector<8x1xf32>
    %c0_22 = arith.constant 0 : index
    %c0_23 = arith.constant 0 : index
    %40 = vector.load %arg14[%c0_22, %c0_23] : memref<8x1xf32, #tpu.memory_space<vmem>>, vector<8x1xf32>
    tpu.vector_store %arg14[%c0_22, %c0_23], %39 {strides = array<i32>} : memref<8x1xf32, #tpu.memory_space<vmem>>, vector<8x1xf32>,
    %c0_24 = arith.constant 0 : index
    %c0_25 = arith.constant 0 : index
    %41 = vector.load %arg15[%c0_24, %c0_25] : memref<8x128xf32, #tpu.memory_space<vmem>>, vector<8x128xf32>
    %42 = vector.broadcast %31 : vector<8x1xf32> to vector<8x128xf32>
    %43 = arith.mulf %42, %41 : vector<8x128xf32>
    %44 = vector.shape_cast %34 : vector<8x128xf32> to vector<8x128x1xf32>
    %45 = vector.broadcast %44 : vector<8x128x1xf32> to vector<8x128x128xf32>
    %46 = arith.mulf %45, %10 : vector<8x128x128xf32>
    %cst_26 = arith.constant dense<0.000000e+00> : vector<8x128xf32>
    %47 = vector.multi_reduction <add>, %46, %cst_26 [1] : vector<8x128x128xf32> to vector<8x128xf32>
    %48 = arith.addf %43, %47 : vector<8x128xf32>
    %c0_27 = arith.constant 0 : index
    %c0_28 = arith.constant 0 : index
    %49 = vector.load %arg15[%c0_27, %c0_28] : memref<8x128xf32, #tpu.memory_space<vmem>>, vector<8x128xf32>
    tpu.vector_store %arg15[%c0_27, %c0_28], %48 {strides = array<i32>} : memref<8x128xf32, #tpu.memory_space<vmem>>, vector<8x128xf32>,
    %c0_29 = arith.constant 0 : index
    %c0_30 = arith.constant 0 : index
    %50 = vector.load %arg13[%c0_29, %c0_30] : memref<8x1xf32, #tpu.memory_space<vmem>>, vector<8x1xf32>
    tpu.vector_store %arg13[%c0_29, %c0_30], %29 {strides = array<i32>} : memref<8x1xf32, #tpu.memory_space<vmem>>, vector<8x1xf32>,
    %51 = arith.index_cast %arg1 : i32 to index
    %c0_31 = arith.constant 0 : index
    %c0_32 = arith.constant 0 : index
    %52 = vector.load %arg16[%51, %c0_31, %c0_32] : memref<1x8x1xf32, #tpu.memory_space<vmem>>, vector<1x8x1xf32>
    %53 = vector.shape_cast %52 : vector<1x8x1xf32> to vector<8x1xf32>
    %54 = vector.shape_cast %29 : vector<8x1xf32> to vector<1x8x1xf32>
    tpu.vector_store %arg16[%51, %c0_31, %c0_32], %54 {strides = array<i32>} : memref<1x8x1xf32, #tpu.memory_space<vmem>>, vector<1x8x1xf32>,
    %c128_i32 = arith.constant 128 : i32
    %55 = arith.muli %arg1, %c128_i32 : i32
    %56 = tpu.assume_multiple %55, 128 : i32
    %c0_33 = arith.constant 0 : index
    %57 = arith.index_cast %56 : i32 to index
    %58 = vector.load %arg11[%c0_33, %57] : memref<8x128xf32, #tpu.memory_space<vmem>>, vector<8x128xf32>
    tpu.vector_store %arg11[%c0_33, %57], %34 {strides = array<i32>} : memref<8x128xf32, #tpu.memory_space<vmem>>, vector<8x128xf32>,
    %c0_i32_34 = arith.constant 0 : i32
    %59 = arith.cmpi eq, %arg1, %c0_i32_34 : i32
    %60 = arith.extui %59 : i1 to i32
    %c0_i32_35 = arith.constant 0 : i32
    %61 = arith.cmpi ne, %60, %c0_i32_35 : i32
    scf.if %61 {
      %c0_36 = arith.constant 0 : index
      %c0_37 = arith.constant 0 : index
      %62 = vector.load %arg14[%c0_36, %c0_37] : memref<8x1xf32, #tpu.memory_space<vmem>>, vector<8x1xf32>
      %63 = tpu.reciprocal %62 {approx = true} : vector<8x1xf32> -> vector<8x1xf32>
      %c0_38 = arith.constant 0 : index
      %c0_39 = arith.constant 0 : index
      %64 = vector.load %arg13[%c0_38, %c0_39] : memref<8x1xf32, #tpu.memory_space<vmem>>, vector<8x1xf32>
      %c0_40 = arith.constant 0 : index
      %c0_41 = arith.constant 0 : index
      %65 = vector.load %arg15[%c0_40, %c0_41] : memref<8x128xf32, #tpu.memory_space<vmem>>, vector<8x128xf32>
      %66 = vector.broadcast %63 : vector<8x1xf32> to vector<8x128xf32>
      %67 = arith.mulf %65, %66 : vector<8x128xf32>
      %c0_42 = arith.constant 0 : index
      %c0_43 = arith.constant 0 : index
      %68 = vector.load %arg10[%c0_42, %c0_43] : memref<8x128xf32, #tpu.memory_space<vmem>>, vector<8x128xf32>
      tpu.vector_store %arg10[%c0_42, %c0_43], %67 {strides = array<i32>} : memref<8x128xf32, #tpu.memory_space<vmem>>, vector<8x128xf32>,
      %c0_44 = arith.constant 0 : index
      %c0_45 = arith.constant 0 : index
      %c0_46 = arith.constant 0 : index
      %69 = vector.load %arg16[%c0_44, %c0_45, %c0_46] : memref<1x8x1xf32, #tpu.memory_space<vmem>>, vector<1x8x1xf32>
      %70 = vector.shape_cast %69 : vector<1x8x1xf32> to vector<8x1xf32>
      %71 = arith.subf %70, %64 : vector<8x1xf32>
      %72 = math.exp %71 : vector<8x1xf32>
      %73 = arith.mulf %72, %63 : vector<8x1xf32>
      %c0_47 = arith.constant 0 : index
      %c0_48 = arith.constant 0 : index
      %74 = vector.load %arg11[%c0_47, %c0_48] : memref<8x128xf32, #tpu.memory_space<vmem>>, vector<8x128xf32>
      %75 = vector.broadcast %73 : vector<8x1xf32> to vector<8x128xf32>
      %76 = arith.mulf %74, %75 : vector<8x128xf32>
      %c0_49 = arith.constant 0 : index
      %c0_50 = arith.constant 0 : index
      %77 = vector.load %arg11[%c0_49, %c0_50] : memref<8x128xf32, #tpu.memory_space<vmem>>, vector<8x128xf32>
      tpu.vector_store %arg11[%c0_49, %c0_50], %76 {strides = array<i32>} : memref<8x128xf32, #tpu.memory_space<vmem>>, vector<8x128xf32>,
    } else {
    }
    return
  }
  func.func @transform_0(%arg0: i32, %arg1: i32) -> (i32, i32) {
    %c0_i32 = arith.constant 0 : i32
    %c0_i32_0 = arith.constant 0 : i32
    return %arg0, %c0_i32 : i32, i32
  }
  func.func @transform_1(%arg0: i32, %arg1: i32) -> (i32, i32, i32) {
    %c0_i32 = arith.constant 0 : i32
    %c0_i32_0 = arith.constant 0 : i32
    return %arg0, %arg1, %c0_i32 : i32, i32, i32
  }
  func.func @transform_2(%arg0: i32, %arg1: i32) -> (i32, i32) {
    %c0_i32 = arith.constant 0 : i32
    return %arg0, %arg1 : i32, i32
  }
  func.func @transform_3(%arg0: i32, %arg1: i32) -> (i32, i32) {
    %c0_i32 = arith.constant 0 : i32
    %c0_i32_0 = arith.constant 0 : i32
    %c0_i32_1 = arith.constant 0 : i32
    return %c0_i32, %c0_i32_0 : i32, i32
  }
  func.func @transform_4(%arg0: i32, %arg1: i32) -> (i32, i32) {
    %c0_i32 = arith.constant 0 : i32
    %c0_i32_0 = arith.constant 0 : i32
    %c0_i32_1 = arith.constant 0 : i32
    return %c0_i32, %c0_i32_0 : i32, i32
  }
  func.func @transform_5(%arg0: i32, %arg1: i32) -> (i32, i32) {
    %c0_i32 = arith.constant 0 : i32
    %c0_i32_0 = arith.constant 0 : i32
    %c0_i32_1 = arith.constant 0 : i32
    return %c0_i32, %c0_i32_0 : i32, i32
  }
  func.func @transform_6(%arg0: i32, %arg1: i32) -> (i32, i32) {
    %c0_i32 = arith.constant 0 : i32
    %c0_i32_0 = arith.constant 0 : i32
    %c0_i32_1 = arith.constant 0 : i32
    return %c0_i32, %c0_i32_0 : i32, i32
  }
  func.func @transform_7(%arg0: i32, %arg1: i32) -> (i32, i32) {
    %c0_i32 = arith.constant 0 : i32
    %c0_i32_0 = arith.constant 0 : i32
    %c0_i32_1 = arith.constant 0 : i32
    return %c0_i32, %c0_i32_0 : i32, i32
  }
  func.func @transform_8(%arg0: i32, %arg1: i32) -> (i32, i32) {
    %c0_i32 = arith.constant 0 : i32
    %c0_i32_0 = arith.constant 0 : i32
    return %arg0, %c0_i32 : i32, i32
  }
  func.func @transform_9(%arg0: i32, %arg1: i32) -> (i32, i32) {
    %c0_i32 = arith.constant 0 : i32
    %c0_i32_0 = arith.constant 0 : i32
    return %arg0, %c0_i32 : i32, i32
  }
}

</mosaic_0001>

<llo_original>
// kernel: tpu_custom_call.1
$region0: #{tpu_custom_call.1}
  #allocation0 [shape = 'u32[]', space=smem, size = 0x4, offset = 0x4, fixed_abs, tag = 'smem constant byte address 0x4 - core index']
  #allocation1 [shape = 'u32[144,128]{1,0:T(1,128)}', space=vmem, size = 0x12000, scoped, tag = 'internal scratch']
  #allocation2 [shape = 'f32[8,128]{1,0:T(8,128)}', space=vmem, size = 0x1000, scoped, tag = 'scratch operand']
  #allocation3 [shape = 'f32[8,1]{1,0:T(8,128)}', space=vmem, size = 0x1000, scoped, tag = 'scratch operand']
  #allocation4 [shape = 'f32[8,1]{1,0:T(8,128)}', space=vmem, size = 0x1000, scoped, tag = 'scratch operand']
  #allocation5 [shape = 'f32[8,128]{1,0:T(8,128)}', space=vmem, size = 0x1000, scoped, tag = 'scratch operand']
  #allocation6 [shape = 'f32[1,8,1]{2,1,0:T(8,128)}', space=vmem, size = 0x1000, scoped, tag = 'scratch operand']
  %s0 = inlined_call_operand.hbm [shape: f32[8,128], index: 0, kind: input, shape index: {}]
  %s1 = inlined_call_operand.hbm [shape: f32[8,128,128], index: 1, kind: input, shape index: {}]
  %s2 = inlined_call_operand.hbm [shape: s32[8,128], index: 2, kind: input, shape index: {}]
  %s3 = inlined_call_operand.hbm [shape: f32[128,128], index: 3, kind: input, shape index: {}]
  %s4 = inlined_call_operand.vmem [shape: f32[1,128], index: 4, kind: input, shape index: {}]
  %s5 = inlined_call_operand.hbm [shape: f32[128,128], index: 5, kind: input, shape index: {}]
  %s6 = inlined_call_operand.vmem [shape: f32[1,128], index: 6, kind: input, shape index: {}]
  %s7 = inlined_call_operand.vmem [shape: f32[1,128], index: 7, kind: input, shape index: {}]
  %s8 = inlined_call_operand.hbm [shape: f32[8,128], index: 8, kind: output, shape index: {0}]
  %s9 = inlined_call_operand.hbm [shape: f32[8,128], index: 9, kind: output, shape index: {1}]
  %10 = xla_tuple %s8, %s9
  %s11 = sld [smem:[#allocation0]]
  $region78: #{tpu_custom_call.1} parent=0
    _
  %s13 = ssub.s32 1, %s11
  %s14 = scalar_select 0, %s13, %s11
  $region1: #{tpu_custom_call.1} parent=0
    #allocation7 [shape = 'u8[4096]{0}', space=vmem, size = 0x1000, scoped, tag = 'input window, operand 0, single buffered']
    #allocation8 [shape = 's32[1]{0}', space=sflag, size = 0x4, scoped, tag = 'scoped memory for tpu_custom_call.1']
    #allocation9 [shape = 's32[1]{0}', space=sflag, size = 0x4, scoped, tag = 'scoped memory for tpu_custom_call.1']
    #allocation10 [shape = 'u8[524288]{0}', space=vmem, size = 0x80000, scoped, tag = 'input window, operand 1, single buffered']
    #allocation11 [shape = 's32[1]{0}', space=sflag, size = 0x4, scoped, tag = 'scoped memory for tpu_custom_call.1']
    #allocation12 [shape = 'u8[4096]{0}', space=vmem, size = 0x1000, scoped, tag = 'input window, operand 2, single buffered']
    #allocation13 [shape = 'u8[65536]{0}', space=vmem, size = 0x10000, scoped, tag = 'input window, operand 3, single buffered']
    #allocation14 [shape = 's32[1]{0}', space=sflag, size = 0x4, scoped, tag = 'scoped memory for tpu_custom_call.1']
    #allocation15 [shape = 'u8[65536]{0}', space=vmem, size = 0x10000, scoped, tag = 'input window, operand 5, single buffered']
    #allocation16 [shape = 'u8[4096]{0}', space=vmem, size = 0x1000, scoped, tag = 'output window, operand 0, single buffered']
    #allocation17 [shape = 'u8[4096]{0}', space=vmem, size = 0x1000, scoped, tag = 'output window, operand 1, single buffered']
    #allocation18 [shape = 's32[1]{0}', space=sflag, size = 0x4, scoped, tag = 'scoped memory for tpu_custom_call.1']
    %15 = vsyncpa [#allocation8], 0
    %16 = vsyncpa [#allocation11], 0
    %17 = vsyncpa [#allocation14], 0
    %18 = vsyncpa [#allocation9], 0
    %19 = vsyncpa [#allocation18], 0
    // Predicated region
    $region2: #{tpu_custom_call.1} parent=1 // pred_check
      _
    $region3: #{tpu_custom_call.1} parent=1 // pred_check_branch
      %21 = sbr.rel (0) target = $region5
    $region4: #{tpu_custom_call.1} parent=1 // pred_region
      %s23 = ssub.s32 128, 128
      %24 = vsyncadd [#allocation8], %s23
      %s26 = sshll.u32 [#allocation7], 4
      %s27 = int_to_ptr.vmem [resolvable:$true] %s26
      %29 = dma.hbm_to_vmem [thread:$0]  %s0, 128, %s27, [#allocation8]
    $region5: #{tpu_custom_call.1} parent=1 // pred_fallthru
      _
    // Predicated region
    $region6: #{tpu_custom_call.1} parent=1 // pred_check
      _
    $region7: #{tpu_custom_call.1} parent=1 // pred_check_branch
      %31 = sbr.rel (0) target = $region9
    $region8: #{tpu_custom_call.1} parent=1 // pred_region
      %s33 = ssub.s32 16384, 16384
      %34 = vsyncadd [#allocation11], %s33
      %s35 = sshll.u32 [#allocation10], 4
      %s36 = int_to_ptr.vmem [resolvable:$true] %s35
      %41 = dma.hbm_to_vmem [thread:$0]  %s1, 16384, %s36, [#allocation11], 128, 128, 8
    $region9: #{tpu_custom_call.1} parent=1 // pred_fallthru
      _
    // Predicated region
    $region10: #{tpu_custom_call.1} parent=1 // pred_check
      _
    $region11: #{tpu_custom_call.1} parent=1 // pred_check_branch
      %43 = sbr.rel (0) target = $region13
    $region12: #{tpu_custom_call.1} parent=1 // pred_region
      %s45 = ssub.s32 128, 128
      %46 = vsyncadd [#allocation11], %s45
      %s48 = sshll.u32 [#allocation12], 4
      %s49 = int_to_ptr.vmem [resolvable:$true] %s48
      %51 = dma.hbm_to_vmem [thread:$0]  %s2, 128, %s49, [#allocation11]
    $region13: #{tpu_custom_call.1} parent=1 // pred_fallthru
      _
    // Predicated region
    $region14: #{tpu_custom_call.1} parent=1 // pred_check
      _
    $region15: #{tpu_custom_call.1} parent=1 // pred_check_branch
      %53 = sbr.rel (0) target = $region17
    $region16: #{tpu_custom_call.1} parent=1 // pred_region
      %s55 = ssub.s32 2048, 2048
      %56 = vsyncadd [#allocation14], %s55
      %s57 = sshll.u32 [#allocation13], 4
      %s58 = int_to_ptr.vmem [resolvable:$true] %s57
      %63 = dma.hbm_to_vmem [thread:$0]  %s3, 2048, %s58, [#allocation14], 128, 128, 8
    $region17: #{tpu_custom_call.1} parent=1 // pred_fallthru
      _
    // Predicated region
    $region18: #{tpu_custom_call.1} parent=1 // pred_check
      _
    $region19: #{tpu_custom_call.1} parent=1 // pred_check_branch
      %65 = sbr.rel (0) target = $region21
    $region20: #{tpu_custom_call.1} parent=1 // pred_region
      _
    $region21: #{tpu_custom_call.1} parent=1 // pred_fallthru
      _
    // Predicated region
    $region22: #{tpu_custom_call.1} parent=1 // pred_check
      _
    $region23: #{tpu_custom_call.1} parent=1 // pred_check_branch
      %67 = sbr.rel (0) target = $region25
    $region24: #{tpu_custom_call.1} parent=1 // pred_region
      %s69 = ssub.s32 2048, 2048
      %70 = vsyncadd [#allocation14], %s69
      %s71 = sshll.u32 [#allocation15], 4
      %s72 = int_to_ptr.vmem [resolvable:$true] %s71
      %77 = dma.hbm_to_vmem [thread:$0]  %s5, 2048, %s72, [#allocation14], 128, 128, 8
    $region25: #{tpu_custom_call.1} parent=1 // pred_fallthru
      _
    // Predicated region
    $region26: #{tpu_custom_call.1} parent=1 // pred_check
      _
    $region27: #{tpu_custom_call.1} parent=1 // pred_check_branch
      %79 = sbr.rel (0) target = $region29
    $region28: #{tpu_custom_call.1} parent=1 // pred_region
      _
    $region29: #{tpu_custom_call.1} parent=1 // pred_fallthru
      _
    // Predicated region
    $region30: #{tpu_custom_call.1} parent=1 // pred_check
      _
    $region31: #{tpu_custom_call.1} parent=1 // pred_check_branch
      %81 = sbr.rel (0) target = $region33
    $region32: #{tpu_custom_call.1} parent=1 // pred_region
      _
    $region33: #{tpu_custom_call.1} parent=1 // pred_fallthru
      _
    // Predicated region
    $region34: #{tpu_custom_call.1} parent=1 // pred_check
      _
    $region35: #{tpu_custom_call.1} parent=1 // pred_check_branch
      %83 = sbr.rel (0) target = $region37
    $region36: #{tpu_custom_call.1} parent=1 // pred_region
      %84 = dma.done [#allocation8], 128
    $region37: #{tpu_custom_call.1} parent=1 // pred_fallthru
      _
    // Predicated region
    $region38: #{tpu_custom_call.1} parent=1 // pred_check
      _
    $region39: #{tpu_custom_call.1} parent=1 // pred_check_branch
      %86 = sbr.rel (0) target = $region41
    $region40: #{tpu_custom_call.1} parent=1 // pred_region
      %87 = dma.done [#allocation11], 16384
    $region41: #{tpu_custom_call.1} parent=1 // pred_fallthru
      _
    // Predicated region
    $region42: #{tpu_custom_call.1} parent=1 // pred_check
      _
    $region43: #{tpu_custom_call.1} parent=1 // pred_check_branch
      %89 = sbr.rel (0) target = $region45
    $region44: #{tpu_custom_call.1} parent=1 // pred_region
      %90 = dma.done [#allocation11], 128
    $region45: #{tpu_custom_call.1} parent=1 // pred_fallthru
      _
    // Predicated region
    $region46: #{tpu_custom_call.1} parent=1 // pred_check
      _
    $region47: #{tpu_custom_call.1} parent=1 // pred_check_branch
      %92 = sbr.rel (0) target = $region49
    $region48: #{tpu_custom_call.1} parent=1 // pred_region
      %93 = dma.done [#allocation14], 2048
    $region49: #{tpu_custom_call.1} parent=1 // pred_fallthru
      _
    // Predicated region
    $region50: #{tpu_custom_call.1} parent=1 // pred_check
      _
    $region51: #{tpu_custom_call.1} parent=1 // pred_check_branch
      %95 = sbr.rel (0) target = $region53
    $region52: #{tpu_custom_call.1} parent=1 // pred_region
      %96 = dma.done [#allocation14], 2048
    $region53: #{tpu_custom_call.1} parent=1 // pred_fallthru
      _
    %p97 = scmp.eq.s32.totalorder 0, 0
    // Predicated region
    $region54: #{tpu_custom_call.1} parent=1 // pred_check
      %p98 = pneg %p97
    $region55: #{tpu_custom_call.1} parent=1 // pred_check_branch
      %100 = sbr.rel (%p98) target = $region57
    $region56: #{tpu_custom_call.1} parent=1 // pred_region
      %v101 = vld [vmem:[#allocation7] sm:$0xff]
      %v102 = vld [vmem:[#allocation13] sm:$0xff]
      %v103 = vld [vmem:[#allocation13 + $0x8] sm:$0xff]
      %v104 = vld [vmem:[#allocation13 + $0x10] sm:$0xff]
      %v105 = vld [vmem:[#allocation13 + $0x18] sm:$0xff]
      %v106 = vld [vmem:[#allocation13 + $0x20] sm:$0xff]
      %v107 = vld [vmem:[#allocation13 + $0x28] sm:$0xff]
      %v108 = vld [vmem:[#allocation13 + $0x30] sm:$0xff]
      %v109 = vld [vmem:[#allocation13 + $0x38] sm:$0xff]
      %v110 = vld [vmem:[#allocation13 + $0x40] sm:$0xff]
      %v111 = vld [vmem:[#allocation13 + $0x48] sm:$0xff]
      %v112 = vld [vmem:[#allocation13 + $0x50] sm:$0xff]
      %v113 = vld [vmem:[#allocation13 + $0x58] sm:$0xff]
      %v114 = vld [vmem:[#allocation13 + $0x60] sm:$0xff]
      %v115 = vld [vmem:[#allocation13 + $0x68] sm:$0xff]
      %v116 = vld [vmem:[#allocation13 + $0x70] sm:$0xff]
      %v117 = vld [vmem:[#allocation13 + $0x78] sm:$0xff]
      %v118 = vld [vmem:[%s4] sm:$0x1]
      %v120 = vlaneseq
      %v121 = vshrl.u32 %v120, 7
      %v122 = vsub.s32 0, %v121
      %v123 = vrot.slane %v118, %v122
      %125 = vmatprep.subr.mxu0 0.0
      %126 = vmatpush1.msra.mxu0 %v102
      %127 = vmatprep.subr.mxu0 0.0
      %128 = vmatpush1.msra.mxu0 %v103
      %129 = vmatprep.subr.mxu0 0.0
      %130 = vmatpush1.msra.mxu0 %v104
      %131 = vmatprep.subr.mxu0 0.0
      %132 = vmatpush1.msra.mxu0 %v105
      %133 = vmatprep.subr.mxu0 0.0
      %134 = vmatpush1.msra.mxu0 %v106
      %135 = vmatprep.subr.mxu0 0.0
      %136 = vmatpush1.msra.mxu0 %v107
      %137 = vmatprep.subr.mxu0 0.0
      %138 = vmatpush1.msra.mxu0 %v108
      %139 = vmatprep.subr.mxu0 0.0
      %140 = vmatpush1.msra.mxu0 %v109
      %141 = vmatprep.subr.mxu0 0.0
      %142 = vmatpush1.msra.mxu0 %v110
      %143 = vmatprep.subr.mxu0 0.0
      %144 = vmatpush1.msra.mxu0 %v111
      %145 = vmatprep.subr.mxu0 0.0
      %146 = vmatpush1.msra.mxu0 %v112
      %147 = vmatprep.subr.mxu0 0.0
      %148 = vmatpush1.msra.mxu0 %v113
      %149 = vmatprep.subr.mxu0 0.0
      %150 = vmatpush1.msra.mxu0 %v114
      %151 = vmatprep.subr.mxu0 0.0
      %152 = vmatpush1.msra.mxu0 %v115
      %153 = vmatprep.subr.mxu0 0.0
      %154 = vmatpush1.msra.mxu0 %v116
      %155 = vmatprep.subr.mxu0 0.0
      %156 = vmatpush1.msra.mxu0 %v117
      %157 = vmatprep.subr.mxu0 0.0
      %158 = vmatpush1.msra.mxu0 0.0
      %159 = vmatprep.subr.mxu0 0.0
      %160 = vmatpush1.msra.mxu0 0.0
      %161 = vmatprep.subr.mxu0 0.0
      %162 = vmatpush1.msra.mxu0 0.0
      %163 = vmatprep.subr.mxu0 0.0
      %164 = vmatpush1.msra.mxu0 0.0
      %165 = vmatprep.subr.mxu0 0.0
      %166 = vmatpush1.msra.mxu0 0.0
      %167 = vmatprep.subr.mxu0 0.0
      %168 = vmatpush1.msra.mxu0 0.0
      %169 = vmatprep.subr.mxu0 0.0
      %170 = vmatpush1.msra.mxu0 0.0
      %171 = vmatprep.subr.mxu0 0.0
      %172 = vmatpush1.msra.mxu0 0.0
      %173 = vmatprep.subr.mxu0 0.0
      %174 = vmatpush1.msra.mxu0 0.0
      %175 = vmatprep.subr.mxu0 0.0
      %176 = vmatpush1.msra.mxu0 0.0
      %177 = vmatprep.subr.mxu0 0.0
      %178 = vmatpush1.msra.mxu0 0.0
      %179 = vmatprep.subr.mxu0 0.0
      %180 = vmatpush1.msra.mxu0 0.0
      %181 = vmatprep.subr.mxu0 0.0
      %182 = vmatpush1.msra.mxu0 0.0
      %183 = vmatprep.subr.mxu0 0.0
      %184 = vmatpush1.msra.mxu0 0.0
      %185 = vmatprep.subr.mxu0 0.0
      %186 = vmatpush1.msra.mxu0 0.0
      %187 = vmatprep.subr.mxu0 0.0
      %188 = vmatpush1.msra.mxu0 0.0
      %189 = vmatprep.mubr.f32.mxu0 0.0
      %190 = vmatmul.mubr.f32.gmra.mrb[0].mxu0 %v101
      %v191 = vpop.f32.mrb[0].mxu0
      %v192 = vadd.f32 %v123, %v191
      %v193 = vpop.f32.mrb[0].mxu0
      %194 = vdwg.mxu0
      %195 = vst [vmem:[#allocation2] sm:$0xff] %v192
      %vm196 = vcmask 7168
      %197 = vst.msk [vmem:[#allocation3] sm:$0xff] %vm196, -1e+30
      %198 = vst.msk [vmem:[#allocation4] sm:$0xff] %vm196, 0.0
      %199 = vst [vmem:[#allocation5] sm:$0xff] 0.0
    $region57: #{tpu_custom_call.1} parent=1 // pred_fallthru
      _
    %v200 = vld [vmem:[#allocation10] sm:$0xff]
    %v201 = vld [vmem:[#allocation10 + $0x8] sm:$0xff]
    %v202 = vld [vmem:[#allocation10 + $0x10] sm:$0xff]
    %v203 = vld [vmem:[#allocation10 + $0x18] sm:$0xff]
    %v204 = vld [vmem:[#allocation10 + $0x20] sm:$0xff]
    %v205 = vld [vmem:[#allocation10 + $0x28] sm:$0xff]
    %v206 = vld [vmem:[#allocation10 + $0x30] sm:$0xff]
    %v207 = vld [vmem:[#allocation10 + $0x38] sm:$0xff]
    %v208 = vld [vmem:[#allocation10 + $0x40] sm:$0xff]
    %v209 = vld [vmem:[#allocation10 + $0x48] sm:$0xff]
    %v210 = vld [vmem:[#allocation10 + $0x50] sm:$0xff]
    %v211 = vld [vmem:[#allocation10 + $0x58] sm:$0xff]
    %v212 = vld [vmem:[#allocation10 + $0x60] sm:$0xff]
    %v213 = vld [vmem:[#allocation10 + $0x68] sm:$0xff]
    %v214 = vld [vmem:[#allocation10 + $0x70] sm:$0xff]
    %v215 = vld [vmem:[#allocation10 + $0x78] sm:$0xff]
    %v216 = vld [vmem:[#allocation10 + $0x80] sm:$0xff]
    %v217 = vld [vmem:[#allocation10 + $0x88] sm:$0xff]
    %v218 = vld [vmem:[#allocation10 + $0x90] sm:$0xff]
    %v219 = vld [vmem:[#allocation10 + $0x98] sm:$0xff]
    %v220 = vld [vmem:[#allocation10 + $0xa0] sm:$0xff]
    %v221 = vld [vmem:[#allocation10 + $0xa8] sm:$0xff]
    %v222 = vld [vmem:[#allocation10 + $0xb0] sm:$0xff]
    %v223 = vld [vmem:[#allocation10 + $0xb8] sm:$0xff]
    %v224 = vld [vmem:[#allocation10 + $0xc0] sm:$0xff]
    %v225 = vld [vmem:[#allocation10 + $0xc8] sm:$0xff]
    %v226 = vld [vmem:[#allocation10 + $0xd0] sm:$0xff]
    %v227 = vld [vmem:[#allocation10 + $0xd8] sm:$0xff]
    %v228 = vld [vmem:[#allocation10 + $0xe0] sm:$0xff]
    %v229 = vld [vmem:[#allocation10 + $0xe8] sm:$0xff]
    %v230 = vld [vmem:[#allocation10 + $0xf0] sm:$0xff]
    %v231 = vld [vmem:[#allocation10 + $0xf8] sm:$0xff]
    %v232 = vld [vmem:[#allocation10 + $0x100] sm:$0xff]
    %v233 = vld [vmem:[#allocation10 + $0x108] sm:$0xff]
    %v234 = vld [vmem:[#allocation10 + $0x110] sm:$0xff]
    %v235 = vld [vmem:[#allocation10 + $0x118] sm:$0xff]
    %v236 = vld [vmem:[#allocation10 + $0x120] sm:$0xff]
    %v237 = vld [vmem:[#allocation10 + $0x128] sm:$0xff]
    %v238 = vld [vmem:[#allocation10 + $0x130] sm:$0xff]
    %v239 = vld [vmem:[#allocation10 + $0x138] sm:$0xff]
    %v240 = vld [vmem:[#allocation10 + $0x140] sm:$0xff]
    %v241 = vld [vmem:[#allocation10 + $0x148] sm:$0xff]
    %v242 = vld [vmem:[#allocation10 + $0x150] sm:$0xff]
    %v243 = vld [vmem:[#allocation10 + $0x158] sm:$0xff]
    %v244 = vld [vmem:[#allocation10 + $0x160] sm:$0xff]
    %v245 = vld [vmem:[#allocation10 + $0x168] sm:$0xff]
    %v246 = vld [vmem:[#allocation10 + $0x170] sm:$0xff]
    %v247 = vld [vmem:[#allocation10 + $0x178] sm:$0xff]
    %v248 = vld [vmem:[#allocation10 + $0x180] sm:$0xff]
    %v249 = vld [vmem:[#allocation10 + $0x188] sm:$0xff]
    %v250 = vld [vmem:[#allocation10 + $0x190] sm:$0xff]
    %v251 = vld [vmem:[#allocation10 + $0x198] sm:$0xff]
    %v252 = vld [vmem:[#allocation10 + $0x1a0] sm:$0xff]
    %v253 = vld [vmem:[#allocation10 + $0x1a8] sm:$0xff]
    %v254 = vld [vmem:[#allocation10 + $0x1b0] sm:$0xff]
    %v255 = vld [vmem:[#allocation10 + $0x1b8] sm:$0xff]
    %v256 = vld [vmem:[#allocation10 + $0x1c0] sm:$0xff]
    %v257 = vld [vmem:[#allocation10 + $0x1c8] sm:$0xff]
    %v258 = vld [vmem:[#allocation10 + $0x1d0] sm:$0xff]
    %v259 = vld [vmem:[#allocation10 + $0x1d8] sm:$0xff]
    %v260 = vld [vmem:[#allocation10 + $0x1e0] sm:$0xff]
    %v261 = vld [vmem:[#allocation10 + $0x1e8] sm:$0xff]
    %v262 = vld [vmem:[#allocation10 + $0x1f0] sm:$0xff]
    %v263 = vld [vmem:[#allocation10 + $0x1f8] sm:$0xff]
    %v264 = vld [vmem:[#allocation10 + $0x200] sm:$0xff]
    %v265 = vld [vmem:[#allocation10 + $0x208] sm:$0xff]
    %v266 = vld [vmem:[#allocation10 + $0x210] sm:$0xff]
    %v267 = vld [vmem:[#allocation10 + $0x218] sm:$0xff]
    %v268 = vld [vmem:[#allocation10 + $0x220] sm:$0xff]
    %v269 = vld [vmem:[#allocation10 + $0x228] sm:$0xff]
    %v270 = vld [vmem:[#allocation10 + $0x230] sm:$0xff]
    %v271 = vld [vmem:[#allocation10 + $0x238] sm:$0xff]
    %v272 = vld [vmem:[#allocation10 + $0x240] sm:$0xff]
    %v273 = vld [vmem:[#allocation10 + $0x248] sm:$0xff]
    %v274 = vld [vmem:[#allocation10 + $0x250] sm:$0xff]
    %v275 = vld [vmem:[#allocation10 + $0x258] sm:$0xff]
    %v276 = vld [vmem:[#allocation10 + $0x260] sm:$0xff]
    %v277 = vld [vmem:[#allocation10 + $0x268] sm:$0xff]
    %v278 = vld [vmem:[#allocation10 + $0x270] sm:$0xff]
    %v279 = vld [vmem:[#allocation10 + $0x278] sm:$0xff]
    %v280 = vld [vmem:[#allocation10 + $0x280] sm:$0xff]
    %v281 = vld [vmem:[#allocation10 + $0x288] sm:$0xff]
    %v282 = vld [vmem:[#allocation10 + $0x290] sm:$0xff]
    %v283 = vld [vmem:[#allocation10 + $0x298] sm:$0xff]
    %v284 = vld [vmem:[#allocation10 + $0x2a0] sm:$0xff]
    %v285 = vld [vmem:[#allocation10 + $0x2a8] sm:$0xff]
    %v286 = vld [vmem:[#allocation10 + $0x2b0] sm:$0xff]
    %v287 = vld [vmem:[#allocation10 + $0x2b8] sm:$0xff]
    %v288 = vld [vmem:[#allocation10 + $0x2c0] sm:$0xff]
    %v289 = vld [vmem:[#allocation10 + $0x2c8] sm:$0xff]
    %v290 = vld [vmem:[#allocation10 + $0x2d0] sm:$0xff]
    %v291 = vld [vmem:[#allocation10 + $0x2d8] sm:$0xff]
    %v292 = vld [vmem:[#allocation10 + $0x2e0] sm:$0xff]
    %v293 = vld [vmem:[#allocation10 + $0x2e8] sm:$0xff]
    %v294 = vld [vmem:[#allocation10 + $0x2f0] sm:$0xff]
    %v295 = vld [vmem:[#allocation10 + $0x2f8] sm:$0xff]
    %v296 = vld [vmem:[#allocation10 + $0x300] sm:$0xff]
    %v297 = vld [vmem:[#allocation10 + $0x308] sm:$0xff]
    %v298 = vld [vmem:[#allocation10 + $0x310] sm:$0xff]
    %v299 = vld [vmem:[#allocation10 + $0x318] sm:$0xff]
    %v300 = vld [vmem:[#allocation10 + $0x320] sm:$0xff]
    %v301 = vld [vmem:[#allocation10 + $0x328] sm:$0xff]
    %v302 = vld [vmem:[#allocation10 + $0x330] sm:$0xff]
    %v303 = vld [vmem:[#allocation10 + $0x338] sm:$0xff]
    %v304 = vld [vmem:[#allocation10 + $0x340] sm:$0xff]
    %v305 = vld [vmem:[#allocation10 + $0x348] sm:$0xff]
    %v306 = vld [vmem:[#allocation10 + $0x350] sm:$0xff]
    %v307 = vld [vmem:[#allocation10 + $0x358] sm:$0xff]
    %v308 = vld [vmem:[#allocation10 + $0x360] sm:$0xff]
    %v309 = vld [vmem:[#allocation10 + $0x368] sm:$0xff]
    %v310 = vld [vmem:[#allocation10 + $0x370] sm:$0xff]
    %v311 = vld [vmem:[#allocation10 + $0x378] sm:$0xff]
    %v312 = vld [vmem:[#allocation10 + $0x380] sm:$0xff]
    %v313 = vld [vmem:[#allocation10 + $0x388] sm:$0xff]
    %v314 = vld [vmem:[#allocation10 + $0x390] sm:$0xff]
    %v315 = vld [vmem:[#allocation10 + $0x398] sm:$0xff]
    %v316 = vld [vmem:[#allocation10 + $0x3a0] sm:$0xff]
    %v317 = vld [vmem:[#allocation10 + $0x3a8] sm:$0xff]
    %v318 = vld [vmem:[#allocation10 + $0x3b0] sm:$0xff]
    %v319 = vld [vmem:[#allocation10 + $0x3b8] sm:$0xff]
    %v320 = vld [vmem:[#allocation10 + $0x3c0] sm:$0xff]
    %v321 = vld [vmem:[#allocation10 + $0x3c8] sm:$0xff]
    %v322 = vld [vmem:[#allocation10 + $0x3d0] sm:$0xff]
    %v323 = vld [vmem:[#allocation10 + $0x3d8] sm:$0xff]
    %v324 = vld [vmem:[#allocation10 + $0x3e0] sm:$0xff]
    %v325 = vld [vmem:[#allocation10 + $0x3e8] sm:$0xff]
    %v326 = vld [vmem:[#allocation10 + $0x3f0] sm:$0xff]
    %v327 = vld [vmem:[#allocation10 + $0x3f8] sm:$0xff]
    %v328 = vld [vmem:[#allocation15] sm:$0xff]
    %v329 = vld [vmem:[#allocation15 + $0x8] sm:$0xff]
    %v330 = vld [vmem:[#allocation15 + $0x10] sm:$0xff]
    %v331 = vld [vmem:[#allocation15 + $0x18] sm:$0xff]
    %v332 = vld [vmem:[#allocation15 + $0x20] sm:$0xff]
    %v333 = vld [vmem:[#allocation15 + $0x28] sm:$0xff]
    %v334 = vld [vmem:[#allocation15 + $0x30] sm:$0xff]
    %v335 = vld [vmem:[#allocation15 + $0x38] sm:$0xff]
    %v336 = vld [vmem:[#allocation15 + $0x40] sm:$0xff]
    %v337 = vld [vmem:[#allocation15 + $0x48] sm:$0xff]
    %v338 = vld [vmem:[#allocation15 + $0x50] sm:$0xff]
    %v339 = vld [vmem:[#allocation15 + $0x58] sm:$0xff]
    %v340 = vld [vmem:[#allocation15 + $0x60] sm:$0xff]
    %v341 = vld [vmem:[#allocation15 + $0x68] sm:$0xff]
    %v342 = vld [vmem:[#allocation15 + $0x70] sm:$0xff]
    %v343 = vld [vmem:[#allocation15 + $0x78] sm:$0xff]
    %v344 = vld [vmem:[%s6] sm:$0x1]
    %v346 = vlaneseq
    %v347 = vshrl.u32 %v346, 7
    %v348 = vsub.s32 0, %v347
    %v349 = vrot.slane %v344, %v348
    %351 = vmatprep.subr.mxu0 0.0
    %352 = vmatpush1.msra.mxu0 %v328
    %353 = vmatprep.subr.mxu0 0.0
    %354 = vmatpush1.msra.mxu0 %v329
    %355 = vmatprep.subr.mxu0 0.0
    %356 = vmatpush1.msra.mxu0 %v330
    %357 = vmatprep.subr.mxu0 0.0
    %358 = vmatpush1.msra.mxu0 %v331
    %359 = vmatprep.subr.mxu0 0.0
    %360 = vmatpush1.msra.mxu0 %v332
    %361 = vmatprep.subr.mxu0 0.0
    %362 = vmatpush1.msra.mxu0 %v333
    %363 = vmatprep.subr.mxu0 0.0
    %364 = vmatpush1.msra.mxu0 %v334
    %365 = vmatprep.subr.mxu0 0.0
    %366 = vmatpush1.msra.mxu0 %v335
    %367 = vmatprep.subr.mxu0 0.0
    %368 = vmatpush1.msra.mxu0 %v336
    %369 = vmatprep.subr.mxu0 0.0
    %370 = vmatpush1.msra.mxu0 %v337
    %371 = vmatprep.subr.mxu0 0.0
    %372 = vmatpush1.msra.mxu0 %v338
    %373 = vmatprep.subr.mxu0 0.0
    %374 = vmatpush1.msra.mxu0 %v339
    %375 = vmatprep.subr.mxu0 0.0
    %376 = vmatpush1.msra.mxu0 %v340
    %377 = vmatprep.subr.mxu0 0.0
    %378 = vmatpush1.msra.mxu0 %v341
    %379 = vmatprep.subr.mxu0 0.0
    %380 = vmatpush1.msra.mxu0 %v342
    %381 = vmatprep.subr.mxu0 0.0
    %382 = vmatpush1.msra.mxu0 %v343
    %383 = vmatprep.subr.mxu0 0.0
    %384 = vmatpush1.msra.mxu0 0.0
    %385 = vmatprep.subr.mxu0 0.0
    %386 = vmatpush1.msra.mxu0 0.0
    %387 = vmatprep.subr.mxu0 0.0
    %388 = vmatpush1.msra.mxu0 0.0
    %389 = vmatprep.subr.mxu0 0.0
    %390 = vmatpush1.msra.mxu0 0.0
    %391 = vmatprep.subr.mxu0 0.0
    %392 = vmatpush1.msra.mxu0 0.0
    %393 = vmatprep.subr.mxu0 0.0
    %394 = vmatpush1.msra.mxu0 0.0
    %395 = vmatprep.subr.mxu0 0.0
    %396 = vmatpush1.msra.mxu0 0.0
    %397 = vmatprep.subr.mxu0 0.0
    %398 = vmatpush1.msra.mxu0 0.0
    %399 = vmatprep.subr.mxu0 0.0
    %400 = vmatpush1.msra.mxu0 0.0
    %401 = vmatprep.subr.mxu0 0.0
    %402 = vmatpush1.msra.mxu0 0.0
    %403 = vmatprep.subr.mxu0 0.0
    %404 = vmatpush1.msra.mxu0 0.0
    %405 = vmatprep.subr.mxu0 0.0
    %406 = vmatpush1.msra.mxu0 0.0
    %407 = vmatprep.subr.mxu0 0.0
    %408 = vmatpush1.msra.mxu0 0.0
    %409 = vmatprep.subr.mxu0 0.0
    %410 = vmatpush1.msra.mxu0 0.0
    %411 = vmatprep.subr.mxu0 0.0
    %412 = vmatpush1.msra.mxu0 0.0
    %413 = vmatprep.subr.mxu0 0.0
    %414 = vmatpush1.msra.mxu0 0.0
    %415 = vmatprep.mubr.f32.mxu0 0.0
    %416 = vmatmul.mubr.f32.gmra.mrb[0].mxu0 %v200
    %v417 = vpop.f32.mrb[0].mxu0
    %v418 = vadd.f32 %v349, %v417
    %v419 = vpop.f32.mrb[0].mxu0
    %420 = vmatprep.mubr.f32.mxu0 0.0
    %421 = vmatmul.mubr.f32.gmra.mrb[0].mxu0 %v201
    %v422 = vpop.f32.mrb[0].mxu0
    %v423 = vadd.f32 %v349, %v422
    %v424 = vpop.f32.mrb[0].mxu0
    %425 = vmatprep.mubr.f32.mxu0 0.0
    %426 = vmatmul.mubr.f32.gmra.mrb[0].mxu0 %v202
    %v427 = vpop.f32.mrb[0].mxu0
    %v428 = vadd.f32 %v349, %v427
    %v429 = vpop.f32.mrb[0].mxu0
    %430 = vmatprep.mubr.f32.mxu0 0.0
    %431 = vmatmul.mubr.f32.gmra.mrb[0].mxu0 %v203
    %v432 = vpop.f32.mrb[0].mxu0
    %v433 = vadd.f32 %v349, %v432
    %v434 = vpop.f32.mrb[0].mxu0
    %435 = vmatprep.mubr.f32.mxu0 0.0
    %436 = vmatmul.mubr.f32.gmra.mrb[0].mxu0 %v204
    %v437 = vpop.f32.mrb[0].mxu0
    %v438 = vadd.f32 %v349, %v437
    %v439 = vpop.f32.mrb[0].mxu0
    %440 = vmatprep.mubr.f32.mxu0 0.0
    %441 = vmatmul.mubr.f32.gmra.mrb[0].mxu0 %v205
    %v442 = vpop.f32.mrb[0].mxu0
    %v443 = vadd.f32 %v349, %v442
    %v444 = vpop.f32.mrb[0].mxu0
    %445 = vmatprep.mubr.f32.mxu0 0.0
    %446 = vmatmul.mubr.f32.gmra.mrb[0].mxu0 %v206
    %v447 = vpop.f32.mrb[0].mxu0
    %v448 = vadd.f32 %v349, %v447
    %v449 = vpop.f32.mrb[0].mxu0
    %450 = vmatprep.mubr.f32.mxu0 0.0
    %451 = vmatmul.mubr.f32.gmra.mrb[0].mxu0 %v207
    %v452 = vpop.f32.mrb[0].mxu0
    %v453 = vadd.f32 %v349, %v452
    %v454 = vpop.f32.mrb[0].mxu0
    %455 = vmatprep.mubr.f32.mxu0 0.0
    %456 = vmatmul.mubr.f32.gmra.mrb[0].mxu0 %v208
    %v457 = vpop.f32.mrb[0].mxu0
    %v458 = vadd.f32 %v349, %v457
    %v459 = vpop.f32.mrb[0].mxu0
    %460 = vmatprep.mubr.f32.mxu0 0.0
    %461 = vmatmul.mubr.f32.gmra.mrb[0].mxu0 %v209
    %v462 = vpop.f32.mrb[0].mxu0
    %v463 = vadd.f32 %v349, %v462
    %v464 = vpop.f32.mrb[0].mxu0
    %465 = vmatprep.mubr.f32.mxu0 0.0
    %466 = vmatmul.mubr.f32.gmra.mrb[0].mxu0 %v210
    %v467 = vpop.f32.mrb[0].mxu0
    %v468 = vadd.f32 %v349, %v467
    %v469 = vpop.f32.mrb[0].mxu0
    %470 = vmatprep.mubr.f32.mxu0 0.0
    %471 = vmatmul.mubr.f32.gmra.mrb[0].mxu0 %v211
    %v472 = vpop.f32.mrb[0].mxu0
    %v473 = vadd.f32 %v349, %v472
    %v474 = vpop.f32.mrb[0].mxu0
    %475 = vmatprep.mubr.f32.mxu0 0.0
    %476 = vmatmul.mubr.f32.gmra.mrb[0].mxu0 %v212
    %v477 = vpop.f32.mrb[0].mxu0
    %v478 = vadd.f32 %v349, %v477
    %v479 = vpop.f32.mrb[0].mxu0
    %480 = vmatprep.mubr.f32.mxu0 0.0
    %481 = vmatmul.mubr.f32.gmra.mrb[0].mxu0 %v213
    %v482 = vpop.f32.mrb[0].mxu0
    %v483 = vadd.f32 %v349, %v482
    %v484 = vpop.f32.mrb[0].mxu0
    %485 = vmatprep.mubr.f32.mxu0 0.0
    %486 = vmatmul.mubr.f32.gmra.mrb[0].mxu0 %v214
    %v487 = vpop.f32.mrb[0].mxu0
    %v488 = vadd.f32 %v349, %v487
    %v489 = vpop.f32.mrb[0].mxu0
    %490 = vmatprep.mubr.f32.mxu0 0.0
    %491 = vmatmul.mubr.f32.gmra.mrb[0].mxu0 %v215
    %v492 = vpop.f32.mrb[0].mxu0
    %v493 = vadd.f32 %v349, %v492
    %v494 = vpop.f32.mrb[0].mxu0
    %495 = vmatprep.mubr.f32.mxu0 0.0
    %496 = vmatmul.mubr.f32.gmra.mrb[0].mxu0 %v216
    %v497 = vpop.f32.mrb[0].mxu0
    %v498 = vadd.f32 %v349, %v497
    %v499 = vpop.f32.mrb[0].mxu0
    %500 = vmatprep.mubr.f32.mxu0 0.0
    %501 = vmatmul.mubr.f32.gmra.mrb[0].mxu0 %v217
    %v502 = vpop.f32.mrb[0].mxu0
    %v503 = vadd.f32 %v349, %v502
    %v504 = vpop.f32.mrb[0].mxu0
    %505 = vmatprep.mubr.f32.mxu0 0.0
    %506 = vmatmul.mubr.f32.gmra.mrb[0].mxu0 %v218
    %v507 = vpop.f32.mrb[0].mxu0
    %v508 = vadd.f32 %v349, %v507
    %v509 = vpop.f32.mrb[0].mxu0
    %510 = vmatprep.mubr.f32.mxu0 0.0
    %511 = vmatmul.mubr.f32.gmra.mrb[0].mxu0 %v219
    %v512 = vpop.f32.mrb[0].mxu0
    %v513 = vadd.f32 %v349, %v512
    %v514 = vpop.f32.mrb[0].mxu0
    %515 = vmatprep.mubr.f32.mxu0 0.0
    %516 = vmatmul.mubr.f32.gmra.mrb[0].mxu0 %v220
    %v517 = vpop.f32.mrb[0].mxu0
    %v518 = vadd.f32 %v349, %v517
    %v519 = vpop.f32.mrb[0].mxu0
    %520 = vmatprep.mubr.f32.mxu0 0.0
    %521 = vmatmul.mubr.f32.gmra.mrb[0].mxu0 %v221
    %v522 = vpop.f32.mrb[0].mxu0
    %v523 = vadd.f32 %v349, %v522
    %v524 = vpop.f32.mrb[0].mxu0
    %525 = vmatprep.mubr.f32.mxu0 0.0
    %526 = vmatmul.mubr.f32.gmra.mrb[0].mxu0 %v222
    %v527 = vpop.f32.mrb[0].mxu0
    %v528 = vadd.f32 %v349, %v527
    %v529 = vpop.f32.mrb[0].mxu0
    %530 = vmatprep.mubr.f32.mxu0 0.0
    %531 = vmatmul.mubr.f32.gmra.mrb[0].mxu0 %v223
    %v532 = vpop.f32.mrb[0].mxu0
    %v533 = vadd.f32 %v349, %v532
    %v534 = vpop.f32.mrb[0].mxu0
    %535 = vmatprep.mubr.f32.mxu0 0.0
    %536 = vmatmul.mubr.f32.gmra.mrb[0].mxu0 %v224
    %v537 = vpop.f32.mrb[0].mxu0
    %v538 = vadd.f32 %v349, %v537
    %v539 = vpop.f32.mrb[0].mxu0
    %540 = vmatprep.mubr.f32.mxu0 0.0
    %541 = vmatmul.mubr.f32.gmra.mrb[0].mxu0 %v225
    %v542 = vpop.f32.mrb[0].mxu0
    %v543 = vadd.f32 %v349, %v542
    %v544 = vpop.f32.mrb[0].mxu0
    %545 = vmatprep.mubr.f32.mxu0 0.0
    %546 = vmatmul.mubr.f32.gmra.mrb[0].mxu0 %v226
    %v547 = vpop.f32.mrb[0].mxu0
    %v548 = vadd.f32 %v349, %v547
    %v549 = vpop.f32.mrb[0].mxu0
    %550 = vmatprep.mubr.f32.mxu0 0.0
    %551 = vmatmul.mubr.f32.gmra.mrb[0].mxu0 %v227
    %v552 = vpop.f32.mrb[0].mxu0
    %v553 = vadd.f32 %v349, %v552
    %v554 = vpop.f32.mrb[0].mxu0
    %555 = vmatprep.mubr.f32.mxu0 0.0
    %556 = vmatmul.mubr.f32.gmra.mrb[0].mxu0 %v228
    %v557 = vpop.f32.mrb[0].mxu0
    %v558 = vadd.f32 %v349, %v557
    %v559 = vpop.f32.mrb[0].mxu0
    %560 = vmatprep.mubr.f32.mxu0 0.0
    %561 = vmatmul.mubr.f32.gmra.mrb[0].mxu0 %v229
    %v562 = vpop.f32.mrb[0].mxu0
    %v563 = vadd.f32 %v349, %v562
    %v564 = vpop.f32.mrb[0].mxu0
    %565 = vmatprep.mubr.f32.mxu0 0.0
    %566 = vmatmul.mubr.f32.gmra.mrb[0].mxu0 %v230
    %v567 = vpop.f32.mrb[0].mxu0
    %v568 = vadd.f32 %v349, %v567
    %v569 = vpop.f32.mrb[0].mxu0
    %570 = vmatprep.mubr.f32.mxu0 0.0
    %571 = vmatmul.mubr.f32.gmra.mrb[0].mxu0 %v231
    %v572 = vpop.f32.mrb[0].mxu0
    %v573 = vadd.f32 %v349, %v572
    %v574 = vpop.f32.mrb[0].mxu0
    %575 = vmatprep.mubr.f32.mxu0 0.0
    %576 = vmatmul.mubr.f32.gmra.mrb[0].mxu0 %v232
    %v577 = vpop.f32.mrb[0].mxu0
    %v578 = vadd.f32 %v349, %v577
    %v579 = vpop.f32.mrb[0].mxu0
    %580 = vmatprep.mubr.f32.mxu0 0.0
    %581 = vmatmul.mubr.f32.gmra.mrb[0].mxu0 %v233
    %v582 = vpop.f32.mrb[0].mxu0
    %v583 = vadd.f32 %v349, %v582
    %v584 = vpop.f32.mrb[0].mxu0
    %585 = vmatprep.mubr.f32.mxu0 0.0
    %586 = vmatmul.mubr.f32.gmra.mrb[0].mxu0 %v234
    %v587 = vpop.f32.mrb[0].mxu0
    %v588 = vadd.f32 %v349, %v587
    %v589 = vpop.f32.mrb[0].mxu0
    %590 = vmatprep.mubr.f32.mxu0 0.0
    %591 = vmatmul.mubr.f32.gmra.mrb[0].mxu0 %v235
    %v592 = vpop.f32.mrb[0].mxu0
    %v593 = vadd.f32 %v349, %v592
    %v594 = vpop.f32.mrb[0].mxu0
    %595 = vmatprep.mubr.f32.mxu0 0.0
    %596 = vmatmul.mubr.f32.gmra.mrb[0].mxu0 %v236
    %v597 = vpop.f32.mrb[0].mxu0
    %v598 = vadd.f32 %v349, %v597
    %v599 = vpop.f32.mrb[0].mxu0
    %600 = vmatprep.mubr.f32.mxu0 0.0
    %601 = vmatmul.mubr.f32.gmra.mrb[0].mxu0 %v237
    %v602 = vpop.f32.mrb[0].mxu0
    %v603 = vadd.f32 %v349, %v602
    %v604 = vpop.f32.mrb[0].mxu0
    %605 = vmatprep.mubr.f32.mxu0 0.0
    %606 = vmatmul.mubr.f32.gmra.mrb[0].mxu0 %v238
    %v607 = vpop.f32.mrb[0].mxu0
    %v608 = vadd.f32 %v349, %v607
    %v609 = vpop.f32.mrb[0].mxu0
    %610 = vmatprep.mubr.f32.mxu0 0.0
    %611 = vmatmul.mubr.f32.gmra.mrb[0].mxu0 %v239
    %v612 = vpop.f32.mrb[0].mxu0
    %v613 = vadd.f32 %v349, %v612
    %v614 = vpop.f32.mrb[0].mxu0
    %615 = vmatprep.mubr.f32.mxu0 0.0
    %616 = vmatmul.mubr.f32.gmra.mrb[0].mxu0 %v240
    %v617 = vpop.f32.mrb[0].mxu0
    %v618 = vadd.f32 %v349, %v617
    %v619 = vpop.f32.mrb[0].mxu0
    %620 = vmatprep.mubr.f32.mxu0 0.0
    %621 = vmatmul.mubr.f32.gmra.mrb[0].mxu0 %v241
    %v622 = vpop.f32.mrb[0].mxu0
    %v623 = vadd.f32 %v349, %v622
    %v624 = vpop.f32.mrb[0].mxu0
    %625 = vmatprep.mubr.f32.mxu0 0.0
    %626 = vmatmul.mubr.f32.gmra.mrb[0].mxu0 %v242
    %v627 = vpop.f32.mrb[0].mxu0
    %v628 = vadd.f32 %v349, %v627
    %v629 = vpop.f32.mrb[0].mxu0
    %630 = vmatprep.mubr.f32.mxu0 0.0
    %631 = vmatmul.mubr.f32.gmra.mrb[0].mxu0 %v243
    %v632 = vpop.f32.mrb[0].mxu0
    %v633 = vadd.f32 %v349, %v632
    %v634 = vpop.f32.mrb[0].mxu0
    %635 = vmatprep.mubr.f32.mxu0 0.0
    %636 = vmatmul.mubr.f32.gmra.mrb[0].mxu0 %v244
    %v637 = vpop.f32.mrb[0].mxu0
    %v638 = vadd.f32 %v349, %v637
    %v639 = vpop.f32.mrb[0].mxu0
    %640 = vmatprep.mubr.f32.mxu0 0.0
    %641 = vmatmul.mubr.f32.gmra.mrb[0].mxu0 %v245
    %v642 = vpop.f32.mrb[0].mxu0
    %v643 = vadd.f32 %v349, %v642
    %v644 = vpop.f32.mrb[0].mxu0
    %645 = vmatprep.mubr.f32.mxu0 0.0
    %646 = vmatmul.mubr.f32.gmra.mrb[0].mxu0 %v246
    %v647 = vpop.f32.mrb[0].mxu0
    %v648 = vadd.f32 %v349, %v647
    %v649 = vpop.f32.mrb[0].mxu0
    %650 = vmatprep.mubr.f32.mxu0 0.0
    %651 = vmatmul.mubr.f32.gmra.mrb[0].mxu0 %v247
    %v652 = vpop.f32.mrb[0].mxu0
    %v653 = vadd.f32 %v349, %v652
    %v654 = vpop.f32.mrb[0].mxu0
    %655 = vmatprep.mubr.f32.mxu0 0.0
    %656 = vmatmul.mubr.f32.gmra.mrb[0].mxu0 %v248
    %v657 = vpop.f32.mrb[0].mxu0
    %v658 = vadd.f32 %v349, %v657
    %v659 = vpop.f32.mrb[0].mxu0
    %660 = vmatprep.mubr.f32.mxu0 0.0
    %661 = vmatmul.mubr.f32.gmra.mrb[0].mxu0 %v249
    %v662 = vpop.f32.mrb[0].mxu0
    %v663 = vadd.f32 %v349, %v662
    %v664 = vpop.f32.mrb[0].mxu0
    %665 = vmatprep.mubr.f32.mxu0 0.0
    %666 = vmatmul.mubr.f32.gmra.mrb[0].mxu0 %v250
    %v667 = vpop.f32.mrb[0].mxu0
    %v668 = vadd.f32 %v349, %v667
    %v669 = vpop.f32.mrb[0].mxu0
    %670 = vmatprep.mubr.f32.mxu0 0.0
    %671 = vmatmul.mubr.f32.gmra.mrb[0].mxu0 %v251
    %v672 = vpop.f32.mrb[0].mxu0
    %v673 = vadd.f32 %v349, %v672
    %v674 = vpop.f32.mrb[0].mxu0
    %675 = vmatprep.mubr.f32.mxu0 0.0
    %676 = vmatmul.mubr.f32.gmra.mrb[0].mxu0 %v252
    %v677 = vpop.f32.mrb[0].mxu0
    %v678 = vadd.f32 %v349, %v677
    %v679 = vpop.f32.mrb[0].mxu0
    %680 = vmatprep.mubr.f32.mxu0 0.0
    %681 = vmatmul.mubr.f32.gmra.mrb[0].mxu0 %v253
    %v682 = vpop.f32.mrb[0].mxu0
    %v683 = vadd.f32 %v349, %v682
    %v684 = vpop.f32.mrb[0].mxu0
    %685 = vmatprep.mubr.f32.mxu0 0.0
    %686 = vmatmul.mubr.f32.gmra.mrb[0].mxu0 %v254
    %v687 = vpop.f32.mrb[0].mxu0
    %v688 = vadd.f32 %v349, %v687
    %v689 = vpop.f32.mrb[0].mxu0
    %690 = vmatprep.mubr.f32.mxu0 0.0
    %691 = vmatmul.mubr.f32.gmra.mrb[0].mxu0 %v255
    %v692 = vpop.f32.mrb[0].mxu0
    %v693 = vadd.f32 %v349, %v692
    %v694 = vpop.f32.mrb[0].mxu0
    %695 = vmatprep.mubr.f32.mxu0 0.0
    %696 = vmatmul.mubr.f32.gmra.mrb[0].mxu0 %v256
    %v697 = vpop.f32.mrb[0].mxu0
    %v698 = vadd.f32 %v349, %v697
    %v699 = vpop.f32.mrb[0].mxu0
    %700 = vmatprep.mubr.f32.mxu0 0.0
    %701 = vmatmul.mubr.f32.gmra.mrb[0].mxu0 %v257
    %v702 = vpop.f32.mrb[0].mxu0
    %v703 = vadd.f32 %v349, %v702
    %v704 = vpop.f32.mrb[0].mxu0
    %705 = vmatprep.mubr.f32.mxu0 0.0
    %706 = vmatmul.mubr.f32.gmra.mrb[0].mxu0 %v258
    %v707 = vpop.f32.mrb[0].mxu0
    %v708 = vadd.f32 %v349, %v707
    %v709 = vpop.f32.mrb[0].mxu0
    %710 = vmatprep.mubr.f32.mxu0 0.0
    %711 = vmatmul.mubr.f32.gmra.mrb[0].mxu0 %v259
    %v712 = vpop.f32.mrb[0].mxu0
    %v713 = vadd.f32 %v349, %v712
    %v714 = vpop.f32.mrb[0].mxu0
    %715 = vmatprep.mubr.f32.mxu0 0.0
    %716 = vmatmul.mubr.f32.gmra.mrb[0].mxu0 %v260
    %v717 = vpop.f32.mrb[0].mxu0
    %v718 = vadd.f32 %v349, %v717
    %v719 = vpop.f32.mrb[0].mxu0
    %720 = vmatprep.mubr.f32.mxu0 0.0
    %721 = vmatmul.mubr.f32.gmra.mrb[0].mxu0 %v261
    %v722 = vpop.f32.mrb[0].mxu0
    %v723 = vadd.f32 %v349, %v722
    %v724 = vpop.f32.mrb[0].mxu0
    %725 = vmatprep.mubr.f32.mxu0 0.0
    %726 = vmatmul.mubr.f32.gmra.mrb[0].mxu0 %v262
    %v727 = vpop.f32.mrb[0].mxu0
    %v728 = vadd.f32 %v349, %v727
    %v729 = vpop.f32.mrb[0].mxu0
    %730 = vmatprep.mubr.f32.mxu0 0.0
    %731 = vmatmul.mubr.f32.gmra.mrb[0].mxu0 %v263
    %v732 = vpop.f32.mrb[0].mxu0
    %v733 = vadd.f32 %v349, %v732
    %v734 = vpop.f32.mrb[0].mxu0
    %735 = vmatprep.mubr.f32.mxu0 0.0
    %736 = vmatmul.mubr.f32.gmra.mrb[0].mxu0 %v264
    %v737 = vpop.f32.mrb[0].mxu0
    %v738 = vadd.f32 %v349, %v737
    %v739 = vpop.f32.mrb[0].mxu0
    %740 = vmatprep.mubr.f32.mxu0 0.0
    %741 = vmatmul.mubr.f32.gmra.mrb[0].mxu0 %v265
    %v742 = vpop.f32.mrb[0].mxu0
    %v743 = vadd.f32 %v349, %v742
    %v744 = vpop.f32.mrb[0].mxu0
    %745 = vmatprep.mubr.f32.mxu0 0.0
    %746 = vmatmul.mubr.f32.gmra.mrb[0].mxu0 %v266
    %v747 = vpop.f32.mrb[0].mxu0
    %v748 = vadd.f32 %v349, %v747
    %v749 = vpop.f32.mrb[0].mxu0
    %750 = vmatprep.mubr.f32.mxu0 0.0
    %751 = vmatmul.mubr.f32.gmra.mrb[0].mxu0 %v267
    %v752 = vpop.f32.mrb[0].mxu0
    %v753 = vadd.f32 %v349, %v752
    %v754 = vpop.f32.mrb[0].mxu0
    %755 = vmatprep.mubr.f32.mxu0 0.0
    %756 = vmatmul.mubr.f32.gmra.mrb[0].mxu0 %v268
    %v757 = vpop.f32.mrb[0].mxu0
    %v758 = vadd.f32 %v349, %v757
    %v759 = vpop.f32.mrb[0].mxu0
    %760 = vmatprep.mubr.f32.mxu0 0.0
    %761 = vmatmul.mubr.f32.gmra.mrb[0].mxu0 %v269
    %v762 = vpop.f32.mrb[0].mxu0
    %v763 = vadd.f32 %v349, %v762
    %v764 = vpop.f32.mrb[0].mxu0
    %765 = vmatprep.mubr.f32.mxu0 0.0
    %766 = vmatmul.mubr.f32.gmra.mrb[0].mxu0 %v270
    %v767 = vpop.f32.mrb[0].mxu0
    %v768 = vadd.f32 %v349, %v767
    %v769 = vpop.f32.mrb[0].mxu0
    %770 = vmatprep.mubr.f32.mxu0 0.0
    %771 = vmatmul.mubr.f32.gmra.mrb[0].mxu0 %v271
    %v772 = vpop.f32.mrb[0].mxu0
    %v773 = vadd.f32 %v349, %v772
    %v774 = vpop.f32.mrb[0].mxu0
    %775 = vmatprep.mubr.f32.mxu0 0.0
    %776 = vmatmul.mubr.f32.gmra.mrb[0].mxu0 %v272
    %v777 = vpop.f32.mrb[0].mxu0
    %v778 = vadd.f32 %v349, %v777
    %v779 = vpop.f32.mrb[0].mxu0
    %780 = vmatprep.mubr.f32.mxu0 0.0
    %781 = vmatmul.mubr.f32.gmra.mrb[0].mxu0 %v273
    %v782 = vpop.f32.mrb[0].mxu0
    %v783 = vadd.f32 %v349, %v782
    %v784 = vpop.f32.mrb[0].mxu0
    %785 = vmatprep.mubr.f32.mxu0 0.0
    %786 = vmatmul.mubr.f32.gmra.mrb[0].mxu0 %v274
    %v787 = vpop.f32.mrb[0].mxu0
    %v788 = vadd.f32 %v349, %v787
    %v789 = vpop.f32.mrb[0].mxu0
    %790 = vmatprep.mubr.f32.mxu0 0.0
    %791 = vmatmul.mubr.f32.gmra.mrb[0].mxu0 %v275
    %v792 = vpop.f32.mrb[0].mxu0
    %v793 = vadd.f32 %v349, %v792
    %v794 = vpop.f32.mrb[0].mxu0
    %795 = vmatprep.mubr.f32.mxu0 0.0
    %796 = vmatmul.mubr.f32.gmra.mrb[0].mxu0 %v276
    %v797 = vpop.f32.mrb[0].mxu0
    %v798 = vadd.f32 %v349, %v797
    %v799 = vpop.f32.mrb[0].mxu0
    %800 = vmatprep.mubr.f32.mxu0 0.0
    %801 = vmatmul.mubr.f32.gmra.mrb[0].mxu0 %v277
    %v802 = vpop.f32.mrb[0].mxu0
    %v803 = vadd.f32 %v349, %v802
    %v804 = vpop.f32.mrb[0].mxu0
    %805 = vmatprep.mubr.f32.mxu0 0.0
    %806 = vmatmul.mubr.f32.gmra.mrb[0].mxu0 %v278
    %v807 = vpop.f32.mrb[0].mxu0
    %v808 = vadd.f32 %v349, %v807
    %v809 = vpop.f32.mrb[0].mxu0
    %810 = vmatprep.mubr.f32.mxu0 0.0
    %811 = vmatmul.mubr.f32.gmra.mrb[0].mxu0 %v279
    %v812 = vpop.f32.mrb[0].mxu0
    %v813 = vadd.f32 %v349, %v812
    %v814 = vpop.f32.mrb[0].mxu0
    %815 = vmatprep.mubr.f32.mxu0 0.0
    %816 = vmatmul.mubr.f32.gmra.mrb[0].mxu0 %v280
    %v817 = vpop.f32.mrb[0].mxu0
    %v818 = vadd.f32 %v349, %v817
    %v819 = vpop.f32.mrb[0].mxu0
    %820 = vmatprep.mubr.f32.mxu0 0.0
    %821 = vmatmul.mubr.f32.gmra.mrb[0].mxu0 %v281
    %v822 = vpop.f32.mrb[0].mxu0
    %v823 = vadd.f32 %v349, %v822
    %v824 = vpop.f32.mrb[0].mxu0
    %825 = vmatprep.mubr.f32.mxu0 0.0
    %826 = vmatmul.mubr.f32.gmra.mrb[0].mxu0 %v282
    %v827 = vpop.f32.mrb[0].mxu0
    %v828 = vadd.f32 %v349, %v827
    %v829 = vpop.f32.mrb[0].mxu0
    %830 = vmatprep.mubr.f32.mxu0 0.0
    %831 = vmatmul.mubr.f32.gmra.mrb[0].mxu0 %v283
    %v832 = vpop.f32.mrb[0].mxu0
    %v833 = vadd.f32 %v349, %v832
    %v834 = vpop.f32.mrb[0].mxu0
    %835 = vmatprep.mubr.f32.mxu0 0.0
    %836 = vmatmul.mubr.f32.gmra.mrb[0].mxu0 %v284
    %v837 = vpop.f32.mrb[0].mxu0
    %v838 = vadd.f32 %v349, %v837
    %v839 = vpop.f32.mrb[0].mxu0
    %840 = vmatprep.mubr.f32.mxu0 0.0
    %841 = vmatmul.mubr.f32.gmra.mrb[0].mxu0 %v285
    %v842 = vpop.f32.mrb[0].mxu0
    %v843 = vadd.f32 %v349, %v842
    %v844 = vpop.f32.mrb[0].mxu0
    %845 = vmatprep.mubr.f32.mxu0 0.0
    %846 = vmatmul.mubr.f32.gmra.mrb[0].mxu0 %v286
    %v847 = vpop.f32.mrb[0].mxu0
    %v848 = vadd.f32 %v349, %v847
    %v849 = vpop.f32.mrb[0].mxu0
    %850 = vmatprep.mubr.f32.mxu0 0.0
    %851 = vmatmul.mubr.f32.gmra.mrb[0].mxu0 %v287
    %v852 = vpop.f32.mrb[0].mxu0
    %v853 = vadd.f32 %v349, %v852
    %v854 = vpop.f32.mrb[0].mxu0
    %855 = vmatprep.mubr.f32.mxu0 0.0
    %856 = vmatmul.mubr.f32.gmra.mrb[0].mxu0 %v288
    %v857 = vpop.f32.mrb[0].mxu0
    %v858 = vadd.f32 %v349, %v857
    %v859 = vpop.f32.mrb[0].mxu0
    %860 = vmatprep.mubr.f32.mxu0 0.0
    %861 = vmatmul.mubr.f32.gmra.mrb[0].mxu0 %v289
    %v862 = vpop.f32.mrb[0].mxu0
    %v863 = vadd.f32 %v349, %v862
    %v864 = vpop.f32.mrb[0].mxu0
    %865 = vmatprep.mubr.f32.mxu0 0.0
    %866 = vmatmul.mubr.f32.gmra.mrb[0].mxu0 %v290
    %v867 = vpop.f32.mrb[0].mxu0
    %v868 = vadd.f32 %v349, %v867
    %v869 = vpop.f32.mrb[0].mxu0
    %870 = vmatprep.mubr.f32.mxu0 0.0
    %871 = vmatmul.mubr.f32.gmra.mrb[0].mxu0 %v291
    %v872 = vpop.f32.mrb[0].mxu0
    %v873 = vadd.f32 %v349, %v872
    %v874 = vpop.f32.mrb[0].mxu0
    %875 = vmatprep.mubr.f32.mxu0 0.0
    %876 = vmatmul.mubr.f32.gmra.mrb[0].mxu0 %v292
    %v877 = vpop.f32.mrb[0].mxu0
    %v878 = vadd.f32 %v349, %v877
    %v879 = vpop.f32.mrb[0].mxu0
    %880 = vmatprep.mubr.f32.mxu0 0.0
    %881 = vmatmul.mubr.f32.gmra.mrb[0].mxu0 %v293
    %v882 = vpop.f32.mrb[0].mxu0
    %v883 = vadd.f32 %v349, %v882
    %v884 = vpop.f32.mrb[0].mxu0
    %885 = vmatprep.mubr.f32.mxu0 0.0
    %886 = vmatmul.mubr.f32.gmra.mrb[0].mxu0 %v294
    %v887 = vpop.f32.mrb[0].mxu0
    %v888 = vadd.f32 %v349, %v887
    %v889 = vpop.f32.mrb[0].mxu0
    %890 = vmatprep.mubr.f32.mxu0 0.0
    %891 = vmatmul.mubr.f32.gmra.mrb[0].mxu0 %v295
    %v892 = vpop.f32.mrb[0].mxu0
    %v893 = vadd.f32 %v349, %v892
    %v894 = vpop.f32.mrb[0].mxu0
    %895 = vmatprep.mubr.f32.mxu0 0.0
    %896 = vmatmul.mubr.f32.gmra.mrb[0].mxu0 %v296
    %v897 = vpop.f32.mrb[0].mxu0
    %v898 = vadd.f32 %v349, %v897
    %v899 = vpop.f32.mrb[0].mxu0
    %900 = vmatprep.mubr.f32.mxu0 0.0
    %901 = vmatmul.mubr.f32.gmra.mrb[0].mxu0 %v297
    %v902 = vpop.f32.mrb[0].mxu0
    %v903 = vadd.f32 %v349, %v902
    %v904 = vpop.f32.mrb[0].mxu0
    %905 = vmatprep.mubr.f32.mxu0 0.0
    %906 = vmatmul.mubr.f32.gmra.mrb[0].mxu0 %v298
    %v907 = vpop.f32.mrb[0].mxu0
    %v908 = vadd.f32 %v349, %v907
    %v909 = vpop.f32.mrb[0].mxu0
    %910 = vmatprep.mubr.f32.mxu0 0.0
    %911 = vmatmul.mubr.f32.gmra.mrb[0].mxu0 %v299
    %v912 = vpop.f32.mrb[0].mxu0
    %v913 = vadd.f32 %v349, %v912
    %v914 = vpop.f32.mrb[0].mxu0
    %915 = vmatprep.mubr.f32.mxu0 0.0
    %916 = vmatmul.mubr.f32.gmra.mrb[0].mxu0 %v300
    %v917 = vpop.f32.mrb[0].mxu0
    %v918 = vadd.f32 %v349, %v917
    %v919 = vpop.f32.mrb[0].mxu0
    %920 = vmatprep.mubr.f32.mxu0 0.0
    %921 = vmatmul.mubr.f32.gmra.mrb[0].mxu0 %v301
    %v922 = vpop.f32.mrb[0].mxu0
    %v923 = vadd.f32 %v349, %v922
    %v924 = vpop.f32.mrb[0].mxu0
    %925 = vmatprep.mubr.f32.mxu0 0.0
    %926 = vmatmul.mubr.f32.gmra.mrb[0].mxu0 %v302
    %v927 = vpop.f32.mrb[0].mxu0
    %v928 = vadd.f32 %v349, %v927
    %v929 = vpop.f32.mrb[0].mxu0
    %930 = vmatprep.mubr.f32.mxu0 0.0
    %931 = vmatmul.mubr.f32.gmra.mrb[0].mxu0 %v303
    %v932 = vpop.f32.mrb[0].mxu0
    %v933 = vadd.f32 %v349, %v932
    %v934 = vpop.f32.mrb[0].mxu0
    %935 = vmatprep.mubr.f32.mxu0 0.0
    %936 = vmatmul.mubr.f32.gmra.mrb[0].mxu0 %v304
    %v937 = vpop.f32.mrb[0].mxu0
    %v938 = vadd.f32 %v349, %v937
    %v939 = vpop.f32.mrb[0].mxu0
    %940 = vmatprep.mubr.f32.mxu0 0.0
    %941 = vmatmul.mubr.f32.gmra.mrb[0].mxu0 %v305
    %v942 = vpop.f32.mrb[0].mxu0
    %v943 = vadd.f32 %v349, %v942
    %v944 = vpop.f32.mrb[0].mxu0
    %945 = vmatprep.mubr.f32.mxu0 0.0
    %946 = vmatmul.mubr.f32.gmra.mrb[0].mxu0 %v306
    %v947 = vpop.f32.mrb[0].mxu0
    %v948 = vadd.f32 %v349, %v947
    %v949 = vpop.f32.mrb[0].mxu0
    %950 = vmatprep.mubr.f32.mxu0 0.0
    %951 = vmatmul.mubr.f32.gmra.mrb[0].mxu0 %v307
    %v952 = vpop.f32.mrb[0].mxu0
    %v953 = vadd.f32 %v349, %v952
    %v954 = vpop.f32.mrb[0].mxu0
    %955 = vmatprep.mubr.f32.mxu0 0.0
    %956 = vmatmul.mubr.f32.gmra.mrb[0].mxu0 %v308
    %v957 = vpop.f32.mrb[0].mxu0
    %v958 = vadd.f32 %v349, %v957
    %v959 = vpop.f32.mrb[0].mxu0
    %960 = vmatprep.mubr.f32.mxu0 0.0
    %961 = vmatmul.mubr.f32.gmra.mrb[0].mxu0 %v309
    %v962 = vpop.f32.mrb[0].mxu0
    %v963 = vadd.f32 %v349, %v962
    %v964 = vpop.f32.mrb[0].mxu0
    %965 = vmatprep.mubr.f32.mxu0 0.0
    %966 = vmatmul.mubr.f32.gmra.mrb[0].mxu0 %v310
    %v967 = vpop.f32.mrb[0].mxu0
    %v968 = vadd.f32 %v349, %v967
    %v969 = vpop.f32.mrb[0].mxu0
    %970 = vmatprep.mubr.f32.mxu0 0.0
    %971 = vmatmul.mubr.f32.gmra.mrb[0].mxu0 %v311
    %v972 = vpop.f32.mrb[0].mxu0
    %v973 = vadd.f32 %v349, %v972
    %v974 = vpop.f32.mrb[0].mxu0
    %975 = vmatprep.mubr.f32.mxu0 0.0
    %976 = vmatmul.mubr.f32.gmra.mrb[0].mxu0 %v312
    %v977 = vpop.f32.mrb[0].mxu0
    %v978 = vadd.f32 %v349, %v977
    %v979 = vpop.f32.mrb[0].mxu0
    %980 = vmatprep.mubr.f32.mxu0 0.0
    %981 = vmatmul.mubr.f32.gmra.mrb[0].mxu0 %v313
    %v982 = vpop.f32.mrb[0].mxu0
    %v983 = vadd.f32 %v349, %v982
    %v984 = vpop.f32.mrb[0].mxu0
    %985 = vmatprep.mubr.f32.mxu0 0.0
    %986 = vmatmul.mubr.f32.gmra.mrb[0].mxu0 %v314
    %v987 = vpop.f32.mrb[0].mxu0
    %v988 = vadd.f32 %v349, %v987
    %v989 = vpop.f32.mrb[0].mxu0
    %990 = vmatprep.mubr.f32.mxu0 0.0
    %991 = vmatmul.mubr.f32.gmra.mrb[0].mxu0 %v315
    %v992 = vpop.f32.mrb[0].mxu0
    %v993 = vadd.f32 %v349, %v992
    %v994 = vpop.f32.mrb[0].mxu0
    %995 = vmatprep.mubr.f32.mxu0 0.0
    %996 = vmatmul.mubr.f32.gmra.mrb[0].mxu0 %v316
    %v997 = vpop.f32.mrb[0].mxu0
    %v998 = vadd.f32 %v349, %v997
    %v999 = vpop.f32.mrb[0].mxu0
    %1000 = vmatprep.mubr.f32.mxu0 0.0
    %1001 = vmatmul.mubr.f32.gmra.mrb[0].mxu0 %v317
    %v1002 = vpop.f32.mrb[0].mxu0
    %v1003 = vadd.f32 %v349, %v1002
    %v1004 = vpop.f32.mrb[0].mxu0
    %1005 = vmatprep.mubr.f32.mxu0 0.0
    %1006 = vmatmul.mubr.f32.gmra.mrb[0].mxu0 %v318
    %v1007 = vpop.f32.mrb[0].mxu0
    %v1008 = vadd.f32 %v349, %v1007
    %v1009 = vpop.f32.mrb[0].mxu0
    %1010 = vmatprep.mubr.f32.mxu0 0.0
    %1011 = vmatmul.mubr.f32.gmra.mrb[0].mxu0 %v319
    %v1012 = vpop.f32.mrb[0].mxu0
    %v1013 = vadd.f32 %v349, %v1012
    %v1014 = vpop.f32.mrb[0].mxu0
    %1015 = vmatprep.mubr.f32.mxu0 0.0
    %1016 = vmatmul.mubr.f32.gmra.mrb[0].mxu0 %v320
    %v1017 = vpop.f32.mrb[0].mxu0
    %v1018 = vadd.f32 %v349, %v1017
    %v1019 = vpop.f32.mrb[0].mxu0
    %1020 = vmatprep.mubr.f32.mxu0 0.0
    %1021 = vmatmul.mubr.f32.gmra.mrb[0].mxu0 %v321
    %v1022 = vpop.f32.mrb[0].mxu0
    %v1023 = vadd.f32 %v349, %v1022
    %v1024 = vpop.f32.mrb[0].mxu0
    %1025 = vmatprep.mubr.f32.mxu0 0.0
    %1026 = vmatmul.mubr.f32.gmra.mrb[0].mxu0 %v322
    %v1027 = vpop.f32.mrb[0].mxu0
    %v1028 = vadd.f32 %v349, %v1027
    %v1029 = vpop.f32.mrb[0].mxu0
    %1030 = vmatprep.mubr.f32.mxu0 0.0
    %1031 = vmatmul.mubr.f32.gmra.mrb[0].mxu0 %v323
    %v1032 = vpop.f32.mrb[0].mxu0
    %v1033 = vadd.f32 %v349, %v1032
    %v1034 = vpop.f32.mrb[0].mxu0
    %1035 = vmatprep.mubr.f32.mxu0 0.0
    %1036 = vmatmul.mubr.f32.gmra.mrb[0].mxu0 %v324
    %v1037 = vpop.f32.mrb[0].mxu0
    %v1038 = vadd.f32 %v349, %v1037
    %v1039 = vpop.f32.mrb[0].mxu0
    %1040 = vmatprep.mubr.f32.mxu0 0.0
    %1041 = vmatmul.mubr.f32.gmra.mrb[0].mxu0 %v325
    %v1042 = vpop.f32.mrb[0].mxu0
    %v1043 = vadd.f32 %v349, %v1042
    %v1044 = vpop.f32.mrb[0].mxu0
    %1045 = vmatprep.mubr.f32.mxu0 0.0
    %1046 = vmatmul.mubr.f32.gmra.mrb[0].mxu0 %v326
    %v1047 = vpop.f32.mrb[0].mxu0
    %v1048 = vadd.f32 %v349, %v1047
    %v1049 = vpop.f32.mrb[0].mxu0
    %1050 = vmatprep.mubr.f32.mxu0 0.0
    %1051 = vmatmul.mubr.f32.gmra.mrb[0].mxu0 %v327
    %v1052 = vpop.f32.mrb[0].mxu0
    %v1053 = vadd.f32 %v349, %v1052
    %v1054 = vpop.f32.mrb[0].mxu0
    %1055 = vdwg.mxu0
    %v1056 = vld [vmem:[#allocation2] sm:$0xff]
    %v1058 = vcombine.high %v1056, %v1056
    %v1060 = vunpack.c.l.s4 1966171168
    %v1061 = vunpack.c.0.s8 %v1060
    %v1062 = vlaneseq
    %v1063 = vshrl.u32 %v1062, 7
    %v1064 = vsub.s32 %v1061, %v1063
    %v1065 = vrot.slane %v1056, %v1064
    %v1067 = vunpack.c.l.s4 1966171168
    %v1068 = vunpack.c.0.s8 %v1067
    %v1069 = vlaneseq
    %v1070 = vshrl.u32 %v1069, 7
    %v1071 = vsub.s32 %v1068, %v1070
    %v1072 = vrot.slane %v1058, %v1071
    %v1073 = vcombine.high %v1065, %v1065
    %v1074 = vcombine.high %v1072, %v1072
    %v1076 = vunpack.c.l.s4 1966171168
    %v1077 = vunpack.c.0.s8 %v1076
    %v1078 = vlaneseq
    %v1079 = vshrl.u32 %v1078, 7
    %v1080 = vsub.s32 %v1077, %v1079
    %v1081 = vrot.slane %v1065, %v1080
    %v1083 = vunpack.c.l.s4 1966171168
    %v1084 = vunpack.c.0.s8 %v1083
    %v1085 = vlaneseq
    %v1086 = vshrl.u32 %v1085, 7
    %v1087 = vsub.s32 %v1084, %v1086
    %v1088 = vrot.slane %v1072, %v1087
    %v1090 = vunpack.c.l.s4 1966171168
    %v1091 = vunpack.c.0.s8 %v1090
    %v1092 = vlaneseq
    %v1093 = vshrl.u32 %v1092, 7
    %v1094 = vsub.s32 %v1091, %v1093
    %v1095 = vrot.slane %v1073, %v1094
    %v1097 = vunpack.c.l.s4 1966171168
    %v1098 = vunpack.c.0.s8 %v1097
    %v1099 = vlaneseq
    %v1100 = vshrl.u32 %v1099, 7
    %v1101 = vsub.s32 %v1098, %v1100
    %v1102 = vrot.slane %v1074, %v1101
    %v1103 = vcombine.high %v1081, %v1081
    %v1104 = vcombine.high %v1088, %v1088
    %v1105 = vcombine.high %v1095, %v1095
    %v1106 = vcombine.high %v1102, %v1102
    %v1107 = vlaneseq
    %v1108 = vshrl.u32 %v1107, 7
    %v1109 = vsub.s32 0, %v1108
    %v1110 = vrot.slane %v1081, %v1109
    %v1111 = vlaneseq
    %v1112 = vshrl.u32 %v1111, 7
    %v1113 = vsub.s32 0, %v1112
    %v1114 = vrot.slane %v1095, %v1113
    %v1115 = vlaneseq
    %v1116 = vshrl.u32 %v1115, 7
    %v1117 = vsub.s32 0, %v1116
    %v1118 = vrot.slane %v1103, %v1117
    %v1119 = vlaneseq
    %v1120 = vshrl.u32 %v1119, 7
    %v1121 = vsub.s32 0, %v1120
    %v1122 = vrot.slane %v1105, %v1121
    %v1123 = vlaneseq
    %v1124 = vshrl.u32 %v1123, 7
    %v1125 = vsub.s32 0, %v1124
    %v1126 = vrot.slane %v1088, %v1125
    %v1127 = vlaneseq
    %v1128 = vshrl.u32 %v1127, 7
    %v1129 = vsub.s32 0, %v1128
    %v1130 = vrot.slane %v1102, %v1129
    %v1131 = vlaneseq
    %v1132 = vshrl.u32 %v1131, 7
    %v1133 = vsub.s32 0, %v1132
    %v1134 = vrot.slane %v1104, %v1133
    %v1135 = vlaneseq
    %v1136 = vshrl.u32 %v1135, 7
    %v1137 = vsub.s32 0, %v1136
    %v1138 = vrot.slane %v1106, %v1137
    %v1147 = vadd.f32 %v418, %v1110
    %v1148 = vadd.f32 %v423, %v1110
    %v1149 = vadd.f32 %v428, %v1110
    %v1150 = vadd.f32 %v433, %v1110
    %v1151 = vadd.f32 %v438, %v1110
    %v1152 = vadd.f32 %v443, %v1110
    %v1153 = vadd.f32 %v448, %v1110
    %v1154 = vadd.f32 %v453, %v1110
    %v1155 = vadd.f32 %v458, %v1110
    %v1156 = vadd.f32 %v463, %v1110
    %v1157 = vadd.f32 %v468, %v1110
    %v1158 = vadd.f32 %v473, %v1110
    %v1159 = vadd.f32 %v478, %v1110
    %v1160 = vadd.f32 %v483, %v1110
    %v1161 = vadd.f32 %v488, %v1110
    %v1162 = vadd.f32 %v493, %v1110
    %v1163 = vadd.f32 %v498, %v1114
    %v1164 = vadd.f32 %v503, %v1114
    %v1165 = vadd.f32 %v508, %v1114
    %v1166 = vadd.f32 %v513, %v1114
    %v1167 = vadd.f32 %v518, %v1114
    %v1168 = vadd.f32 %v523, %v1114
    %v1169 = vadd.f32 %v528, %v1114
    %v1170 = vadd.f32 %v533, %v1114
    %v1171 = vadd.f32 %v538, %v1114
    %v1172 = vadd.f32 %v543, %v1114
    %v1173 = vadd.f32 %v548, %v1114
    %v1174 = vadd.f32 %v553, %v1114
    %v1175 = vadd.f32 %v558, %v1114
    %v1176 = vadd.f32 %v563, %v1114
    %v1177 = vadd.f32 %v568, %v1114
    %v1178 = vadd.f32 %v573, %v1114
    %v1179 = vadd.f32 %v578, %v1118
    %v1180 = vadd.f32 %v583, %v1118
    %v1181 = vadd.f32 %v588, %v1118
    %v1182 = vadd.f32 %v593, %v1118
    %v1183 = vadd.f32 %v598, %v1118
    %v1184 = vadd.f32 %v603, %v1118
    %v1185 = vadd.f32 %v608, %v1118
    %v1186 = vadd.f32 %v613, %v1118
    %v1187 = vadd.f32 %v618, %v1118
    %v1188 = vadd.f32 %v623, %v1118
    %v1189 = vadd.f32 %v628, %v1118
    %v1190 = vadd.f32 %v633, %v1118
    %v1191 = vadd.f32 %v638, %v1118
    %v1192 = vadd.f32 %v643, %v1118
    %v1193 = vadd.f32 %v648, %v1118
    %v1194 = vadd.f32 %v653, %v1118
    %v1195 = vadd.f32 %v658, %v1122
    %v1196 = vadd.f32 %v663, %v1122
    %v1197 = vadd.f32 %v668, %v1122
    %v1198 = vadd.f32 %v673, %v1122
    %v1199 = vadd.f32 %v678, %v1122
    %v1200 = vadd.f32 %v683, %v1122
    %v1201 = vadd.f32 %v688, %v1122
    %v1202 = vadd.f32 %v693, %v1122
    %v1203 = vadd.f32 %v698, %v1122
    %v1204 = vadd.f32 %v703, %v1122
    %v1205 = vadd.f32 %v708, %v1122
    %v1206 = vadd.f32 %v713, %v1122
    %v1207 = vadd.f32 %v718, %v1122
    %v1208 = vadd.f32 %v723, %v1122
    %v1209 = vadd.f32 %v728, %v1122
    %v1210 = vadd.f32 %v733, %v1122
    %v1211 = vadd.f32 %v738, %v1126
    %v1212 = vadd.f32 %v743, %v1126
    %v1213 = vadd.f32 %v748, %v1126
    %v1214 = vadd.f32 %v753, %v1126
    %v1215 = vadd.f32 %v758, %v1126
    %v1216 = vadd.f32 %v763, %v1126
    %v1217 = vadd.f32 %v768, %v1126
    %v1218 = vadd.f32 %v773, %v1126
    %v1219 = vadd.f32 %v778, %v1126
    %v1220 = vadd.f32 %v783, %v1126
    %v1221 = vadd.f32 %v788, %v1126
    %v1222 = vadd.f32 %v793, %v1126
    %v1223 = vadd.f32 %v798, %v1126
    %v1224 = vadd.f32 %v803, %v1126
    %v1225 = vadd.f32 %v808, %v1126
    %v1226 = vadd.f32 %v813, %v1126
    %v1227 = vadd.f32 %v818, %v1130
    %v1228 = vadd.f32 %v823, %v1130
    %v1229 = vadd.f32 %v828, %v1130
    %v1230 = vadd.f32 %v833, %v1130
    %v1231 = vadd.f32 %v838, %v1130
    %v1232 = vadd.f32 %v843, %v1130
    %v1233 = vadd.f32 %v848, %v1130
    %v1234 = vadd.f32 %v853, %v1130
    %v1235 = vadd.f32 %v858, %v1130
    %v1236 = vadd.f32 %v863, %v1130
    %v1237 = vadd.f32 %v868, %v1130
    %v1238 = vadd.f32 %v873, %v1130
    %v1239 = vadd.f32 %v878, %v1130
    %v1240 = vadd.f32 %v883, %v1130
    %v1241 = vadd.f32 %v888, %v1130
    %v1242 = vadd.f32 %v893, %v1130
    %v1243 = vadd.f32 %v898, %v1134
    %v1244 = vadd.f32 %v903, %v1134
    %v1245 = vadd.f32 %v908, %v1134
    %v1246 = vadd.f32 %v913, %v1134
    %v1247 = vadd.f32 %v918, %v1134
    %v1248 = vadd.f32 %v923, %v1134
    %v1249 = vadd.f32 %v928, %v1134
    %v1250 = vadd.f32 %v933, %v1134
    %v1251 = vadd.f32 %v938, %v1134
    %v1252 = vadd.f32 %v943, %v1134
    %v1253 = vadd.f32 %v948, %v1134
    %v1254 = vadd.f32 %v953, %v1134
    %v1255 = vadd.f32 %v958, %v1134
    %v1256 = vadd.f32 %v963, %v1134
    %v1257 = vadd.f32 %v968, %v1134
    %v1258 = vadd.f32 %v973, %v1134
    %v1259 = vadd.f32 %v978, %v1138
    %v1260 = vadd.f32 %v983, %v1138
    %v1261 = vadd.f32 %v988, %v1138
    %v1262 = vadd.f32 %v993, %v1138
    %v1263 = vadd.f32 %v998, %v1138
    %v1264 = vadd.f32 %v1003, %v1138
    %v1265 = vadd.f32 %v1008, %v1138
    %v1266 = vadd.f32 %v1013, %v1138
    %v1267 = vadd.f32 %v1018, %v1138
    %v1268 = vadd.f32 %v1023, %v1138
    %v1269 = vadd.f32 %v1028, %v1138
    %v1270 = vadd.f32 %v1033, %v1138
    %v1271 = vadd.f32 %v1038, %v1138
    %v1272 = vadd.f32 %v1043, %v1138
    %v1273 = vadd.f32 %v1048, %v1138
    %v1274 = vadd.f32 %v1053, %v1138
    %v1275 = vtanh.pop %v1147
    %v1276 = vtanh.pop %v1148
    %v1277 = vtanh.pop %v1149
    %v1278 = vtanh.pop %v1150
    %v1279 = vtanh.pop %v1151
    %v1280 = vtanh.pop %v1152
    %v1281 = vtanh.pop %v1153
    %v1282 = vtanh.pop %v1154
    %v1283 = vtanh.pop %v1155
    %v1284 = vtanh.pop %v1156
    %v1285 = vtanh.pop %v1157
    %v1286 = vtanh.pop %v1158
    %v1287 = vtanh.pop %v1159
    %v1288 = vtanh.pop %v1160
    %v1289 = vtanh.pop %v1161
    %v1290 = vtanh.pop %v1162
    %v1291 = vtanh.pop %v1163
    %v1292 = vtanh.pop %v1164
    %v1293 = vtanh.pop %v1165
    %v1294 = vtanh.pop %v1166
    %v1295 = vtanh.pop %v1167
    %v1296 = vtanh.pop %v1168
    %v1297 = vtanh.pop %v1169
    %v1298 = vtanh.pop %v1170
    %v1299 = vtanh.pop %v1171
    %v1300 = vtanh.pop %v1172
    %v1301 = vtanh.pop %v1173
    %v1302 = vtanh.pop %v1174
    %v1303 = vtanh.pop %v1175
    %v1304 = vtanh.pop %v1176
    %v1305 = vtanh.pop %v1177
    %v1306 = vtanh.pop %v1178
    %v1307 = vtanh.pop %v1179
    %v1308 = vtanh.pop %v1180
    %v1309 = vtanh.pop %v1181
    %v1310 = vtanh.pop %v1182
    %v1311 = vtanh.pop %v1183
    %v1312 = vtanh.pop %v1184
    %v1313 = vtanh.pop %v1185
    %v1314 = vtanh.pop %v1186
    %v1315 = vtanh.pop %v1187
    %v1316 = vtanh.pop %v1188
    %v1317 = vtanh.pop %v1189
    %v1318 = vtanh.pop %v1190
    %v1319 = vtanh.pop %v1191
    %v1320 = vtanh.pop %v1192
    %v1321 = vtanh.pop %v1193
    %v1322 = vtanh.pop %v1194
    %v1323 = vtanh.pop %v1195
    %v1324 = vtanh.pop %v1196
    %v1325 = vtanh.pop %v1197
    %v1326 = vtanh.pop %v1198
    %v1327 = vtanh.pop %v1199
    %v1328 = vtanh.pop %v1200
    %v1329 = vtanh.pop %v1201
    %v1330 = vtanh.pop %v1202
    %v1331 = vtanh.pop %v1203
    %v1332 = vtanh.pop %v1204
    %v1333 = vtanh.pop %v1205
    %v1334 = vtanh.pop %v1206
    %v1335 = vtanh.pop %v1207
    %v1336 = vtanh.pop %v1208
    %v1337 = vtanh.pop %v1209
    %v1338 = vtanh.pop %v1210
    %v1339 = vtanh.pop %v1211
    %v1340 = vtanh.pop %v1212
    %v1341 = vtanh.pop %v1213
    %v1342 = vtanh.pop %v1214
    %v1343 = vtanh.pop %v1215
    %v1344 = vtanh.pop %v1216
    %v1345 = vtanh.pop %v1217
    %v1346 = vtanh.pop %v1218
    %v1347 = vtanh.pop %v1219
    %v1348 = vtanh.pop %v1220
    %v1349 = vtanh.pop %v1221
    %v1350 = vtanh.pop %v1222
    %v1351 = vtanh.pop %v1223
    %v1352 = vtanh.pop %v1224
    %v1353 = vtanh.pop %v1225
    %v1354 = vtanh.pop %v1226
    %v1355 = vtanh.pop %v1227
    %v1356 = vtanh.pop %v1228
    %v1357 = vtanh.pop %v1229
    %v1358 = vtanh.pop %v1230
    %v1359 = vtanh.pop %v1231
    %v1360 = vtanh.pop %v1232
    %v1361 = vtanh.pop %v1233
    %v1362 = vtanh.pop %v1234
    %v1363 = vtanh.pop %v1235
    %v1364 = vtanh.pop %v1236
    %v1365 = vtanh.pop %v1237
    %v1366 = vtanh.pop %v1238
    %v1367 = vtanh.pop %v1239
    %v1368 = vtanh.pop %v1240
    %v1369 = vtanh.pop %v1241
    %v1370 = vtanh.pop %v1242
    %v1371 = vtanh.pop %v1243
    %v1372 = vtanh.pop %v1244
    %v1373 = vtanh.pop %v1245
    %v1374 = vtanh.pop %v1246
    %v1375 = vtanh.pop %v1247
    %v1376 = vtanh.pop %v1248
    %v1377 = vtanh.pop %v1249
    %v1378 = vtanh.pop %v1250
    %v1379 = vtanh.pop %v1251
    %v1380 = vtanh.pop %v1252
    %v1381 = vtanh.pop %v1253
    %v1382 = vtanh.pop %v1254
    %v1383 = vtanh.pop %v1255
    %v1384 = vtanh.pop %v1256
    %v1385 = vtanh.pop %v1257
    %v1386 = vtanh.pop %v1258
    %v1387 = vtanh.pop %v1259
    %v1388 = vtanh.pop %v1260
    %v1389 = vtanh.pop %v1261
    %v1390 = vtanh.pop %v1262
    %v1391 = vtanh.pop %v1263
    %v1392 = vtanh.pop %v1264
    %v1393 = vtanh.pop %v1265
    %v1394 = vtanh.pop %v1266
    %v1395 = vtanh.pop %v1267
    %v1396 = vtanh.pop %v1268
    %v1397 = vtanh.pop %v1269
    %v1398 = vtanh.pop %v1270
    %v1399 = vtanh.pop %v1271
    %v1400 = vtanh.pop %v1272
    %v1401 = vtanh.pop %v1273
    %v1402 = vtanh.pop %v1274
    %v1403 = vld [vmem:[%s7] sm:$0x1]
    %v1405 = vlaneseq
    %v1406 = vshrl.u32 %v1405, 7
    %v1407 = vsub.s32 0, %v1406
    %v1408 = vrot.slane %v1403, %v1407
    %v1410 = vmul.f32 %v1275, %v1408
    %v1411 = vmul.f32 %v1276, %v1408
    %v1412 = vmul.f32 %v1277, %v1408
    %v1413 = vmul.f32 %v1278, %v1408
    %v1414 = vmul.f32 %v1279, %v1408
    %v1415 = vmul.f32 %v1280, %v1408
    %v1416 = vmul.f32 %v1281, %v1408
    %v1417 = vmul.f32 %v1282, %v1408
    %v1418 = vmul.f32 %v1283, %v1408
    %v1419 = vmul.f32 %v1284, %v1408
    %v1420 = vmul.f32 %v1285, %v1408
    %v1421 = vmul.f32 %v1286, %v1408
    %v1422 = vmul.f32 %v1287, %v1408
    %v1423 = vmul.f32 %v1288, %v1408
    %v1424 = vmul.f32 %v1289, %v1408
    %v1425 = vmul.f32 %v1290, %v1408
    %v1426 = vmul.f32 %v1291, %v1408
    %v1427 = vmul.f32 %v1292, %v1408
    %v1428 = vmul.f32 %v1293, %v1408
    %v1429 = vmul.f32 %v1294, %v1408
    %v1430 = vmul.f32 %v1295, %v1408
    %v1431 = vmul.f32 %v1296, %v1408
    %v1432 = vmul.f32 %v1297, %v1408
    %v1433 = vmul.f32 %v1298, %v1408
    %v1434 = vmul.f32 %v1299, %v1408
    %v1435 = vmul.f32 %v1300, %v1408
    %v1436 = vmul.f32 %v1301, %v1408
    %v1437 = vmul.f32 %v1302, %v1408
    %v1438 = vmul.f32 %v1303, %v1408
    %v1439 = vmul.f32 %v1304, %v1408
    %v1440 = vmul.f32 %v1305, %v1408
    %v1441 = vmul.f32 %v1306, %v1408
    %v1442 = vmul.f32 %v1307, %v1408
    %v1443 = vmul.f32 %v1308, %v1408
    %v1444 = vmul.f32 %v1309, %v1408
    %v1445 = vmul.f32 %v1310, %v1408
    %v1446 = vmul.f32 %v1311, %v1408
    %v1447 = vmul.f32 %v1312, %v1408
    %v1448 = vmul.f32 %v1313, %v1408
    %v1449 = vmul.f32 %v1314, %v1408
    %v1450 = vmul.f32 %v1315, %v1408
    %v1451 = vmul.f32 %v1316, %v1408
    %v1452 = vmul.f32 %v1317, %v1408
    %v1453 = vmul.f32 %v1318, %v1408
    %v1454 = vmul.f32 %v1319, %v1408
    %v1455 = vmul.f32 %v1320, %v1408
    %v1456 = vmul.f32 %v1321, %v1408
    %v1457 = vmul.f32 %v1322, %v1408
    %v1458 = vmul.f32 %v1323, %v1408
    %v1459 = vmul.f32 %v1324, %v1408
    %v1460 = vmul.f32 %v1325, %v1408
    %v1461 = vmul.f32 %v1326, %v1408
    %v1462 = vmul.f32 %v1327, %v1408
    %v1463 = vmul.f32 %v1328, %v1408
    %v1464 = vmul.f32 %v1329, %v1408
    %v1465 = vmul.f32 %v1330, %v1408
    %v1466 = vmul.f32 %v1331, %v1408
    %v1467 = vmul.f32 %v1332, %v1408
    %v1468 = vmul.f32 %v1333, %v1408
    %v1469 = vmul.f32 %v1334, %v1408
    %v1470 = vmul.f32 %v1335, %v1408
    %v1471 = vmul.f32 %v1336, %v1408
    %v1472 = vmul.f32 %v1337, %v1408
    %v1473 = vmul.f32 %v1338, %v1408
    %v1474 = vmul.f32 %v1339, %v1408
    %v1475 = vmul.f32 %v1340, %v1408
    %v1476 = vmul.f32 %v1341, %v1408
    %v1477 = vmul.f32 %v1342, %v1408
    %v1478 = vmul.f32 %v1343, %v1408
    %v1479 = vmul.f32 %v1344, %v1408
    %v1480 = vmul.f32 %v1345, %v1408
    %v1481 = vmul.f32 %v1346, %v1408
    %v1482 = vmul.f32 %v1347, %v1408
    %v1483 = vmul.f32 %v1348, %v1408
    %v1484 = vmul.f32 %v1349, %v1408
    %v1485 = vmul.f32 %v1350, %v1408
    %v1486 = vmul.f32 %v1351, %v1408
    %v1487 = vmul.f32 %v1352, %v1408
    %v1488 = vmul.f32 %v1353, %v1408
    %v1489 = vmul.f32 %v1354, %v1408
    %v1490 = vmul.f32 %v1355, %v1408
    %v1491 = vmul.f32 %v1356, %v1408
    %v1492 = vmul.f32 %v1357, %v1408
    %v1493 = vmul.f32 %v1358, %v1408
    %v1494 = vmul.f32 %v1359, %v1408
    %v1495 = vmul.f32 %v1360, %v1408
    %v1496 = vmul.f32 %v1361, %v1408
    %v1497 = vmul.f32 %v1362, %v1408
    %v1498 = vmul.f32 %v1363, %v1408
    %v1499 = vmul.f32 %v1364, %v1408
    %v1500 = vmul.f32 %v1365, %v1408
    %v1501 = vmul.f32 %v1366, %v1408
    %v1502 = vmul.f32 %v1367, %v1408
    %v1503 = vmul.f32 %v1368, %v1408
    %v1504 = vmul.f32 %v1369, %v1408
    %v1505 = vmul.f32 %v1370, %v1408
    %v1506 = vmul.f32 %v1371, %v1408
    %v1507 = vmul.f32 %v1372, %v1408
    %v1508 = vmul.f32 %v1373, %v1408
    %v1509 = vmul.f32 %v1374, %v1408
    %v1510 = vmul.f32 %v1375, %v1408
    %v1511 = vmul.f32 %v1376, %v1408
    %v1512 = vmul.f32 %v1377, %v1408
    %v1513 = vmul.f32 %v1378, %v1408
    %v1514 = vmul.f32 %v1379, %v1408
    %v1515 = vmul.f32 %v1380, %v1408
    %v1516 = vmul.f32 %v1381, %v1408
    %v1517 = vmul.f32 %v1382, %v1408
    %v1518 = vmul.f32 %v1383, %v1408
    %v1519 = vmul.f32 %v1384, %v1408
    %v1520 = vmul.f32 %v1385, %v1408
    %v1521 = vmul.f32 %v1386, %v1408
    %v1522 = vmul.f32 %v1387, %v1408
    %v1523 = vmul.f32 %v1388, %v1408
    %v1524 = vmul.f32 %v1389, %v1408
    %v1525 = vmul.f32 %v1390, %v1408
    %v1526 = vmul.f32 %v1391, %v1408
    %v1527 = vmul.f32 %v1392, %v1408
    %v1528 = vmul.f32 %v1393, %v1408
    %v1529 = vmul.f32 %v1394, %v1408
    %v1530 = vmul.f32 %v1395, %v1408
    %v1531 = vmul.f32 %v1396, %v1408
    %v1532 = vmul.f32 %v1397, %v1408
    %v1533 = vmul.f32 %v1398, %v1408
    %v1534 = vmul.f32 %v1399, %v1408
    %v1535 = vmul.f32 %v1400, %v1408
    %v1536 = vmul.f32 %v1401, %v1408
    %v1537 = vmul.f32 %v1402, %v1408
    %1538 = vadd.xlane.f32.xlu0 %v1410
    %v1539 = vpop.xlane.xlu0 %1538
    %1540 = vadd.xlane.f32.xlu0 %v1411
    %v1541 = vpop.xlane.xlu0 %1540
    %1542 = vadd.xlane.f32.xlu0 %v1412
    %v1543 = vpop.xlane.xlu0 %1542
    %1544 = vadd.xlane.f32.xlu0 %v1413
    %v1545 = vpop.xlane.xlu0 %1544
    %1546 = vadd.xlane.f32.xlu0 %v1414
    %v1547 = vpop.xlane.xlu0 %1546
    %1548 = vadd.xlane.f32.xlu0 %v1415
    %v1549 = vpop.xlane.xlu0 %1548
    %1550 = vadd.xlane.f32.xlu0 %v1416
    %v1551 = vpop.xlane.xlu0 %1550
    %1552 = vadd.xlane.f32.xlu0 %v1417
    %v1553 = vpop.xlane.xlu0 %1552
    %1554 = vadd.xlane.f32.xlu0 %v1418
    %v1555 = vpop.xlane.xlu0 %1554
    %1556 = vadd.xlane.f32.xlu0 %v1419
    %v1557 = vpop.xlane.xlu0 %1556
    %1558 = vadd.xlane.f32.xlu0 %v1420
    %v1559 = vpop.xlane.xlu0 %1558
    %1560 = vadd.xlane.f32.xlu0 %v1421
    %v1561 = vpop.xlane.xlu0 %1560
    %1562 = vadd.xlane.f32.xlu0 %v1422
    %v1563 = vpop.xlane.xlu0 %1562
    %1564 = vadd.xlane.f32.xlu0 %v1423
    %v1565 = vpop.xlane.xlu0 %1564
    %1566 = vadd.xlane.f32.xlu0 %v1424
    %v1567 = vpop.xlane.xlu0 %1566
    %1568 = vadd.xlane.f32.xlu0 %v1425
    %v1569 = vpop.xlane.xlu0 %1568
    %1570 = vadd.xlane.f32.xlu0 %v1426
    %v1571 = vpop.xlane.xlu0 %1570
    %1572 = vadd.xlane.f32.xlu0 %v1427
    %v1573 = vpop.xlane.xlu0 %1572
    %1574 = vadd.xlane.f32.xlu0 %v1428
    %v1575 = vpop.xlane.xlu0 %1574
    %1576 = vadd.xlane.f32.xlu0 %v1429
    %v1577 = vpop.xlane.xlu0 %1576
    %1578 = vadd.xlane.f32.xlu0 %v1430
    %v1579 = vpop.xlane.xlu0 %1578
    %1580 = vadd.xlane.f32.xlu0 %v1431
    %v1581 = vpop.xlane.xlu0 %1580
    %1582 = vadd.xlane.f32.xlu0 %v1432
    %v1583 = vpop.xlane.xlu0 %1582
    %1584 = vadd.xlane.f32.xlu0 %v1433
    %v1585 = vpop.xlane.xlu0 %1584
    %1586 = vadd.xlane.f32.xlu0 %v1434
    %v1587 = vpop.xlane.xlu0 %1586
    %1588 = vadd.xlane.f32.xlu0 %v1435
    %v1589 = vpop.xlane.xlu0 %1588
    %1590 = vadd.xlane.f32.xlu0 %v1436
    %v1591 = vpop.xlane.xlu0 %1590
    %1592 = vadd.xlane.f32.xlu0 %v1437
    %v1593 = vpop.xlane.xlu0 %1592
    %1594 = vadd.xlane.f32.xlu0 %v1438
    %v1595 = vpop.xlane.xlu0 %1594
    %1596 = vadd.xlane.f32.xlu0 %v1439
    %v1597 = vpop.xlane.xlu0 %1596
    %1598 = vadd.xlane.f32.xlu0 %v1440
    %v1599 = vpop.xlane.xlu0 %1598
    %1600 = vadd.xlane.f32.xlu0 %v1441
    %v1601 = vpop.xlane.xlu0 %1600
    %1602 = vadd.xlane.f32.xlu0 %v1442
    %v1603 = vpop.xlane.xlu0 %1602
    %1604 = vadd.xlane.f32.xlu0 %v1443
    %v1605 = vpop.xlane.xlu0 %1604
    %1606 = vadd.xlane.f32.xlu0 %v1444
    %v1607 = vpop.xlane.xlu0 %1606
    %1608 = vadd.xlane.f32.xlu0 %v1445
    %v1609 = vpop.xlane.xlu0 %1608
    %1610 = vadd.xlane.f32.xlu0 %v1446
    %v1611 = vpop.xlane.xlu0 %1610
    %1612 = vadd.xlane.f32.xlu0 %v1447
    %v1613 = vpop.xlane.xlu0 %1612
    %1614 = vadd.xlane.f32.xlu0 %v1448
    %v1615 = vpop.xlane.xlu0 %1614
    %1616 = vadd.xlane.f32.xlu0 %v1449
    %v1617 = vpop.xlane.xlu0 %1616
    %1618 = vadd.xlane.f32.xlu0 %v1450
    %v1619 = vpop.xlane.xlu0 %1618
    %1620 = vadd.xlane.f32.xlu0 %v1451
    %v1621 = vpop.xlane.xlu0 %1620
    %1622 = vadd.xlane.f32.xlu0 %v1452
    %v1623 = vpop.xlane.xlu0 %1622
    %1624 = vadd.xlane.f32.xlu0 %v1453
    %v1625 = vpop.xlane.xlu0 %1624
    %1626 = vadd.xlane.f32.xlu0 %v1454
    %v1627 = vpop.xlane.xlu0 %1626
    %1628 = vadd.xlane.f32.xlu0 %v1455
    %v1629 = vpop.xlane.xlu0 %1628
    %1630 = vadd.xlane.f32.xlu0 %v1456
    %v1631 = vpop.xlane.xlu0 %1630
    %1632 = vadd.xlane.f32.xlu0 %v1457
    %v1633 = vpop.xlane.xlu0 %1632
    %1634 = vadd.xlane.f32.xlu0 %v1458
    %v1635 = vpop.xlane.xlu0 %1634
    %1636 = vadd.xlane.f32.xlu0 %v1459
    %v1637 = vpop.xlane.xlu0 %1636
    %1638 = vadd.xlane.f32.xlu0 %v1460
    %v1639 = vpop.xlane.xlu0 %1638
    %1640 = vadd.xlane.f32.xlu0 %v1461
    %v1641 = vpop.xlane.xlu0 %1640
    %1642 = vadd.xlane.f32.xlu0 %v1462
    %v1643 = vpop.xlane.xlu0 %1642
    %1644 = vadd.xlane.f32.xlu0 %v1463
    %v1645 = vpop.xlane.xlu0 %1644
    %1646 = vadd.xlane.f32.xlu0 %v1464
    %v1647 = vpop.xlane.xlu0 %1646
    %1648 = vadd.xlane.f32.xlu0 %v1465
    %v1649 = vpop.xlane.xlu0 %1648
    %1650 = vadd.xlane.f32.xlu0 %v1466
    %v1651 = vpop.xlane.xlu0 %1650
    %1652 = vadd.xlane.f32.xlu0 %v1467
    %v1653 = vpop.xlane.xlu0 %1652
    %1654 = vadd.xlane.f32.xlu0 %v1468
    %v1655 = vpop.xlane.xlu0 %1654
    %1656 = vadd.xlane.f32.xlu0 %v1469
    %v1657 = vpop.xlane.xlu0 %1656
    %1658 = vadd.xlane.f32.xlu0 %v1470
    %v1659 = vpop.xlane.xlu0 %1658
    %1660 = vadd.xlane.f32.xlu0 %v1471
    %v1661 = vpop.xlane.xlu0 %1660
    %1662 = vadd.xlane.f32.xlu0 %v1472
    %v1663 = vpop.xlane.xlu0 %1662
    %1664 = vadd.xlane.f32.xlu0 %v1473
    %v1665 = vpop.xlane.xlu0 %1664
    %1666 = vadd.xlane.f32.xlu0 %v1474
    %v1667 = vpop.xlane.xlu0 %1666
    %1668 = vadd.xlane.f32.xlu0 %v1475
    %v1669 = vpop.xlane.xlu0 %1668
    %1670 = vadd.xlane.f32.xlu0 %v1476
    %v1671 = vpop.xlane.xlu0 %1670
    %1672 = vadd.xlane.f32.xlu0 %v1477
    %v1673 = vpop.xlane.xlu0 %1672
    %1674 = vadd.xlane.f32.xlu0 %v1478
    %v1675 = vpop.xlane.xlu0 %1674
    %1676 = vadd.xlane.f32.xlu0 %v1479
    %v1677 = vpop.xlane.xlu0 %1676
    %1678 = vadd.xlane.f32.xlu0 %v1480
    %v1679 = vpop.xlane.xlu0 %1678
    %1680 = vadd.xlane.f32.xlu0 %v1481
    %v1681 = vpop.xlane.xlu0 %1680
    %1682 = vadd.xlane.f32.xlu0 %v1482
    %v1683 = vpop.xlane.xlu0 %1682
    %1684 = vadd.xlane.f32.xlu0 %v1483
    %v1685 = vpop.xlane.xlu0 %1684
    %1686 = vadd.xlane.f32.xlu0 %v1484
    %v1687 = vpop.xlane.xlu0 %1686
    %1688 = vadd.xlane.f32.xlu0 %v1485
    %v1689 = vpop.xlane.xlu0 %1688
    %1690 = vadd.xlane.f32.xlu0 %v1486
    %v1691 = vpop.xlane.xlu0 %1690
    %1692 = vadd.xlane.f32.xlu0 %v1487
    %v1693 = vpop.xlane.xlu0 %1692
    %1694 = vadd.xlane.f32.xlu0 %v1488
    %v1695 = vpop.xlane.xlu0 %1694
    %1696 = vadd.xlane.f32.xlu0 %v1489
    %v1697 = vpop.xlane.xlu0 %1696
    %1698 = vadd.xlane.f32.xlu0 %v1490
    %v1699 = vpop.xlane.xlu0 %1698
    %1700 = vadd.xlane.f32.xlu0 %v1491
    %v1701 = vpop.xlane.xlu0 %1700
    %1702 = vadd.xlane.f32.xlu0 %v1492
    %v1703 = vpop.xlane.xlu0 %1702
    %1704 = vadd.xlane.f32.xlu0 %v1493
    %v1705 = vpop.xlane.xlu0 %1704
    %1706 = vadd.xlane.f32.xlu0 %v1494
    %v1707 = vpop.xlane.xlu0 %1706
    %1708 = vadd.xlane.f32.xlu0 %v1495
    %v1709 = vpop.xlane.xlu0 %1708
    %1710 = vadd.xlane.f32.xlu0 %v1496
    %v1711 = vpop.xlane.xlu0 %1710
    %1712 = vadd.xlane.f32.xlu0 %v1497
    %v1713 = vpop.xlane.xlu0 %1712
    %1714 = vadd.xlane.f32.xlu0 %v1498
    %v1715 = vpop.xlane.xlu0 %1714
    %1716 = vadd.xlane.f32.xlu0 %v1499
    %v1717 = vpop.xlane.xlu0 %1716
    %1718 = vadd.xlane.f32.xlu0 %v1500
    %v1719 = vpop.xlane.xlu0 %1718
    %1720 = vadd.xlane.f32.xlu0 %v1501
    %v1721 = vpop.xlane.xlu0 %1720
    %1722 = vadd.xlane.f32.xlu0 %v1502
    %v1723 = vpop.xlane.xlu0 %1722
    %1724 = vadd.xlane.f32.xlu0 %v1503
    %v1725 = vpop.xlane.xlu0 %1724
    %1726 = vadd.xlane.f32.xlu0 %v1504
    %v1727 = vpop.xlane.xlu0 %1726
    %1728 = vadd.xlane.f32.xlu0 %v1505
    %v1729 = vpop.xlane.xlu0 %1728
    %1730 = vadd.xlane.f32.xlu0 %v1506
    %v1731 = vpop.xlane.xlu0 %1730
    %1732 = vadd.xlane.f32.xlu0 %v1507
    %v1733 = vpop.xlane.xlu0 %1732
    %1734 = vadd.xlane.f32.xlu0 %v1508
    %v1735 = vpop.xlane.xlu0 %1734
    %1736 = vadd.xlane.f32.xlu0 %v1509
    %v1737 = vpop.xlane.xlu0 %1736
    %1738 = vadd.xlane.f32.xlu0 %v1510
    %v1739 = vpop.xlane.xlu0 %1738
    %1740 = vadd.xlane.f32.xlu0 %v1511
    %v1741 = vpop.xlane.xlu0 %1740
    %1742 = vadd.xlane.f32.xlu0 %v1512
    %v1743 = vpop.xlane.xlu0 %1742
    %1744 = vadd.xlane.f32.xlu0 %v1513
    %v1745 = vpop.xlane.xlu0 %1744
    %1746 = vadd.xlane.f32.xlu0 %v1514
    %v1747 = vpop.xlane.xlu0 %1746
    %1748 = vadd.xlane.f32.xlu0 %v1515
    %v1749 = vpop.xlane.xlu0 %1748
    %1750 = vadd.xlane.f32.xlu0 %v1516
    %v1751 = vpop.xlane.xlu0 %1750
    %1752 = vadd.xlane.f32.xlu0 %v1517
    %v1753 = vpop.xlane.xlu0 %1752
    %1754 = vadd.xlane.f32.xlu0 %v1518
    %v1755 = vpop.xlane.xlu0 %1754
    %1756 = vadd.xlane.f32.xlu0 %v1519
    %v1757 = vpop.xlane.xlu0 %1756
    %1758 = vadd.xlane.f32.xlu0 %v1520
    %v1759 = vpop.xlane.xlu0 %1758
    %1760 = vadd.xlane.f32.xlu0 %v1521
    %v1761 = vpop.xlane.xlu0 %1760
    %1762 = vadd.xlane.f32.xlu0 %v1522
    %v1763 = vpop.xlane.xlu0 %1762
    %1764 = vadd.xlane.f32.xlu0 %v1523
    %v1765 = vpop.xlane.xlu0 %1764
    %1766 = vadd.xlane.f32.xlu0 %v1524
    %v1767 = vpop.xlane.xlu0 %1766
    %1768 = vadd.xlane.f32.xlu0 %v1525
    %v1769 = vpop.xlane.xlu0 %1768
    %1770 = vadd.xlane.f32.xlu0 %v1526
    %v1771 = vpop.xlane.xlu0 %1770
    %1772 = vadd.xlane.f32.xlu0 %v1527
    %v1773 = vpop.xlane.xlu0 %1772
    %1774 = vadd.xlane.f32.xlu0 %v1528
    %v1775 = vpop.xlane.xlu0 %1774
    %1776 = vadd.xlane.f32.xlu0 %v1529
    %v1777 = vpop.xlane.xlu0 %1776
    %1778 = vadd.xlane.f32.xlu0 %v1530
    %v1779 = vpop.xlane.xlu0 %1778
    %1780 = vadd.xlane.f32.xlu0 %v1531
    %v1781 = vpop.xlane.xlu0 %1780
    %1782 = vadd.xlane.f32.xlu0 %v1532
    %v1783 = vpop.xlane.xlu0 %1782
    %1784 = vadd.xlane.f32.xlu0 %v1533
    %v1785 = vpop.xlane.xlu0 %1784
    %1786 = vadd.xlane.f32.xlu0 %v1534
    %v1787 = vpop.xlane.xlu0 %1786
    %1788 = vadd.xlane.f32.xlu0 %v1535
    %v1789 = vpop.xlane.xlu0 %1788
    %1790 = vadd.xlane.f32.xlu0 %v1536
    %v1791 = vpop.xlane.xlu0 %1790
    %1792 = vadd.xlane.f32.xlu0 %v1537
    %v1793 = vpop.xlane.xlu0 %1792
    %v1794 = vld [vmem:[#allocation12] sm:$0xff]
    %vm1795 = vcmp.ne.s32.totalorder %v1794, 0
    %v1924 = vlaneseq
    %v1925 = vand.u32 %v1924, 127
    %v1926 = vlaneseq
    %v1927 = vshrl.u32 %v1926, 7
    %v1928 = vsub.s32 %v1925, %v1927
    %v1929 = vrot.slane %v1539, %v1928
    %v1930 = vadd.s32 %v1925, 4294967288
    %v1931 = vlaneseq
    %v1932 = vshrl.u32 %v1931, 7
    %v1933 = vsub.s32 %v1930, %v1932
    %v1934 = vrot.slane %v1541, %v1933
    %vm1935 = vcmask 130112
    %v1936 = vsel %vm1935, %v1934, %v1929
    %v1937 = vadd.s32 %v1925, 4294967280
    %v1938 = vlaneseq
    %v1939 = vshrl.u32 %v1938, 7
    %v1940 = vsub.s32 %v1937, %v1939
    %v1941 = vrot.slane %v1543, %v1940
    %vm1942 = vcmask 195712
    %v1943 = vsel %vm1942, %v1941, %v1936
    %v1944 = vadd.s32 %v1925, 4294967272
    %v1945 = vlaneseq
    %v1946 = vshrl.u32 %v1945, 7
    %v1947 = vsub.s32 %v1944, %v1946
    %v1948 = vrot.slane %v1545, %v1947
    %vm1949 = vcmask 261312
    %v1950 = vsel %vm1949, %v1948, %v1943
    %v1951 = vadd.s32 %v1925, 4294967264
    %v1952 = vlaneseq
    %v1953 = vshrl.u32 %v1952, 7
    %v1954 = vsub.s32 %v1951, %v1953
    %v1955 = vrot.slane %v1547, %v1954
    %vm1956 = vcmask 326912
    %v1957 = vsel %vm1956, %v1955, %v1950
    %v1958 = vadd.s32 %v1925, 4294967256
    %v1959 = vlaneseq
    %v1960 = vshrl.u32 %v1959, 7
    %v1961 = vsub.s32 %v1958, %v1960
    %v1962 = vrot.slane %v1549, %v1961
    %vm1963 = vcmask 392512
    %v1964 = vsel %vm1963, %v1962, %v1957
    %v1965 = vadd.s32 %v1925, 4294967248
    %v1966 = vlaneseq
    %v1967 = vshrl.u32 %v1966, 7
    %v1968 = vsub.s32 %v1965, %v1967
    %v1969 = vrot.slane %v1551, %v1968
    %vm1970 = vcmask 458112
    %v1971 = vsel %vm1970, %v1969, %v1964
    %v1972 = vadd.s32 %v1925, 4294967240
    %v1973 = vlaneseq
    %v1974 = vshrl.u32 %v1973, 7
    %v1975 = vsub.s32 %v1972, %v1974
    %v1976 = vrot.slane %v1553, %v1975
    %vm1977 = vcmask 523712
    %v1978 = vsel %vm1977, %v1976, %v1971
    %v1979 = vadd.s32 %v1925, 4294967232
    %v1980 = vlaneseq
    %v1981 = vshrl.u32 %v1980, 7
    %v1982 = vsub.s32 %v1979, %v1981
    %v1983 = vrot.slane %v1555, %v1982
    %vm1984 = vcmask 589312
    %v1985 = vsel %vm1984, %v1983, %v1978
    %v1986 = vadd.s32 %v1925, 4294967224
    %v1987 = vlaneseq
    %v1988 = vshrl.u32 %v1987, 7
    %v1989 = vsub.s32 %v1986, %v1988
    %v1990 = vrot.slane %v1557, %v1989
    %vm1991 = vcmask 654912
    %v1992 = vsel %vm1991, %v1990, %v1985
    %v1993 = vadd.s32 %v1925, 4294967216
    %v1994 = vlaneseq
    %v1995 = vshrl.u32 %v1994, 7
    %v1996 = vsub.s32 %v1993, %v1995
    %v1997 = vrot.slane %v1559, %v1996
    %vm1998 = vcmask 720512
    %v1999 = vsel %vm1998, %v1997, %v1992
    %v2000 = vadd.s32 %v1925, 4294967208
    %v2001 = vlaneseq
    %v2002 = vshrl.u32 %v2001, 7
    %v2003 = vsub.s32 %v2000, %v2002
    %v2004 = vrot.slane %v1561, %v2003
    %vm2005 = vcmask 786112
    %v2006 = vsel %vm2005, %v2004, %v1999
    %v2007 = vadd.s32 %v1925, 4294967200
    %v2008 = vlaneseq
    %v2009 = vshrl.u32 %v2008, 7
    %v2010 = vsub.s32 %v2007, %v2009
    %v2011 = vrot.slane %v1563, %v2010
    %vm2012 = vcmask 851712
    %v2013 = vsel %vm2012, %v2011, %v2006
    %v2014 = vadd.s32 %v1925, 4294967192
    %v2015 = vlaneseq
    %v2016 = vshrl.u32 %v2015, 7
    %v2017 = vsub.s32 %v2014, %v2016
    %v2018 = vrot.slane %v1565, %v2017
    %vm2019 = vcmask 917312
    %v2020 = vsel %vm2019, %v2018, %v2013
    %v2021 = vadd.s32 %v1925, 4294967184
    %v2022 = vlaneseq
    %v2023 = vshrl.u32 %v2022, 7
    %v2024 = vsub.s32 %v2021, %v2023
    %v2025 = vrot.slane %v1567, %v2024
    %vm2026 = vcmask 982912
    %v2027 = vsel %vm2026, %v2025, %v2020
    %v2028 = vadd.s32 %v1925, 4294967176
    %v2029 = vlaneseq
    %v2030 = vshrl.u32 %v2029, 7
    %v2031 = vsub.s32 %v2028, %v2030
    %v2032 = vrot.slane %v1569, %v2031
    %vm2033 = vcmask 1048512
    %v2034 = vsel %vm2033, %v2032, %v2027
    %v2035 = vlaneseq
    %v2036 = vshrl.u32 %v2035, 7
    %v2037 = vsub.s32 %v1925, %v2036
    %v2038 = vrot.slane %v1571, %v2037
    %v2039 = vlaneseq
    %v2040 = vshrl.u32 %v2039, 7
    %v2041 = vsub.s32 %v1930, %v2040
    %v2042 = vrot.slane %v1573, %v2041
    %v2043 = vsel %vm1935, %v2042, %v2038
    %v2044 = vlaneseq
    %v2045 = vshrl.u32 %v2044, 7
    %v2046 = vsub.s32 %v1937, %v2045
    %v2047 = vrot.slane %v1575, %v2046
    %v2048 = vsel %vm1942, %v2047, %v2043
    %v2049 = vlaneseq
    %v2050 = vshrl.u32 %v2049, 7
    %v2051 = vsub.s32 %v1944, %v2050
    %v2052 = vrot.slane %v1577, %v2051
    %v2053 = vsel %vm1949, %v2052, %v2048
    %v2054 = vlaneseq
    %v2055 = vshrl.u32 %v2054, 7
    %v2056 = vsub.s32 %v1951, %v2055
    %v2057 = vrot.slane %v1579, %v2056
    %v2058 = vsel %vm1956, %v2057, %v2053
    %v2059 = vlaneseq
    %v2060 = vshrl.u32 %v2059, 7
    %v2061 = vsub.s32 %v1958, %v2060
    %v2062 = vrot.slane %v1581, %v2061
    %v2063 = vsel %vm1963, %v2062, %v2058
    %v2064 = vlaneseq
    %v2065 = vshrl.u32 %v2064, 7
    %v2066 = vsub.s32 %v1965, %v2065
    %v2067 = vrot.slane %v1583, %v2066
    %v2068 = vsel %vm1970, %v2067, %v2063
    %v2069 = vlaneseq
    %v2070 = vshrl.u32 %v2069, 7
    %v2071 = vsub.s32 %v1972, %v2070
    %v2072 = vrot.slane %v1585, %v2071
    %v2073 = vsel %vm1977, %v2072, %v2068
    %v2074 = vlaneseq
    %v2075 = vshrl.u32 %v2074, 7
    %v2076 = vsub.s32 %v1979, %v2075
    %v2077 = vrot.slane %v1587, %v2076
    %v2078 = vsel %vm1984, %v2077, %v2073
    %v2079 = vlaneseq
    %v2080 = vshrl.u32 %v2079, 7
    %v2081 = vsub.s32 %v1986, %v2080
    %v2082 = vrot.slane %v1589, %v2081
    %v2083 = vsel %vm1991, %v2082, %v2078
    %v2084 = vlaneseq
    %v2085 = vshrl.u32 %v2084, 7
    %v2086 = vsub.s32 %v1993, %v2085
    %v2087 = vrot.slane %v1591, %v2086
    %v2088 = vsel %vm1998, %v2087, %v2083
    %v2089 = vlaneseq
    %v2090 = vshrl.u32 %v2089, 7
    %v2091 = vsub.s32 %v2000, %v2090
    %v2092 = vrot.slane %v1593, %v2091
    %v2093 = vsel %vm2005, %v2092, %v2088
    %v2094 = vlaneseq
    %v2095 = vshrl.u32 %v2094, 7
    %v2096 = vsub.s32 %v2007, %v2095
    %v2097 = vrot.slane %v1595, %v2096
    %v2098 = vsel %vm2012, %v2097, %v2093
    %v2099 = vlaneseq
    %v2100 = vshrl.u32 %v2099, 7
    %v2101 = vsub.s32 %v2014, %v2100
    %v2102 = vrot.slane %v1597, %v2101
    %v2103 = vsel %vm2019, %v2102, %v2098
    %v2104 = vlaneseq
    %v2105 = vshrl.u32 %v2104, 7
    %v2106 = vsub.s32 %v2021, %v2105
    %v2107 = vrot.slane %v1599, %v2106
    %v2108 = vsel %vm2026, %v2107, %v2103
    %v2109 = vlaneseq
    %v2110 = vshrl.u32 %v2109, 7
    %v2111 = vsub.s32 %v2028, %v2110
    %v2112 = vrot.slane %v1601, %v2111
    %v2113 = vsel %vm2033, %v2112, %v2108
    %v2114 = vlaneseq
    %v2115 = vshrl.u32 %v2114, 7
    %v2116 = vsub.s32 %v1925, %v2115
    %v2117 = vrot.slane %v1603, %v2116
    %v2118 = vlaneseq
    %v2119 = vshrl.u32 %v2118, 7
    %v2120 = vsub.s32 %v1930, %v2119
    %v2121 = vrot.slane %v1605, %v2120
    %v2122 = vsel %vm1935, %v2121, %v2117
    %v2123 = vlaneseq
    %v2124 = vshrl.u32 %v2123, 7
    %v2125 = vsub.s32 %v1937, %v2124
    %v2126 = vrot.slane %v1607, %v2125
    %v2127 = vsel %vm1942, %v2126, %v2122
    %v2128 = vlaneseq
    %v2129 = vshrl.u32 %v2128, 7
    %v2130 = vsub.s32 %v1944, %v2129
    %v2131 = vrot.slane %v1609, %v2130
    %v2132 = vsel %vm1949, %v2131, %v2127
    %v2133 = vlaneseq
    %v2134 = vshrl.u32 %v2133, 7
    %v2135 = vsub.s32 %v1951, %v2134
    %v2136 = vrot.slane %v1611, %v2135
    %v2137 = vsel %vm1956, %v2136, %v2132
    %v2138 = vlaneseq
    %v2139 = vshrl.u32 %v2138, 7
    %v2140 = vsub.s32 %v1958, %v2139
    %v2141 = vrot.slane %v1613, %v2140
    %v2142 = vsel %vm1963, %v2141, %v2137
    %v2143 = vlaneseq
    %v2144 = vshrl.u32 %v2143, 7
    %v2145 = vsub.s32 %v1965, %v2144
    %v2146 = vrot.slane %v1615, %v2145
    %v2147 = vsel %vm1970, %v2146, %v2142
    %v2148 = vlaneseq
    %v2149 = vshrl.u32 %v2148, 7
    %v2150 = vsub.s32 %v1972, %v2149
    %v2151 = vrot.slane %v1617, %v2150
    %v2152 = vsel %vm1977, %v2151, %v2147
    %v2153 = vlaneseq
    %v2154 = vshrl.u32 %v2153, 7
    %v2155 = vsub.s32 %v1979, %v2154
    %v2156 = vrot.slane %v1619, %v2155
    %v2157 = vsel %vm1984, %v2156, %v2152
    %v2158 = vlaneseq
    %v2159 = vshrl.u32 %v2158, 7
    %v2160 = vsub.s32 %v1986, %v2159
    %v2161 = vrot.slane %v1621, %v2160
    %v2162 = vsel %vm1991, %v2161, %v2157
    %v2163 = vlaneseq
    %v2164 = vshrl.u32 %v2163, 7
    %v2165 = vsub.s32 %v1993, %v2164
    %v2166 = vrot.slane %v1623, %v2165
    %v2167 = vsel %vm1998, %v2166, %v2162
    %v2168 = vlaneseq
    %v2169 = vshrl.u32 %v2168, 7
    %v2170 = vsub.s32 %v2000, %v2169
    %v2171 = vrot.slane %v1625, %v2170
    %v2172 = vsel %vm2005, %v2171, %v2167
    %v2173 = vlaneseq
    %v2174 = vshrl.u32 %v2173, 7
    %v2175 = vsub.s32 %v2007, %v2174
    %v2176 = vrot.slane %v1627, %v2175
    %v2177 = vsel %vm2012, %v2176, %v2172
    %v2178 = vlaneseq
    %v2179 = vshrl.u32 %v2178, 7
    %v2180 = vsub.s32 %v2014, %v2179
    %v2181 = vrot.slane %v1629, %v2180
    %v2182 = vsel %vm2019, %v2181, %v2177
    %v2183 = vlaneseq
    %v2184 = vshrl.u32 %v2183, 7
    %v2185 = vsub.s32 %v2021, %v2184
    %v2186 = vrot.slane %v1631, %v2185
    %v2187 = vsel %vm2026, %v2186, %v2182
    %v2188 = vlaneseq
    %v2189 = vshrl.u32 %v2188, 7
    %v2190 = vsub.s32 %v2028, %v2189
    %v2191 = vrot.slane %v1633, %v2190
    %v2192 = vsel %vm2033, %v2191, %v2187
    %v2193 = vlaneseq
    %v2194 = vshrl.u32 %v2193, 7
    %v2195 = vsub.s32 %v1925, %v2194
    %v2196 = vrot.slane %v1635, %v2195
    %v2197 = vlaneseq
    %v2198 = vshrl.u32 %v2197, 7
    %v2199 = vsub.s32 %v1930, %v2198
    %v2200 = vrot.slane %v1637, %v2199
    %v2201 = vsel %vm1935, %v2200, %v2196
    %v2202 = vlaneseq
    %v2203 = vshrl.u32 %v2202, 7
    %v2204 = vsub.s32 %v1937, %v2203
    %v2205 = vrot.slane %v1639, %v2204
    %v2206 = vsel %vm1942, %v2205, %v2201
    %v2207 = vlaneseq
    %v2208 = vshrl.u32 %v2207, 7
    %v2209 = vsub.s32 %v1944, %v2208
    %v2210 = vrot.slane %v1641, %v2209
    %v2211 = vsel %vm1949, %v2210, %v2206
    %v2212 = vlaneseq
    %v2213 = vshrl.u32 %v2212, 7
    %v2214 = vsub.s32 %v1951, %v2213
    %v2215 = vrot.slane %v1643, %v2214
    %v2216 = vsel %vm1956, %v2215, %v2211
    %v2217 = vlaneseq
    %v2218 = vshrl.u32 %v2217, 7
    %v2219 = vsub.s32 %v1958, %v2218
    %v2220 = vrot.slane %v1645, %v2219
    %v2221 = vsel %vm1963, %v2220, %v2216
    %v2222 = vlaneseq
    %v2223 = vshrl.u32 %v2222, 7
    %v2224 = vsub.s32 %v1965, %v2223
    %v2225 = vrot.slane %v1647, %v2224
    %v2226 = vsel %vm1970, %v2225, %v2221
    %v2227 = vlaneseq
    %v2228 = vshrl.u32 %v2227, 7
    %v2229 = vsub.s32 %v1972, %v2228
    %v2230 = vrot.slane %v1649, %v2229
    %v2231 = vsel %vm1977, %v2230, %v2226
    %v2232 = vlaneseq
    %v2233 = vshrl.u32 %v2232, 7
    %v2234 = vsub.s32 %v1979, %v2233
    %v2235 = vrot.slane %v1651, %v2234
    %v2236 = vsel %vm1984, %v2235, %v2231
    %v2237 = vlaneseq
    %v2238 = vshrl.u32 %v2237, 7
    %v2239 = vsub.s32 %v1986, %v2238
    %v2240 = vrot.slane %v1653, %v2239
    %v2241 = vsel %vm1991, %v2240, %v2236
    %v2242 = vlaneseq
    %v2243 = vshrl.u32 %v2242, 7
    %v2244 = vsub.s32 %v1993, %v2243
    %v2245 = vrot.slane %v1655, %v2244
    %v2246 = vsel %vm1998, %v2245, %v2241
    %v2247 = vlaneseq
    %v2248 = vshrl.u32 %v2247, 7
    %v2249 = vsub.s32 %v2000, %v2248
    %v2250 = vrot.slane %v1657, %v2249
    %v2251 = vsel %vm2005, %v2250, %v2246
    %v2252 = vlaneseq
    %v2253 = vshrl.u32 %v2252, 7
    %v2254 = vsub.s32 %v2007, %v2253
    %v2255 = vrot.slane %v1659, %v2254
    %v2256 = vsel %vm2012, %v2255, %v2251
    %v2257 = vlaneseq
    %v2258 = vshrl.u32 %v2257, 7
    %v2259 = vsub.s32 %v2014, %v2258
    %v2260 = vrot.slane %v1661, %v2259
    %v2261 = vsel %vm2019, %v2260, %v2256
    %v2262 = vlaneseq
    %v2263 = vshrl.u32 %v2262, 7
    %v2264 = vsub.s32 %v2021, %v2263
    %v2265 = vrot.slane %v1663, %v2264
    %v2266 = vsel %vm2026, %v2265, %v2261
    %v2267 = vlaneseq
    %v2268 = vshrl.u32 %v2267, 7
    %v2269 = vsub.s32 %v2028, %v2268
    %v2270 = vrot.slane %v1665, %v2269
    %v2271 = vsel %vm2033, %v2270, %v2266
    %v2272 = vlaneseq
    %v2273 = vshrl.u32 %v2272, 7
    %v2274 = vsub.s32 %v1925, %v2273
    %v2275 = vrot.slane %v1667, %v2274
    %v2276 = vlaneseq
    %v2277 = vshrl.u32 %v2276, 7
    %v2278 = vsub.s32 %v1930, %v2277
    %v2279 = vrot.slane %v1669, %v2278
    %v2280 = vsel %vm1935, %v2279, %v2275
    %v2281 = vlaneseq
    %v2282 = vshrl.u32 %v2281, 7
    %v2283 = vsub.s32 %v1937, %v2282
    %v2284 = vrot.slane %v1671, %v2283
    %v2285 = vsel %vm1942, %v2284, %v2280
    %v2286 = vlaneseq
    %v2287 = vshrl.u32 %v2286, 7
    %v2288 = vsub.s32 %v1944, %v2287
    %v2289 = vrot.slane %v1673, %v2288
    %v2290 = vsel %vm1949, %v2289, %v2285
    %v2291 = vlaneseq
    %v2292 = vshrl.u32 %v2291, 7
    %v2293 = vsub.s32 %v1951, %v2292
    %v2294 = vrot.slane %v1675, %v2293
    %v2295 = vsel %vm1956, %v2294, %v2290
    %v2296 = vlaneseq
    %v2297 = vshrl.u32 %v2296, 7
    %v2298 = vsub.s32 %v1958, %v2297
    %v2299 = vrot.slane %v1677, %v2298
    %v2300 = vsel %vm1963, %v2299, %v2295
    %v2301 = vlaneseq
    %v2302 = vshrl.u32 %v2301, 7
    %v2303 = vsub.s32 %v1965, %v2302
    %v2304 = vrot.slane %v1679, %v2303
    %v2305 = vsel %vm1970, %v2304, %v2300
    %v2306 = vlaneseq
    %v2307 = vshrl.u32 %v2306, 7
    %v2308 = vsub.s32 %v1972, %v2307
    %v2309 = vrot.slane %v1681, %v2308
    %v2310 = vsel %vm1977, %v2309, %v2305
    %v2311 = vlaneseq
    %v2312 = vshrl.u32 %v2311, 7
    %v2313 = vsub.s32 %v1979, %v2312
    %v2314 = vrot.slane %v1683, %v2313
    %v2315 = vsel %vm1984, %v2314, %v2310
    %v2316 = vlaneseq
    %v2317 = vshrl.u32 %v2316, 7
    %v2318 = vsub.s32 %v1986, %v2317
    %v2319 = vrot.slane %v1685, %v2318
    %v2320 = vsel %vm1991, %v2319, %v2315
    %v2321 = vlaneseq
    %v2322 = vshrl.u32 %v2321, 7
    %v2323 = vsub.s32 %v1993, %v2322
    %v2324 = vrot.slane %v1687, %v2323
    %v2325 = vsel %vm1998, %v2324, %v2320
    %v2326 = vlaneseq
    %v2327 = vshrl.u32 %v2326, 7
    %v2328 = vsub.s32 %v2000, %v2327
    %v2329 = vrot.slane %v1689, %v2328
    %v2330 = vsel %vm2005, %v2329, %v2325
    %v2331 = vlaneseq
    %v2332 = vshrl.u32 %v2331, 7
    %v2333 = vsub.s32 %v2007, %v2332
    %v2334 = vrot.slane %v1691, %v2333
    %v2335 = vsel %vm2012, %v2334, %v2330
    %v2336 = vlaneseq
    %v2337 = vshrl.u32 %v2336, 7
    %v2338 = vsub.s32 %v2014, %v2337
    %v2339 = vrot.slane %v1693, %v2338
    %v2340 = vsel %vm2019, %v2339, %v2335
    %v2341 = vlaneseq
    %v2342 = vshrl.u32 %v2341, 7
    %v2343 = vsub.s32 %v2021, %v2342
    %v2344 = vrot.slane %v1695, %v2343
    %v2345 = vsel %vm2026, %v2344, %v2340
    %v2346 = vlaneseq
    %v2347 = vshrl.u32 %v2346, 7
    %v2348 = vsub.s32 %v2028, %v2347
    %v2349 = vrot.slane %v1697, %v2348
    %v2350 = vsel %vm2033, %v2349, %v2345
    %v2351 = vlaneseq
    %v2352 = vshrl.u32 %v2351, 7
    %v2353 = vsub.s32 %v1925, %v2352
    %v2354 = vrot.slane %v1699, %v2353
    %v2355 = vlaneseq
    %v2356 = vshrl.u32 %v2355, 7
    %v2357 = vsub.s32 %v1930, %v2356
    %v2358 = vrot.slane %v1701, %v2357
    %v2359 = vsel %vm1935, %v2358, %v2354
    %v2360 = vlaneseq
    %v2361 = vshrl.u32 %v2360, 7
    %v2362 = vsub.s32 %v1937, %v2361
    %v2363 = vrot.slane %v1703, %v2362
    %v2364 = vsel %vm1942, %v2363, %v2359
    %v2365 = vlaneseq
    %v2366 = vshrl.u32 %v2365, 7
    %v2367 = vsub.s32 %v1944, %v2366
    %v2368 = vrot.slane %v1705, %v2367
    %v2369 = vsel %vm1949, %v2368, %v2364
    %v2370 = vlaneseq
    %v2371 = vshrl.u32 %v2370, 7
    %v2372 = vsub.s32 %v1951, %v2371
    %v2373 = vrot.slane %v1707, %v2372
    %v2374 = vsel %vm1956, %v2373, %v2369
    %v2375 = vlaneseq
    %v2376 = vshrl.u32 %v2375, 7
    %v2377 = vsub.s32 %v1958, %v2376
    %v2378 = vrot.slane %v1709, %v2377
    %v2379 = vsel %vm1963, %v2378, %v2374
    %v2380 = vlaneseq
    %v2381 = vshrl.u32 %v2380, 7
    %v2382 = vsub.s32 %v1965, %v2381
    %v2383 = vrot.slane %v1711, %v2382
    %v2384 = vsel %vm1970, %v2383, %v2379
    %v2385 = vlaneseq
    %v2386 = vshrl.u32 %v2385, 7
    %v2387 = vsub.s32 %v1972, %v2386
    %v2388 = vrot.slane %v1713, %v2387
    %v2389 = vsel %vm1977, %v2388, %v2384
    %v2390 = vlaneseq
    %v2391 = vshrl.u32 %v2390, 7
    %v2392 = vsub.s32 %v1979, %v2391
    %v2393 = vrot.slane %v1715, %v2392
    %v2394 = vsel %vm1984, %v2393, %v2389
    %v2395 = vlaneseq
    %v2396 = vshrl.u32 %v2395, 7
    %v2397 = vsub.s32 %v1986, %v2396
    %v2398 = vrot.slane %v1717, %v2397
    %v2399 = vsel %vm1991, %v2398, %v2394
    %v2400 = vlaneseq
    %v2401 = vshrl.u32 %v2400, 7
    %v2402 = vsub.s32 %v1993, %v2401
    %v2403 = vrot.slane %v1719, %v2402
    %v2404 = vsel %vm1998, %v2403, %v2399
    %v2405 = vlaneseq
    %v2406 = vshrl.u32 %v2405, 7
    %v2407 = vsub.s32 %v2000, %v2406
    %v2408 = vrot.slane %v1721, %v2407
    %v2409 = vsel %vm2005, %v2408, %v2404
    %v2410 = vlaneseq
    %v2411 = vshrl.u32 %v2410, 7
    %v2412 = vsub.s32 %v2007, %v2411
    %v2413 = vrot.slane %v1723, %v2412
    %v2414 = vsel %vm2012, %v2413, %v2409
    %v2415 = vlaneseq
    %v2416 = vshrl.u32 %v2415, 7
    %v2417 = vsub.s32 %v2014, %v2416
    %v2418 = vrot.slane %v1725, %v2417
    %v2419 = vsel %vm2019, %v2418, %v2414
    %v2420 = vlaneseq
    %v2421 = vshrl.u32 %v2420, 7
    %v2422 = vsub.s32 %v2021, %v2421
    %v2423 = vrot.slane %v1727, %v2422
    %v2424 = vsel %vm2026, %v2423, %v2419
    %v2425 = vlaneseq
    %v2426 = vshrl.u32 %v2425, 7
    %v2427 = vsub.s32 %v2028, %v2426
    %v2428 = vrot.slane %v1729, %v2427
    %v2429 = vsel %vm2033, %v2428, %v2424
    %v2430 = vlaneseq
    %v2431 = vshrl.u32 %v2430, 7
    %v2432 = vsub.s32 %v1925, %v2431
    %v2433 = vrot.slane %v1731, %v2432
    %v2434 = vlaneseq
    %v2435 = vshrl.u32 %v2434, 7
    %v2436 = vsub.s32 %v1930, %v2435
    %v2437 = vrot.slane %v1733, %v2436
    %v2438 = vsel %vm1935, %v2437, %v2433
    %v2439 = vlaneseq
    %v2440 = vshrl.u32 %v2439, 7
    %v2441 = vsub.s32 %v1937, %v2440
    %v2442 = vrot.slane %v1735, %v2441
    %v2443 = vsel %vm1942, %v2442, %v2438
    %v2444 = vlaneseq
    %v2445 = vshrl.u32 %v2444, 7
    %v2446 = vsub.s32 %v1944, %v2445
    %v2447 = vrot.slane %v1737, %v2446
    %v2448 = vsel %vm1949, %v2447, %v2443
    %v2449 = vlaneseq
    %v2450 = vshrl.u32 %v2449, 7
    %v2451 = vsub.s32 %v1951, %v2450
    %v2452 = vrot.slane %v1739, %v2451
    %v2453 = vsel %vm1956, %v2452, %v2448
    %v2454 = vlaneseq
    %v2455 = vshrl.u32 %v2454, 7
    %v2456 = vsub.s32 %v1958, %v2455
    %v2457 = vrot.slane %v1741, %v2456
    %v2458 = vsel %vm1963, %v2457, %v2453
    %v2459 = vlaneseq
    %v2460 = vshrl.u32 %v2459, 7
    %v2461 = vsub.s32 %v1965, %v2460
    %v2462 = vrot.slane %v1743, %v2461
    %v2463 = vsel %vm1970, %v2462, %v2458
    %v2464 = vlaneseq
    %v2465 = vshrl.u32 %v2464, 7
    %v2466 = vsub.s32 %v1972, %v2465
    %v2467 = vrot.slane %v1745, %v2466
    %v2468 = vsel %vm1977, %v2467, %v2463
    %v2469 = vlaneseq
    %v2470 = vshrl.u32 %v2469, 7
    %v2471 = vsub.s32 %v1979, %v2470
    %v2472 = vrot.slane %v1747, %v2471
    %v2473 = vsel %vm1984, %v2472, %v2468
    %v2474 = vlaneseq
    %v2475 = vshrl.u32 %v2474, 7
    %v2476 = vsub.s32 %v1986, %v2475
    %v2477 = vrot.slane %v1749, %v2476
    %v2478 = vsel %vm1991, %v2477, %v2473
    %v2479 = vlaneseq
    %v2480 = vshrl.u32 %v2479, 7
    %v2481 = vsub.s32 %v1993, %v2480
    %v2482 = vrot.slane %v1751, %v2481
    %v2483 = vsel %vm1998, %v2482, %v2478
    %v2484 = vlaneseq
    %v2485 = vshrl.u32 %v2484, 7
    %v2486 = vsub.s32 %v2000, %v2485
    %v2487 = vrot.slane %v1753, %v2486
    %v2488 = vsel %vm2005, %v2487, %v2483
    %v2489 = vlaneseq
    %v2490 = vshrl.u32 %v2489, 7
    %v2491 = vsub.s32 %v2007, %v2490
    %v2492 = vrot.slane %v1755, %v2491
    %v2493 = vsel %vm2012, %v2492, %v2488
    %v2494 = vlaneseq
    %v2495 = vshrl.u32 %v2494, 7
    %v2496 = vsub.s32 %v2014, %v2495
    %v2497 = vrot.slane %v1757, %v2496
    %v2498 = vsel %vm2019, %v2497, %v2493
    %v2499 = vlaneseq
    %v2500 = vshrl.u32 %v2499, 7
    %v2501 = vsub.s32 %v2021, %v2500
    %v2502 = vrot.slane %v1759, %v2501
    %v2503 = vsel %vm2026, %v2502, %v2498
    %v2504 = vlaneseq
    %v2505 = vshrl.u32 %v2504, 7
    %v2506 = vsub.s32 %v2028, %v2505
    %v2507 = vrot.slane %v1761, %v2506
    %v2508 = vsel %vm2033, %v2507, %v2503
    %v2509 = vlaneseq
    %v2510 = vshrl.u32 %v2509, 7
    %v2511 = vsub.s32 %v1925, %v2510
    %v2512 = vrot.slane %v1763, %v2511
    %v2513 = vlaneseq
    %v2514 = vshrl.u32 %v2513, 7
    %v2515 = vsub.s32 %v1930, %v2514
    %v2516 = vrot.slane %v1765, %v2515
    %v2517 = vsel %vm1935, %v2516, %v2512
    %v2518 = vlaneseq
    %v2519 = vshrl.u32 %v2518, 7
    %v2520 = vsub.s32 %v1937, %v2519
    %v2521 = vrot.slane %v1767, %v2520
    %v2522 = vsel %vm1942, %v2521, %v2517
    %v2523 = vlaneseq
    %v2524 = vshrl.u32 %v2523, 7
    %v2525 = vsub.s32 %v1944, %v2524
    %v2526 = vrot.slane %v1769, %v2525
    %v2527 = vsel %vm1949, %v2526, %v2522
    %v2528 = vlaneseq
    %v2529 = vshrl.u32 %v2528, 7
    %v2530 = vsub.s32 %v1951, %v2529
    %v2531 = vrot.slane %v1771, %v2530
    %v2532 = vsel %vm1956, %v2531, %v2527
    %v2533 = vlaneseq
    %v2534 = vshrl.u32 %v2533, 7
    %v2535 = vsub.s32 %v1958, %v2534
    %v2536 = vrot.slane %v1773, %v2535
    %v2537 = vsel %vm1963, %v2536, %v2532
    %v2538 = vlaneseq
    %v2539 = vshrl.u32 %v2538, 7
    %v2540 = vsub.s32 %v1965, %v2539
    %v2541 = vrot.slane %v1775, %v2540
    %v2542 = vsel %vm1970, %v2541, %v2537
    %v2543 = vlaneseq
    %v2544 = vshrl.u32 %v2543, 7
    %v2545 = vsub.s32 %v1972, %v2544
    %v2546 = vrot.slane %v1777, %v2545
    %v2547 = vsel %vm1977, %v2546, %v2542
    %v2548 = vlaneseq
    %v2549 = vshrl.u32 %v2548, 7
    %v2550 = vsub.s32 %v1979, %v2549
    %v2551 = vrot.slane %v1779, %v2550
    %v2552 = vsel %vm1984, %v2551, %v2547
    %v2553 = vlaneseq
    %v2554 = vshrl.u32 %v2553, 7
    %v2555 = vsub.s32 %v1986, %v2554
    %v2556 = vrot.slane %v1781, %v2555
    %v2557 = vsel %vm1991, %v2556, %v2552
    %v2558 = vlaneseq
    %v2559 = vshrl.u32 %v2558, 7
    %v2560 = vsub.s32 %v1993, %v2559
    %v2561 = vrot.slane %v1783, %v2560
    %v2562 = vsel %vm1998, %v2561, %v2557
    %v2563 = vlaneseq
    %v2564 = vshrl.u32 %v2563, 7
    %v2565 = vsub.s32 %v2000, %v2564
    %v2566 = vrot.slane %v1785, %v2565
    %v2567 = vsel %vm2005, %v2566, %v2562
    %v2568 = vlaneseq
    %v2569 = vshrl.u32 %v2568, 7
    %v2570 = vsub.s32 %v2007, %v2569
    %v2571 = vrot.slane %v1787, %v2570
    %v2572 = vsel %vm2012, %v2571, %v2567
    %v2573 = vlaneseq
    %v2574 = vshrl.u32 %v2573, 7
    %v2575 = vsub.s32 %v2014, %v2574
    %v2576 = vrot.slane %v1789, %v2575
    %v2577 = vsel %vm2019, %v2576, %v2572
    %v2578 = vlaneseq
    %v2579 = vshrl.u32 %v2578, 7
    %v2580 = vsub.s32 %v2021, %v2579
    %v2581 = vrot.slane %v1791, %v2580
    %v2582 = vsel %vm2026, %v2581, %v2577
    %v2583 = vlaneseq
    %v2584 = vshrl.u32 %v2583, 7
    %v2585 = vsub.s32 %v2028, %v2584
    %v2586 = vrot.slane %v1793, %v2585
    %v2587 = vsel %vm2033, %v2586, %v2582
    %vm2588 = vcmask 1041409
    %v2589 = vsel %vm2588, %v2113, %v2034
    %vm2590 = vcmask 1042434
    %v2591 = vsel %vm2590, %v2192, %v2589
    %vm2592 = vcmask 1043459
    %v2593 = vsel %vm2592, %v2271, %v2591
    %vm2594 = vcmask 1044484
    %v2595 = vsel %vm2594, %v2350, %v2593
    %vm2596 = vcmask 1045509
    %v2597 = vsel %vm2596, %v2429, %v2595
    %vm2598 = vcmask 1046534
    %v2599 = vsel %vm2598, %v2508, %v2597
    %vm2600 = vcmask 1047559
    %v2601 = vsel %vm2600, %v2587, %v2599
    %v2603 = vsel %vm1795, -1e+30, %v2601
    %v2604 = vld [vmem:[#allocation3] sm:$0xff]
    %2605 = vmax.xlane.f32.xlu0 %v2603
    %v2606 = vpop.xlane.xlu0 %2605
    %v2607 = vmax.f32 %v2604, %v2606
    %v2608 = vsub.f32 %v2604, %v2607
    %v2609 = vmul.f32 %v2608, 1.442695
    %v2610 = vpow.pop %v2609
    %2612 = vset.pattern.permute.xlu0 0
    %2613 = vperm.xlu0 %2612, %v2607
    %v2614 = vpop.permute.xlu0 %2613
    %v2616 = vsub.f32 %v2603, %v2614
    %v2617 = vmul.f32 %v2616, 1.442695
    %v2618 = vpow.pop %v2617
    %v2619 = vld [vmem:[#allocation4] sm:$0xff]
    %v2620 = vmul.f32 %v2610, %v2619
    %2621 = vadd.xlane.f32.xlu0 %v2618
    %v2622 = vpop.xlane.xlu0 %2621
    %v2623 = vadd.f32 %v2620, %v2622
    %vm2624 = vcmask 7168
    %2625 = vst.msk [vmem:[#allocation4] sm:$0xff] %vm2624, %v2623
    %v2626 = vld [vmem:[#allocation5] sm:$0xff]
    %2628 = vset.pattern.permute.xlu0 0
    %2629 = vperm.xlu0 %2628, %v2610
    %v2630 = vpop.permute.xlu0 %2629
    %v2632 = vmul.f32 %v2630, %v2626
    %v2633 = vlaneseq
    %v2634 = vshrl.u32 %v2633, 7
    %v2635 = vsub.s32 0, %v2634
    %v2636 = vrot.slane %v2618, %v2635
    %2638 = vbcast.lane.b32.xlu0 %v2636, 256
    %v2639 = vpop.permute.xlu0 %2638
    %s2641 = sor.u32 256, 8
    %2642 = vbcast.lane.b32.xlu0 %v2636, %s2641
    %v2643 = vpop.permute.xlu0 %2642
    %s2645 = sor.u32 256, 16
    %2646 = vbcast.lane.b32.xlu0 %v2636, %s2645
    %v2647 = vpop.permute.xlu0 %2646
    %s2649 = sor.u32 256, 24
    %2650 = vbcast.lane.b32.xlu0 %v2636, %s2649
    %v2651 = vpop.permute.xlu0 %2650
    %s2653 = sor.u32 256, 32
    %2654 = vbcast.lane.b32.xlu0 %v2636, %s2653
    %v2655 = vpop.permute.xlu0 %2654
    %s2657 = sor.u32 256, 40
    %2658 = vbcast.lane.b32.xlu0 %v2636, %s2657
    %v2659 = vpop.permute.xlu0 %2658
    %s2661 = sor.u32 256, 48
    %2662 = vbcast.lane.b32.xlu0 %v2636, %s2661
    %v2663 = vpop.permute.xlu0 %2662
    %s2665 = sor.u32 256, 56
    %2666 = vbcast.lane.b32.xlu0 %v2636, %s2665
    %v2667 = vpop.permute.xlu0 %2666
    %s2669 = sor.u32 256, 64
    %2670 = vbcast.lane.b32.xlu0 %v2636, %s2669
    %v2671 = vpop.permute.xlu0 %2670
    %s2673 = sor.u32 256, 72
    %2674 = vbcast.lane.b32.xlu0 %v2636, %s2673
    %v2675 = vpop.permute.xlu0 %2674
    %s2677 = sor.u32 256, 80
    %2678 = vbcast.lane.b32.xlu0 %v2636, %s2677
    %v2679 = vpop.permute.xlu0 %2678
    %s2681 = sor.u32 256, 88
    %2682 = vbcast.lane.b32.xlu0 %v2636, %s2681
    %v2683 = vpop.permute.xlu0 %2682
    %s2685 = sor.u32 256, 96
    %2686 = vbcast.lane.b32.xlu0 %v2636, %s2685
    %v2687 = vpop.permute.xlu0 %2686
    %s2689 = sor.u32 256, 104
    %2690 = vbcast.lane.b32.xlu0 %v2636, %s2689
    %v2691 = vpop.permute.xlu0 %2690
    %s2693 = sor.u32 256, 112
    %2694 = vbcast.lane.b32.xlu0 %v2636, %s2693
    %v2695 = vpop.permute.xlu0 %2694
    %s2697 = sor.u32 256, 120
    %2698 = vbcast.lane.b32.xlu0 %v2636, %s2697
    %v2699 = vpop.permute.xlu0 %2698
    %v2700 = vlaneseq
    %v2701 = vshrl.u32 %v2700, 7
    %v2702 = vsub.s32 1, %v2701
    %v2703 = vrot.slane %v2618, %v2702
    %2705 = vbcast.lane.b32.xlu0 %v2703, 256
    %v2706 = vpop.permute.xlu0 %2705
    %s2708 = sor.u32 256, 8
    %2709 = vbcast.lane.b32.xlu0 %v2703, %s2708
    %v2710 = vpop.permute.xlu0 %2709
    %s2712 = sor.u32 256, 16
    %2713 = vbcast.lane.b32.xlu0 %v2703, %s2712
    %v2714 = vpop.permute.xlu0 %2713
    %s2716 = sor.u32 256, 24
    %2717 = vbcast.lane.b32.xlu0 %v2703, %s2716
    %v2718 = vpop.permute.xlu0 %2717
    %s2720 = sor.u32 256, 32
    %2721 = vbcast.lane.b32.xlu0 %v2703, %s2720
    %v2722 = vpop.permute.xlu0 %2721
    %s2724 = sor.u32 256, 40
    %2725 = vbcast.lane.b32.xlu0 %v2703, %s2724
    %v2726 = vpop.permute.xlu0 %2725
    %s2728 = sor.u32 256, 48
    %2729 = vbcast.lane.b32.xlu0 %v2703, %s2728
    %v2730 = vpop.permute.xlu0 %2729
    %s2732 = sor.u32 256, 56
    %2733 = vbcast.lane.b32.xlu0 %v2703, %s2732
    %v2734 = vpop.permute.xlu0 %2733
    %s2736 = sor.u32 256, 64
    %2737 = vbcast.lane.b32.xlu0 %v2703, %s2736
    %v2738 = vpop.permute.xlu0 %2737
    %s2740 = sor.u32 256, 72
    %2741 = vbcast.lane.b32.xlu0 %v2703, %s2740
    %v2742 = vpop.permute.xlu0 %2741
    %s2744 = sor.u32 256, 80
    %2745 = vbcast.lane.b32.xlu0 %v2703, %s2744
    %v2746 = vpop.permute.xlu0 %2745
    %s2748 = sor.u32 256, 88
    %2749 = vbcast.lane.b32.xlu0 %v2703, %s2748
    %v2750 = vpop.permute.xlu0 %2749
    %s2752 = sor.u32 256, 96
    %2753 = vbcast.lane.b32.xlu0 %v2703, %s2752
    %v2754 = vpop.permute.xlu0 %2753
    %s2756 = sor.u32 256, 104
    %2757 = vbcast.lane.b32.xlu0 %v2703, %s2756
    %v2758 = vpop.permute.xlu0 %2757
    %s2760 = sor.u32 256, 112
    %2761 = vbcast.lane.b32.xlu0 %v2703, %s2760
    %v2762 = vpop.permute.xlu0 %2761
    %s2764 = sor.u32 256, 120
    %2765 = vbcast.lane.b32.xlu0 %v2703, %s2764
    %v2766 = vpop.permute.xlu0 %2765
    %v2767 = vlaneseq
    %v2768 = vshrl.u32 %v2767, 7
    %v2769 = vsub.s32 2, %v2768
    %v2770 = vrot.slane %v2618, %v2769
    %2772 = vbcast.lane.b32.xlu0 %v2770, 256
    %v2773 = vpop.permute.xlu0 %2772
    %s2775 = sor.u32 256, 8
    %2776 = vbcast.lane.b32.xlu0 %v2770, %s2775
    %v2777 = vpop.permute.xlu0 %2776
    %s2779 = sor.u32 256, 16
    %2780 = vbcast.lane.b32.xlu0 %v2770, %s2779
    %v2781 = vpop.permute.xlu0 %2780
    %s2783 = sor.u32 256, 24
    %2784 = vbcast.lane.b32.xlu0 %v2770, %s2783
    %v2785 = vpop.permute.xlu0 %2784
    %s2787 = sor.u32 256, 32
    %2788 = vbcast.lane.b32.xlu0 %v2770, %s2787
    %v2789 = vpop.permute.xlu0 %2788
    %s2791 = sor.u32 256, 40
    %2792 = vbcast.lane.b32.xlu0 %v2770, %s2791
    %v2793 = vpop.permute.xlu0 %2792
    %s2795 = sor.u32 256, 48
    %2796 = vbcast.lane.b32.xlu0 %v2770, %s2795
    %v2797 = vpop.permute.xlu0 %2796
    %s2799 = sor.u32 256, 56
    %2800 = vbcast.lane.b32.xlu0 %v2770, %s2799
    %v2801 = vpop.permute.xlu0 %2800
    %s2803 = sor.u32 256, 64
    %2804 = vbcast.lane.b32.xlu0 %v2770, %s2803
    %v2805 = vpop.permute.xlu0 %2804
    %s2807 = sor.u32 256, 72
    %2808 = vbcast.lane.b32.xlu0 %v2770, %s2807
    %v2809 = vpop.permute.xlu0 %2808
    %s2811 = sor.u32 256, 80
    %2812 = vbcast.lane.b32.xlu0 %v2770, %s2811
    %v2813 = vpop.permute.xlu0 %2812
    %s2815 = sor.u32 256, 88
    %2816 = vbcast.lane.b32.xlu0 %v2770, %s2815
    %v2817 = vpop.permute.xlu0 %2816
    %s2819 = sor.u32 256, 96
    %2820 = vbcast.lane.b32.xlu0 %v2770, %s2819
    %v2821 = vpop.permute.xlu0 %2820
    %s2823 = sor.u32 256, 104
    %2824 = vbcast.lane.b32.xlu0 %v2770, %s2823
    %v2825 = vpop.permute.xlu0 %2824
    %s2827 = sor.u32 256, 112
    %2828 = vbcast.lane.b32.xlu0 %v2770, %s2827
    %v2829 = vpop.permute.xlu0 %2828
    %s2831 = sor.u32 256, 120
    %2832 = vbcast.lane.b32.xlu0 %v2770, %s2831
    %v2833 = vpop.permute.xlu0 %2832
    %v2834 = vlaneseq
    %v2835 = vshrl.u32 %v2834, 7
    %v2836 = vsub.s32 3, %v2835
    %v2837 = vrot.slane %v2618, %v2836
    %2839 = vbcast.lane.b32.xlu0 %v2837, 256
    %v2840 = vpop.permute.xlu0 %2839
    %s2842 = sor.u32 256, 8
    %2843 = vbcast.lane.b32.xlu0 %v2837, %s2842
    %v2844 = vpop.permute.xlu0 %2843
    %s2846 = sor.u32 256, 16
    %2847 = vbcast.lane.b32.xlu0 %v2837, %s2846
    %v2848 = vpop.permute.xlu0 %2847
    %s2850 = sor.u32 256, 24
    %2851 = vbcast.lane.b32.xlu0 %v2837, %s2850
    %v2852 = vpop.permute.xlu0 %2851
    %s2854 = sor.u32 256, 32
    %2855 = vbcast.lane.b32.xlu0 %v2837, %s2854
    %v2856 = vpop.permute.xlu0 %2855
    %s2858 = sor.u32 256, 40
    %2859 = vbcast.lane.b32.xlu0 %v2837, %s2858
    %v2860 = vpop.permute.xlu0 %2859
    %s2862 = sor.u32 256, 48
    %2863 = vbcast.lane.b32.xlu0 %v2837, %s2862
    %v2864 = vpop.permute.xlu0 %2863
    %s2866 = sor.u32 256, 56
    %2867 = vbcast.lane.b32.xlu0 %v2837, %s2866
    %v2868 = vpop.permute.xlu0 %2867
    %s2870 = sor.u32 256, 64
    %2871 = vbcast.lane.b32.xlu0 %v2837, %s2870
    %v2872 = vpop.permute.xlu0 %2871
    %s2874 = sor.u32 256, 72
    %2875 = vbcast.lane.b32.xlu0 %v2837, %s2874
    %v2876 = vpop.permute.xlu0 %2875
    %s2878 = sor.u32 256, 80
    %2879 = vbcast.lane.b32.xlu0 %v2837, %s2878
    %v2880 = vpop.permute.xlu0 %2879
    %s2882 = sor.u32 256, 88
    %2883 = vbcast.lane.b32.xlu0 %v2837, %s2882
    %v2884 = vpop.permute.xlu0 %2883
    %s2886 = sor.u32 256, 96
    %2887 = vbcast.lane.b32.xlu0 %v2837, %s2886
    %v2888 = vpop.permute.xlu0 %2887
    %s2890 = sor.u32 256, 104
    %2891 = vbcast.lane.b32.xlu0 %v2837, %s2890
    %v2892 = vpop.permute.xlu0 %2891
    %s2894 = sor.u32 256, 112
    %2895 = vbcast.lane.b32.xlu0 %v2837, %s2894
    %v2896 = vpop.permute.xlu0 %2895
    %s2898 = sor.u32 256, 120
    %2899 = vbcast.lane.b32.xlu0 %v2837, %s2898
    %v2900 = vpop.permute.xlu0 %2899
    %v2901 = vlaneseq
    %v2902 = vshrl.u32 %v2901, 7
    %v2903 = vsub.s32 4, %v2902
    %v2904 = vrot.slane %v2618, %v2903
    %2906 = vbcast.lane.b32.xlu0 %v2904, 256
    %v2907 = vpop.permute.xlu0 %2906
    %s2909 = sor.u32 256, 8
    %2910 = vbcast.lane.b32.xlu0 %v2904, %s2909
    %v2911 = vpop.permute.xlu0 %2910
    %s2913 = sor.u32 256, 16
    %2914 = vbcast.lane.b32.xlu0 %v2904, %s2913
    %v2915 = vpop.permute.xlu0 %2914
    %s2917 = sor.u32 256, 24
    %2918 = vbcast.lane.b32.xlu0 %v2904, %s2917
    %v2919 = vpop.permute.xlu0 %2918
    %s2921 = sor.u32 256, 32
    %2922 = vbcast.lane.b32.xlu0 %v2904, %s2921
    %v2923 = vpop.permute.xlu0 %2922
    %s2925 = sor.u32 256, 40
    %2926 = vbcast.lane.b32.xlu0 %v2904, %s2925
    %v2927 = vpop.permute.xlu0 %2926
    %s2929 = sor.u32 256, 48
    %2930 = vbcast.lane.b32.xlu0 %v2904, %s2929
    %v2931 = vpop.permute.xlu0 %2930
    %s2933 = sor.u32 256, 56
    %2934 = vbcast.lane.b32.xlu0 %v2904, %s2933
    %v2935 = vpop.permute.xlu0 %2934
    %s2937 = sor.u32 256, 64
    %2938 = vbcast.lane.b32.xlu0 %v2904, %s2937
    %v2939 = vpop.permute.xlu0 %2938
    %s2941 = sor.u32 256, 72
    %2942 = vbcast.lane.b32.xlu0 %v2904, %s2941
    %v2943 = vpop.permute.xlu0 %2942
    %s2945 = sor.u32 256, 80
    %2946 = vbcast.lane.b32.xlu0 %v2904, %s2945
    %v2947 = vpop.permute.xlu0 %2946
    %s2949 = sor.u32 256, 88
    %2950 = vbcast.lane.b32.xlu0 %v2904, %s2949
    %v2951 = vpop.permute.xlu0 %2950
    %s2953 = sor.u32 256, 96
    %2954 = vbcast.lane.b32.xlu0 %v2904, %s2953
    %v2955 = vpop.permute.xlu0 %2954
    %s2957 = sor.u32 256, 104
    %2958 = vbcast.lane.b32.xlu0 %v2904, %s2957
    %v2959 = vpop.permute.xlu0 %2958
    %s2961 = sor.u32 256, 112
    %2962 = vbcast.lane.b32.xlu0 %v2904, %s2961
    %v2963 = vpop.permute.xlu0 %2962
    %s2965 = sor.u32 256, 120
    %2966 = vbcast.lane.b32.xlu0 %v2904, %s2965
    %v2967 = vpop.permute.xlu0 %2966
    %v2968 = vlaneseq
    %v2969 = vshrl.u32 %v2968, 7
    %v2970 = vsub.s32 5, %v2969
    %v2971 = vrot.slane %v2618, %v2970
    %2973 = vbcast.lane.b32.xlu0 %v2971, 256
    %v2974 = vpop.permute.xlu0 %2973
    %s2976 = sor.u32 256, 8
    %2977 = vbcast.lane.b32.xlu0 %v2971, %s2976
    %v2978 = vpop.permute.xlu0 %2977
    %s2980 = sor.u32 256, 16
    %2981 = vbcast.lane.b32.xlu0 %v2971, %s2980
    %v2982 = vpop.permute.xlu0 %2981
    %s2984 = sor.u32 256, 24
    %2985 = vbcast.lane.b32.xlu0 %v2971, %s2984
    %v2986 = vpop.permute.xlu0 %2985
    %s2988 = sor.u32 256, 32
    %2989 = vbcast.lane.b32.xlu0 %v2971, %s2988
    %v2990 = vpop.permute.xlu0 %2989
    %s2992 = sor.u32 256, 40
    %2993 = vbcast.lane.b32.xlu0 %v2971, %s2992
    %v2994 = vpop.permute.xlu0 %2993
    %s2996 = sor.u32 256, 48
    %2997 = vbcast.lane.b32.xlu0 %v2971, %s2996
    %v2998 = vpop.permute.xlu0 %2997
    %s3000 = sor.u32 256, 56
    %3001 = vbcast.lane.b32.xlu0 %v2971, %s3000
    %v3002 = vpop.permute.xlu0 %3001
    %s3004 = sor.u32 256, 64
    %3005 = vbcast.lane.b32.xlu0 %v2971, %s3004
    %v3006 = vpop.permute.xlu0 %3005
    %s3008 = sor.u32 256, 72
    %3009 = vbcast.lane.b32.xlu0 %v2971, %s3008
    %v3010 = vpop.permute.xlu0 %3009
    %s3012 = sor.u32 256, 80
    %3013 = vbcast.lane.b32.xlu0 %v2971, %s3012
    %v3014 = vpop.permute.xlu0 %3013
    %s3016 = sor.u32 256, 88
    %3017 = vbcast.lane.b32.xlu0 %v2971, %s3016
    %v3018 = vpop.permute.xlu0 %3017
    %s3020 = sor.u32 256, 96
    %3021 = vbcast.lane.b32.xlu0 %v2971, %s3020
    %v3022 = vpop.permute.xlu0 %3021
    %s3024 = sor.u32 256, 104
    %3025 = vbcast.lane.b32.xlu0 %v2971, %s3024
    %v3026 = vpop.permute.xlu0 %3025
    %s3028 = sor.u32 256, 112
    %3029 = vbcast.lane.b32.xlu0 %v2971, %s3028
    %v3030 = vpop.permute.xlu0 %3029
    %s3032 = sor.u32 256, 120
    %3033 = vbcast.lane.b32.xlu0 %v2971, %s3032
    %v3034 = vpop.permute.xlu0 %3033
    %v3035 = vlaneseq
    %v3036 = vshrl.u32 %v3035, 7
    %v3037 = vsub.s32 6, %v3036
    %v3038 = vrot.slane %v2618, %v3037
    %3040 = vbcast.lane.b32.xlu0 %v3038, 256
    %v3041 = vpop.permute.xlu0 %3040
    %s3043 = sor.u32 256, 8
    %3044 = vbcast.lane.b32.xlu0 %v3038, %s3043
    %v3045 = vpop.permute.xlu0 %3044
    %s3047 = sor.u32 256, 16
    %3048 = vbcast.lane.b32.xlu0 %v3038, %s3047
    %v3049 = vpop.permute.xlu0 %3048
    %s3051 = sor.u32 256, 24
    %3052 = vbcast.lane.b32.xlu0 %v3038, %s3051
    %v3053 = vpop.permute.xlu0 %3052
    %s3055 = sor.u32 256, 32
    %3056 = vbcast.lane.b32.xlu0 %v3038, %s3055
    %v3057 = vpop.permute.xlu0 %3056
    %s3059 = sor.u32 256, 40
    %3060 = vbcast.lane.b32.xlu0 %v3038, %s3059
    %v3061 = vpop.permute.xlu0 %3060
    %s3063 = sor.u32 256, 48
    %3064 = vbcast.lane.b32.xlu0 %v3038, %s3063
    %v3065 = vpop.permute.xlu0 %3064
    %s3067 = sor.u32 256, 56
    %3068 = vbcast.lane.b32.xlu0 %v3038, %s3067
    %v3069 = vpop.permute.xlu0 %3068
    %s3071 = sor.u32 256, 64
    %3072 = vbcast.lane.b32.xlu0 %v3038, %s3071
    %v3073 = vpop.permute.xlu0 %3072
    %s3075 = sor.u32 256, 72
    %3076 = vbcast.lane.b32.xlu0 %v3038, %s3075
    %v3077 = vpop.permute.xlu0 %3076
    %s3079 = sor.u32 256, 80
    %3080 = vbcast.lane.b32.xlu0 %v3038, %s3079
    %v3081 = vpop.permute.xlu0 %3080
    %s3083 = sor.u32 256, 88
    %3084 = vbcast.lane.b32.xlu0 %v3038, %s3083
    %v3085 = vpop.permute.xlu0 %3084
    %s3087 = sor.u32 256, 96
    %3088 = vbcast.lane.b32.xlu0 %v3038, %s3087
    %v3089 = vpop.permute.xlu0 %3088
    %s3091 = sor.u32 256, 104
    %3092 = vbcast.lane.b32.xlu0 %v3038, %s3091
    %v3093 = vpop.permute.xlu0 %3092
    %s3095 = sor.u32 256, 112
    %3096 = vbcast.lane.b32.xlu0 %v3038, %s3095
    %v3097 = vpop.permute.xlu0 %3096
    %s3099 = sor.u32 256, 120
    %3100 = vbcast.lane.b32.xlu0 %v3038, %s3099
    %v3101 = vpop.permute.xlu0 %3100
    %v3102 = vlaneseq
    %v3103 = vshrl.u32 %v3102, 7
    %v3104 = vsub.s32 7, %v3103
    %v3105 = vrot.slane %v2618, %v3104
    %3107 = vbcast.lane.b32.xlu0 %v3105, 256
    %v3108 = vpop.permute.xlu0 %3107
    %s3110 = sor.u32 256, 8
    %3111 = vbcast.lane.b32.xlu0 %v3105, %s3110
    %v3112 = vpop.permute.xlu0 %3111
    %s3114 = sor.u32 256, 16
    %3115 = vbcast.lane.b32.xlu0 %v3105, %s3114
    %v3116 = vpop.permute.xlu0 %3115
    %s3118 = sor.u32 256, 24
    %3119 = vbcast.lane.b32.xlu0 %v3105, %s3118
    %v3120 = vpop.permute.xlu0 %3119
    %s3122 = sor.u32 256, 32
    %3123 = vbcast.lane.b32.xlu0 %v3105, %s3122
    %v3124 = vpop.permute.xlu0 %3123
    %s3126 = sor.u32 256, 40
    %3127 = vbcast.lane.b32.xlu0 %v3105, %s3126
    %v3128 = vpop.permute.xlu0 %3127
    %s3130 = sor.u32 256, 48
    %3131 = vbcast.lane.b32.xlu0 %v3105, %s3130
    %v3132 = vpop.permute.xlu0 %3131
    %s3134 = sor.u32 256, 56
    %3135 = vbcast.lane.b32.xlu0 %v3105, %s3134
    %v3136 = vpop.permute.xlu0 %3135
    %s3138 = sor.u32 256, 64
    %3139 = vbcast.lane.b32.xlu0 %v3105, %s3138
    %v3140 = vpop.permute.xlu0 %3139
    %s3142 = sor.u32 256, 72
    %3143 = vbcast.lane.b32.xlu0 %v3105, %s3142
    %v3144 = vpop.permute.xlu0 %3143
    %s3146 = sor.u32 256, 80
    %3147 = vbcast.lane.b32.xlu0 %v3105, %s3146
    %v3148 = vpop.permute.xlu0 %3147
    %s3150 = sor.u32 256, 88
    %3151 = vbcast.lane.b32.xlu0 %v3105, %s3150
    %v3152 = vpop.permute.xlu0 %3151
    %s3154 = sor.u32 256, 96
    %3155 = vbcast.lane.b32.xlu0 %v3105, %s3154
    %v3156 = vpop.permute.xlu0 %3155
    %s3158 = sor.u32 256, 104
    %3159 = vbcast.lane.b32.xlu0 %v3105, %s3158
    %v3160 = vpop.permute.xlu0 %3159
    %s3162 = sor.u32 256, 112
    %3163 = vbcast.lane.b32.xlu0 %v3105, %s3162
    %v3164 = vpop.permute.xlu0 %3163
    %s3166 = sor.u32 256, 120
    %3167 = vbcast.lane.b32.xlu0 %v3105, %s3166
    %v3168 = vpop.permute.xlu0 %3167
    %v3169 = vmul.f32 %v2639, %v418
    %v3170 = vmul.f32 %v2643, %v423
    %v3171 = vmul.f32 %v2647, %v428
    %v3172 = vmul.f32 %v2651, %v433
    %v3173 = vmul.f32 %v2655, %v438
    %v3174 = vmul.f32 %v2659, %v443
    %v3175 = vmul.f32 %v2663, %v448
    %v3176 = vmul.f32 %v2667, %v453
    %v3177 = vmul.f32 %v2671, %v458
    %v3178 = vmul.f32 %v2675, %v463
    %v3179 = vmul.f32 %v2679, %v468
    %v3180 = vmul.f32 %v2683, %v473
    %v3181 = vmul.f32 %v2687, %v478
    %v3182 = vmul.f32 %v2691, %v483
    %v3183 = vmul.f32 %v2695, %v488
    %v3184 = vmul.f32 %v2699, %v493
    %v3185 = vmul.f32 %v2706, %v498
    %v3186 = vmul.f32 %v2710, %v503
    %v3187 = vmul.f32 %v2714, %v508
    %v3188 = vmul.f32 %v2718, %v513
    %v3189 = vmul.f32 %v2722, %v518
    %v3190 = vmul.f32 %v2726, %v523
    %v3191 = vmul.f32 %v2730, %v528
    %v3192 = vmul.f32 %v2734, %v533
    %v3193 = vmul.f32 %v2738, %v538
    %v3194 = vmul.f32 %v2742, %v543
    %v3195 = vmul.f32 %v2746, %v548
    %v3196 = vmul.f32 %v2750, %v553
    %v3197 = vmul.f32 %v2754, %v558
    %v3198 = vmul.f32 %v2758, %v563
    %v3199 = vmul.f32 %v2762, %v568
    %v3200 = vmul.f32 %v2766, %v573
    %v3201 = vmul.f32 %v2773, %v578
    %v3202 = vmul.f32 %v2777, %v583
    %v3203 = vmul.f32 %v2781, %v588
    %v3204 = vmul.f32 %v2785, %v593
    %v3205 = vmul.f32 %v2789, %v598
    %v3206 = vmul.f32 %v2793, %v603
    %v3207 = vmul.f32 %v2797, %v608
    %v3208 = vmul.f32 %v2801, %v613
    %v3209 = vmul.f32 %v2805, %v618
    %v3210 = vmul.f32 %v2809, %v623
    %v3211 = vmul.f32 %v2813, %v628
    %v3212 = vmul.f32 %v2817, %v633
    %v3213 = vmul.f32 %v2821, %v638
    %v3214 = vmul.f32 %v2825, %v643
    %v3215 = vmul.f32 %v2829, %v648
    %v3216 = vmul.f32 %v2833, %v653
    %v3217 = vmul.f32 %v2840, %v658
    %v3218 = vmul.f32 %v2844, %v663
    %v3219 = vmul.f32 %v2848, %v668
    %v3220 = vmul.f32 %v2852, %v673
    %v3221 = vmul.f32 %v2856, %v678
    %v3222 = vmul.f32 %v2860, %v683
    %v3223 = vmul.f32 %v2864, %v688
    %v3224 = vmul.f32 %v2868, %v693
    %v3225 = vmul.f32 %v2872, %v698
    %v3226 = vmul.f32 %v2876, %v703
    %v3227 = vmul.f32 %v2880, %v708
    %v3228 = vmul.f32 %v2884, %v713
    %v3229 = vmul.f32 %v2888, %v718
    %v3230 = vmul.f32 %v2892, %v723
    %v3231 = vmul.f32 %v2896, %v728
    %v3232 = vmul.f32 %v2900, %v733
    %v3233 = vmul.f32 %v2907, %v738
    %v3234 = vmul.f32 %v2911, %v743
    %v3235 = vmul.f32 %v2915, %v748
    %v3236 = vmul.f32 %v2919, %v753
    %v3237 = vmul.f32 %v2923, %v758
    %v3238 = vmul.f32 %v2927, %v763
    %v3239 = vmul.f32 %v2931, %v768
    %v3240 = vmul.f32 %v2935, %v773
    %v3241 = vmul.f32 %v2939, %v778
    %v3242 = vmul.f32 %v2943, %v783
    %v3243 = vmul.f32 %v2947, %v788
    %v3244 = vmul.f32 %v2951, %v793
    %v3245 = vmul.f32 %v2955, %v798
    %v3246 = vmul.f32 %v2959, %v803
    %v3247 = vmul.f32 %v2963, %v808
    %v3248 = vmul.f32 %v2967, %v813
    %v3249 = vmul.f32 %v2974, %v818
    %v3250 = vmul.f32 %v2978, %v823
    %v3251 = vmul.f32 %v2982, %v828
    %v3252 = vmul.f32 %v2986, %v833
    %v3253 = vmul.f32 %v2990, %v838
    %v3254 = vmul.f32 %v2994, %v843
    %v3255 = vmul.f32 %v2998, %v848
    %v3256 = vmul.f32 %v3002, %v853
    %v3257 = vmul.f32 %v3006, %v858
    %v3258 = vmul.f32 %v3010, %v863
    %v3259 = vmul.f32 %v3014, %v868
    %v3260 = vmul.f32 %v3018, %v873
    %v3261 = vmul.f32 %v3022, %v878
    %v3262 = vmul.f32 %v3026, %v883
    %v3263 = vmul.f32 %v3030, %v888
    %v3264 = vmul.f32 %v3034, %v893
    %v3265 = vmul.f32 %v3041, %v898
    %v3266 = vmul.f32 %v3045, %v903
    %v3267 = vmul.f32 %v3049, %v908
    %v3268 = vmul.f32 %v3053, %v913
    %v3269 = vmul.f32 %v3057, %v918
    %v3270 = vmul.f32 %v3061, %v923
    %v3271 = vmul.f32 %v3065, %v928
    %v3272 = vmul.f32 %v3069, %v933
    %v3273 = vmul.f32 %v3073, %v938
    %v3274 = vmul.f32 %v3077, %v943
    %v3275 = vmul.f32 %v3081, %v948
    %v3276 = vmul.f32 %v3085, %v953
    %v3277 = vmul.f32 %v3089, %v958
    %v3278 = vmul.f32 %v3093, %v963
    %v3279 = vmul.f32 %v3097, %v968
    %v3280 = vmul.f32 %v3101, %v973
    %v3281 = vmul.f32 %v3108, %v978
    %v3282 = vmul.f32 %v3112, %v983
    %v3283 = vmul.f32 %v3116, %v988
    %v3284 = vmul.f32 %v3120, %v993
    %v3285 = vmul.f32 %v3124, %v998
    %v3286 = vmul.f32 %v3128, %v1003
    %v3287 = vmul.f32 %v3132, %v1008
    %v3288 = vmul.f32 %v3136, %v1013
    %v3289 = vmul.f32 %v3140, %v1018
    %v3290 = vmul.f32 %v3144, %v1023
    %v3291 = vmul.f32 %v3148, %v1028
    %v3292 = vmul.f32 %v3152, %v1033
    %v3293 = vmul.f32 %v3156, %v1038
    %v3294 = vmul.f32 %v3160, %v1043
    %v3295 = vmul.f32 %v3164, %v1048
    %v3296 = vmul.f32 %v3168, %v1053
    %v3297 = vadd.f32 %v3169, %v3170
    %v3298 = vadd.f32 %v3297, %v3171
    %v3299 = vadd.f32 %v3298, %v3172
    %v3300 = vadd.f32 %v3299, %v3173
    %v3301 = vadd.f32 %v3300, %v3174
    %v3302 = vadd.f32 %v3301, %v3175
    %v3303 = vadd.f32 %v3302, %v3176
    %v3304 = vadd.f32 %v3303, %v3177
    %v3305 = vadd.f32 %v3304, %v3178
    %v3306 = vadd.f32 %v3305, %v3179
    %v3307 = vadd.f32 %v3306, %v3180
    %v3308 = vadd.f32 %v3307, %v3181
    %v3309 = vadd.f32 %v3308, %v3182
    %v3310 = vadd.f32 %v3309, %v3183
    %v3311 = vadd.f32 %v3310, %v3184
    %v3312 = vrot.slane %v3311, 4
    %v3313 = vadd.f32 %v3311, %v3312
    %v3314 = vrot.slane %v3313, 2
    %v3315 = vadd.f32 %v3313, %v3314
    %v3316 = vrot.slane %v3315, 1
    %v3317 = vadd.f32 %v3315, %v3316
    %v3318 = vadd.f32 %v3185, %v3186
    %v3319 = vadd.f32 %v3318, %v3187
    %v3320 = vadd.f32 %v3319, %v3188
    %v3321 = vadd.f32 %v3320, %v3189
    %v3322 = vadd.f32 %v3321, %v3190
    %v3323 = vadd.f32 %v3322, %v3191
    %v3324 = vadd.f32 %v3323, %v3192
    %v3325 = vadd.f32 %v3324, %v3193
    %v3326 = vadd.f32 %v3325, %v3194
    %v3327 = vadd.f32 %v3326, %v3195
    %v3328 = vadd.f32 %v3327, %v3196
    %v3329 = vadd.f32 %v3328, %v3197
    %v3330 = vadd.f32 %v3329, %v3198
    %v3331 = vadd.f32 %v3330, %v3199
    %v3332 = vadd.f32 %v3331, %v3200
    %v3333 = vrot.slane %v3332, 4
    %v3334 = vadd.f32 %v3332, %v3333
    %v3335 = vrot.slane %v3334, 2
    %v3336 = vadd.f32 %v3334, %v3335
    %v3337 = vrot.slane %v3336, 1
    %v3338 = vadd.f32 %v3336, %v3337
    %v3339 = vadd.f32 %v3201, %v3202
    %v3340 = vadd.f32 %v3339, %v3203
    %v3341 = vadd.f32 %v3340, %v3204
    %v3342 = vadd.f32 %v3341, %v3205
    %v3343 = vadd.f32 %v3342, %v3206
    %v3344 = vadd.f32 %v3343, %v3207
    %v3345 = vadd.f32 %v3344, %v3208
    %v3346 = vadd.f32 %v3345, %v3209
    %v3347 = vadd.f32 %v3346, %v3210
    %v3348 = vadd.f32 %v3347, %v3211
    %v3349 = vadd.f32 %v3348, %v3212
    %v3350 = vadd.f32 %v3349, %v3213
    %v3351 = vadd.f32 %v3350, %v3214
    %v3352 = vadd.f32 %v3351, %v3215
    %v3353 = vadd.f32 %v3352, %v3216
    %v3354 = vrot.slane %v3353, 4
    %v3355 = vadd.f32 %v3353, %v3354
    %v3356 = vrot.slane %v3355, 2
    %v3357 = vadd.f32 %v3355, %v3356
    %v3358 = vrot.slane %v3357, 1
    %v3359 = vadd.f32 %v3357, %v3358
    %v3360 = vadd.f32 %v3217, %v3218
    %v3361 = vadd.f32 %v3360, %v3219
    %v3362 = vadd.f32 %v3361, %v3220
    %v3363 = vadd.f32 %v3362, %v3221
    %v3364 = vadd.f32 %v3363, %v3222
    %v3365 = vadd.f32 %v3364, %v3223
    %v3366 = vadd.f32 %v3365, %v3224
    %v3367 = vadd.f32 %v3366, %v3225
    %v3368 = vadd.f32 %v3367, %v3226
    %v3369 = vadd.f32 %v3368, %v3227
    %v3370 = vadd.f32 %v3369, %v3228
    %v3371 = vadd.f32 %v3370, %v3229
    %v3372 = vadd.f32 %v3371, %v3230
    %v3373 = vadd.f32 %v3372, %v3231
    %v3374 = vadd.f32 %v3373, %v3232
    %v3375 = vrot.slane %v3374, 4
    %v3376 = vadd.f32 %v3374, %v3375
    %v3377 = vrot.slane %v3376, 2
    %v3378 = vadd.f32 %v3376, %v3377
    %v3379 = vrot.slane %v3378, 1
    %v3380 = vadd.f32 %v3378, %v3379
    %v3381 = vadd.f32 %v3233, %v3234
    %v3382 = vadd.f32 %v3381, %v3235
    %v3383 = vadd.f32 %v3382, %v3236
    %v3384 = vadd.f32 %v3383, %v3237
    %v3385 = vadd.f32 %v3384, %v3238
    %v3386 = vadd.f32 %v3385, %v3239
    %v3387 = vadd.f32 %v3386, %v3240
    %v3388 = vadd.f32 %v3387, %v3241
    %v3389 = vadd.f32 %v3388, %v3242
    %v3390 = vadd.f32 %v3389, %v3243
    %v3391 = vadd.f32 %v3390, %v3244
    %v3392 = vadd.f32 %v3391, %v3245
    %v3393 = vadd.f32 %v3392, %v3246
    %v3394 = vadd.f32 %v3393, %v3247
    %v3395 = vadd.f32 %v3394, %v3248
    %v3396 = vrot.slane %v3395, 4
    %v3397 = vadd.f32 %v3395, %v3396
    %v3398 = vrot.slane %v3397, 2
    %v3399 = vadd.f32 %v3397, %v3398
    %v3400 = vrot.slane %v3399, 1
    %v3401 = vadd.f32 %v3399, %v3400
    %v3402 = vadd.f32 %v3249, %v3250
    %v3403 = vadd.f32 %v3402, %v3251
    %v3404 = vadd.f32 %v3403, %v3252
    %v3405 = vadd.f32 %v3404, %v3253
    %v3406 = vadd.f32 %v3405, %v3254
    %v3407 = vadd.f32 %v3406, %v3255
    %v3408 = vadd.f32 %v3407, %v3256
    %v3409 = vadd.f32 %v3408, %v3257
    %v3410 = vadd.f32 %v3409, %v3258
    %v3411 = vadd.f32 %v3410, %v3259
    %v3412 = vadd.f32 %v3411, %v3260
    %v3413 = vadd.f32 %v3412, %v3261
    %v3414 = vadd.f32 %v3413, %v3262
    %v3415 = vadd.f32 %v3414, %v3263
    %v3416 = vadd.f32 %v3415, %v3264
    %v3417 = vrot.slane %v3416, 4
    %v3418 = vadd.f32 %v3416, %v3417
    %v3419 = vrot.slane %v3418, 2
    %v3420 = vadd.f32 %v3418, %v3419
    %v3421 = vrot.slane %v3420, 1
    %v3422 = vadd.f32 %v3420, %v3421
    %v3423 = vadd.f32 %v3265, %v3266
    %v3424 = vadd.f32 %v3423, %v3267
    %v3425 = vadd.f32 %v3424, %v3268
    %v3426 = vadd.f32 %v3425, %v3269
    %v3427 = vadd.f32 %v3426, %v3270
    %v3428 = vadd.f32 %v3427, %v3271
    %v3429 = vadd.f32 %v3428, %v3272
    %v3430 = vadd.f32 %v3429, %v3273
    %v3431 = vadd.f32 %v3430, %v3274
    %v3432 = vadd.f32 %v3431, %v3275
    %v3433 = vadd.f32 %v3432, %v3276
    %v3434 = vadd.f32 %v3433, %v3277
    %v3435 = vadd.f32 %v3434, %v3278
    %v3436 = vadd.f32 %v3435, %v3279
    %v3437 = vadd.f32 %v3436, %v3280
    %v3438 = vrot.slane %v3437, 4
    %v3439 = vadd.f32 %v3437, %v3438
    %v3440 = vrot.slane %v3439, 2
    %v3441 = vadd.f32 %v3439, %v3440
    %v3442 = vrot.slane %v3441, 1
    %v3443 = vadd.f32 %v3441, %v3442
    %v3444 = vadd.f32 %v3281, %v3282
    %v3445 = vadd.f32 %v3444, %v3283
    %v3446 = vadd.f32 %v3445, %v3284
    %v3447 = vadd.f32 %v3446, %v3285
    %v3448 = vadd.f32 %v3447, %v3286
    %v3449 = vadd.f32 %v3448, %v3287
    %v3450 = vadd.f32 %v3449, %v3288
    %v3451 = vadd.f32 %v3450, %v3289
    %v3452 = vadd.f32 %v3451, %v3290
    %v3453 = vadd.f32 %v3452, %v3291
    %v3454 = vadd.f32 %v3453, %v3292
    %v3455 = vadd.f32 %v3454, %v3293
    %v3456 = vadd.f32 %v3455, %v3294
    %v3457 = vadd.f32 %v3456, %v3295
    %v3458 = vadd.f32 %v3457, %v3296
    %v3459 = vrot.slane %v3458, 4
    %v3460 = vadd.f32 %v3458, %v3459
    %v3461 = vrot.slane %v3460, 2
    %v3462 = vadd.f32 %v3460, %v3461
    %v3463 = vrot.slane %v3462, 1
    %v3464 = vadd.f32 %v3462, %v3463
    %v3473 = vsel %vm2588, %v3338, %v3317
    %v3474 = vsel %vm2590, %v3359, %v3473
    %v3475 = vsel %vm2592, %v3380, %v3474
    %v3476 = vsel %vm2594, %v3401, %v3475
    %v3477 = vsel %vm2596, %v3422, %v3476
    %v3478 = vsel %vm2598, %v3443, %v3477
    %v3479 = vsel %vm2600, %v3464, %v3478
    %v3481 = vadd.f32 %v2632, %v3479
    %3482 = vst [vmem:[#allocation5] sm:$0xff] %v3481
    %3483 = vst.msk [vmem:[#allocation3] sm:$0xff] %vm2624, %v2607
    %s3484 = smul.u32 0, 8
    %s3485 = scalar_lea.vmem [#allocation6], %s3484
    %3486 = vst.msk [vmem:[%s3485] sm:$0xff] %vm2624, %v2607
    %s3487 = smul.u32 0, 128
    %s3488 = sshra.s32 %s3487, 7
    %s3489 = sand.u32 %s3487, 127
    %s3490 = scalar_lea.vmem [#allocation17], %s3488
    %3491 = vst [vmem:[%s3490] sm:$0xff] %v2618
    // Predicated region
    $region58: #{tpu_custom_call.1} parent=1 // pred_check
      %p3492 = pneg %p97
    $region59: #{tpu_custom_call.1} parent=1 // pred_check_branch
      %3494 = sbr.rel (%p3492) target = $region61
    $region60: #{tpu_custom_call.1} parent=1 // pred_region
      %v3495 = vld [vmem:[#allocation4] sm:$0xff]
      %v3496 = vrcp.pop %v3495
      %v3497 = vld [vmem:[#allocation3] sm:$0xff]
      %v3498 = vld [vmem:[#allocation5] sm:$0xff]
      %3500 = vset.pattern.permute.xlu0 0
      %3501 = vperm.xlu0 %3500, %v3496
      %v3502 = vpop.permute.xlu0 %3501
      %v3504 = vmul.f32 %v3498, %v3502
      %3505 = vst [vmem:[#allocation16] sm:$0xff] %v3504
      %v3506 = vld [vmem:[#allocation6] sm:$0xff]
      %v3507 = vsub.f32 %v3506, %v3497
      %v3508 = vmul.f32 %v3507, 1.442695
      %v3509 = vpow.pop %v3508
      %v3510 = vmul.f32 %v3509, %v3496
      %v3511 = vld [vmem:[#allocation17] sm:$0xff]
      %3513 = vset.pattern.permute.xlu0 0
      %3514 = vperm.xlu0 %3513, %v3510
      %v3515 = vpop.permute.xlu0 %3514
      %v3517 = vmul.f32 %v3511, %v3515
      %3518 = vst [vmem:[#allocation17] sm:$0xff] %v3517
    $region61: #{tpu_custom_call.1} parent=1 // pred_fallthru
      _
    // Predicated region
    $region62: #{tpu_custom_call.1} parent=1 // pred_check
      _
    $region63: #{tpu_custom_call.1} parent=1 // pred_check_branch
      %3520 = sbr.rel (0) target = $region65
    $region64: #{tpu_custom_call.1} parent=1 // pred_region
      %s3522 = ssub.s32 128, 128
      %3523 = vsyncadd [#allocation9], %s3522
      %s3525 = sshll.u32 [#allocation16], 4
      %s3526 = int_to_ptr.vmem [resolvable:$true] %s3525
      %3528 = dma.vmem_to_hbm [thread:$0]  %s3526, 128, %s8, [#allocation9]
    $region65: #{tpu_custom_call.1} parent=1 // pred_fallthru
      _
    // Predicated region
    $region66: #{tpu_custom_call.1} parent=1 // pred_check
      _
    $region67: #{tpu_custom_call.1} parent=1 // pred_check_branch
      %3530 = sbr.rel (0) target = $region69
    $region68: #{tpu_custom_call.1} parent=1 // pred_region
      %s3532 = ssub.s32 128, 128
      %3533 = vsyncadd [#allocation18], %s3532
      %s3535 = sshll.u32 [#allocation17], 4
      %s3536 = int_to_ptr.vmem [resolvable:$true] %s3535
      %3538 = dma.vmem_to_hbm [thread:$0]  %s3536, 128, %s9, [#allocation18]
    $region69: #{tpu_custom_call.1} parent=1 // pred_fallthru
      _
    // Predicated region
    $region70: #{tpu_custom_call.1} parent=1 // pred_check
      _
    $region71: #{tpu_custom_call.1} parent=1 // pred_check_branch
      %3540 = sbr.rel (0) target = $region73
    $region72: #{tpu_custom_call.1} parent=1 // pred_region
      %3541 = dma.done [#allocation9], 128
    $region73: #{tpu_custom_call.1} parent=1 // pred_fallthru
      _
    // Predicated region
    $region74: #{tpu_custom_call.1} parent=1 // pred_check
      _
    $region75: #{tpu_custom_call.1} parent=1 // pred_check_branch
      %3543 = sbr.rel (0) target = $region77
    $region76: #{tpu_custom_call.1} parent=1 // pred_region
      %3544 = dma.done [#allocation18], 128
    $region77: #{tpu_custom_call.1} parent=1 // pred_fallthru
      _
    %3545 = vsyncpa [#allocation8], 1
    %3546 = vsyncpa [#allocation11], 1
    %3547 = vsyncpa [#allocation14], 1
    %3548 = vsyncpa [#allocation9], 1
    %3549 = vsyncpa [#allocation18], 1

</llo_original>
